<compile_context>
chip_gen: v7x
topology: tpu7x:2x2x1
jax: 0.10.0
libtpu: 0.0.40
codegen_flags: <defaults>
</compile_context>

<pallas_src>
import jax
import jax.numpy as jnp
from jax import lax
from jax.experimental import pallas as pl
from jax.experimental.pallas import tpu as pltpu

EMB_DIM = 128
HIDDEN = 256
FEAT_DIM = 10
NUM_LAYERS = 6
D_IN_PAD = HIDDEN            # layer-0 input (138) is zero-padded to 256


def _round_up(x, m):
    return (x + m - 1) // m * m


# ------------------------- fused 6-layer LSTM + fc kernel -------------------------
def fused_lstm_fc(x0, wih, whh, b, fc_w, fc_b, *, T, Bp):
    """x0: (T*Bp, 256) bf16 time-major padded layer-0 input.
    wih/whh: (6, 256, 1024) bf16, b: (6, 1, 1024) f32 (b_ih + b_hh),
    fc_w: (256, V_pad) bf16, fc_b: (1, V_pad) f32.
    Returns logits (T*Bp, V_pad) f32."""
    TB = T * Bp
    H = HIDDEN
    G4 = 4 * H
    V_pad = fc_w.shape[1]

    def kernel(x0_ref, wih_ref, whh_ref, b_ref, fcw_ref, fcb_ref, out_ref,
               seq_ref, g_ref, h_ref, c_ref):
        layer = pl.program_id(0)
        w_ih = wih_ref[0]                       # (256, 4H) bf16
        w_hh = whh_ref[0]                       # (256, 4H) bf16
        bias = b_ref[0]                         # (1, 4H)   f32

        # ---- hoisted input projection: one big matmul per layer (M = T*Bp) ----
        @pl.when(layer == 0)
        def _():
            g_ref[...] = (jnp.dot(x0_ref[...], w_ih,
                                  preferred_element_type=jnp.float32) + bias)

        @pl.when(layer > 0)
        def _():
            g_ref[...] = (jnp.dot(seq_ref[...].astype(jnp.bfloat16), w_ih,
                                  preferred_element_type=jnp.float32) + bias)

        # ---- reset recurrent state for this layer (h0 = c0 = 0) ----
        h_ref[...] = jnp.zeros_like(h_ref)      # bf16
        c_ref[...] = jnp.zeros_like(c_ref)      # f32

        # ---- sequential recurrence: only h @ W_hh + gate math per step ----
        def step(t, carry):
            off = pl.multiple_of(t * Bp, 8)     # Bp is a multiple of 8
            gates = g_ref[pl.ds(off, Bp), :] + jnp.dot(
                h_ref[...], w_hh,
                preferred_element_type=jnp.float32)          # (Bp, 4H) f32

            # PyTorch gate order: input, forget, cell(g), output
            i = jax.nn.sigmoid(gates[:, 0 * H:1 * H])
            f = jax.nn.sigmoid(gates[:, 1 * H:2 * H])
            g = jnp.tanh(gates[:, 2 * H:3 * H])
            o = jax.nn.sigmoid(gates[:, 3 * H:4 * H])

            c_new = f * c_ref[...] + i * g
            h_new = o * jnp.tanh(c_new)
            c_ref[...] = c_new
            h_ref[...] = h_new.astype(jnp.bfloat16)
            seq_ref[pl.ds(off, Bp), :] = h_new   # aligned 8-row slab store (f32)
            return carry

        lax.fori_loop(0, T, step, 0, unroll=(T <= 16))

        # ---- fused fc projection on the last layer's full output (lane-dense) ----
        @pl.when(layer == pl.num_programs(0) - 1)
        def _():
            out_ref[...] = (jnp.dot(seq_ref[...].astype(jnp.bfloat16), fcw_ref[...],
                                    preferred_element_type=jnp.float32)
                            + fcb_ref[...])

    # VMEM budget: scratch + double-buffered streamed inputs + resident output.
    scratch_bytes = TB * H * 4 + TB * G4 * 4 + Bp * H * 2 + Bp * H * 4
    io_bytes = (2 * (TB * D_IN_PAD * 2          # x0 (bf16)
                     + D_IN_PAD * G4 * 2        # W_ih[l]
                     + H * G4 * 2               # W_hh[l]
                     + G4 * 4                   # bias[l]
                     + H * V_pad * 2            # fc_w
                     + V_pad * 4)               # fc_b
                + TB * V_pad * 4)               # resident output
    vmem_limit = min(max(32 * 1024 * 1024,
                         int(1.5 * (scratch_bytes + io_bytes))),
                     64 * 1024 * 1024)

    return pl.pallas_call(
        kernel,
        out_shape=jax.ShapeDtypeStruct((TB, V_pad), jnp.float32),
        grid_spec=pltpu.PrefetchScalarGridSpec(
            num_scalar_prefetch=0,
            grid=(NUM_LAYERS,),
            in_specs=[
                pl.BlockSpec((TB, D_IN_PAD), lambda l: (0, 0)),        # x0
                pl.BlockSpec((1, D_IN_PAD, G4), lambda l: (l, 0, 0)),  # W_ih[l]
                pl.BlockSpec((1, H, G4), lambda l: (l, 0, 0)),         # W_hh[l]
                pl.BlockSpec((1, 1, G4), lambda l: (l, 0, 0)),         # bias[l]
                pl.BlockSpec((H, V_pad), lambda l: (0, 0)),            # fc_w
                pl.BlockSpec((1, V_pad), lambda l: (0, 0)),            # fc_b
            ],
            out_specs=pl.BlockSpec((TB, V_pad), lambda l: (0, 0)),
            scratch_shapes=[
                pltpu.VMEM((TB, H), jnp.float32),       # layer in/out sequence slab
                pltpu.VMEM((TB, G4), jnp.float32),      # hoisted gates_in
                pltpu.VMEM((Bp, H), jnp.bfloat16),      # h state (MXU-ready)
                pltpu.VMEM((Bp, H), jnp.float32),       # c state
            ],
        ),
        compiler_params=pltpu.CompilerParams(
            dimension_semantics=("arbitrary",),          # layers are sequential
            vmem_limit_bytes=vmem_limit,
        ),
    )(x0, wih, whh, b, fc_w, fc_b)


# --------------------------------- parameters ---------------------------------
def init_params(key, vocab_size):
    keys = jax.random.split(key, 2 + 4 * NUM_LAYERS)

    # Embedding: N(0,1), padding_idx=0 row zeroed.
    emb = jax.random.normal(keys[0], (vocab_size, EMB_DIM), jnp.float32)
    emb = emb.at[0].set(0.0)

    # LSTM layers: uniform(-1/sqrt(H), 1/sqrt(H)); stored transposed (D_in, 4H)
    # so the kernel computes x @ W; layer-0's (138, 4H) is zero-padded to 256 rows.
    k = 1.0 / float(HIDDEN) ** 0.5
    wih_l, whh_l, b_l = [], [], []
    for layer in range(NUM_LAYERS):
        d_in = EMB_DIM + FEAT_DIM if layer == 0 else HIDDEN
        kw = keys[2 + 4 * layer: 2 + 4 * (layer + 1)]
        w_ih = jax.random.uniform(kw[0], (d_in, 4 * HIDDEN), jnp.float32, -k, k)
        w_hh = jax.random.uniform(kw[1], (HIDDEN, 4 * HIDDEN), jnp.float32, -k, k)
        b_ih = jax.random.uniform(kw[2], (4 * HIDDEN,), jnp.float32, -k, k)
        b_hh = jax.random.uniform(kw[3], (4 * HIDDEN,), jnp.float32, -k, k)
        if d_in < D_IN_PAD:
            w_ih = jnp.pad(w_ih, ((0, D_IN_PAD - d_in), (0, 0)))
        wih_l.append(w_ih)
        whh_l.append(w_hh)
        b_l.append((b_ih + b_hh).reshape(1, 4 * HIDDEN))

    # fc: Linear(HIDDEN, vocab); padded to lane-dense V_pad (multiple of 128).
    v_pad = max(128, _round_up(vocab_size, 128))
    fc_w = jax.random.uniform(keys[1], (HIDDEN, vocab_size), jnp.float32, -k, k)
    fc_w = jnp.pad(fc_w, ((0, 0), (0, v_pad - vocab_size)))
    fc_b = jnp.zeros((1, v_pad), jnp.float32)

    return {
        "embedding": emb,                                   # f32 (V, 128)
        "wih": jnp.stack(wih_l).astype(jnp.bfloat16),       # (6, 256, 1024)
        "whh": jnp.stack(whh_l).astype(jnp.bfloat16),       # (6, 256, 1024)
        "b": jnp.stack(b_l),                                # f32 (6, 1, 1024)
        "fc_w": fc_w.astype(jnp.bfloat16),                  # (256, V_pad)
        "fc_b": fc_b,                                       # f32 (1, V_pad)
    }


# --------------------------------- full model ---------------------------------
@jax.jit
def lstm_model_forward(params, features, descriptions):
    """features: (B, 10) f32, descriptions: (B, T) int32 -> logits (B, T, vocab)."""
    B, T = descriptions.shape
    vocab = params["embedding"].shape[0]
    Bp = max(8, _round_up(B, 8))                # sublane-aligned padded batch

    # Glue (plain JAX): embedding gather, feature broadcast, concat, pad, layout.
    emb = jnp.take(params["embedding"], descriptions, axis=0)        # (B, T, 128)
    feat = jnp.broadcast_to(features[:, None, :], (B, T, FEAT_DIM))  # (B, T, 10)
    x = jnp.concatenate([emb, feat], axis=2)                         # (B, T, 138)
    x = jnp.transpose(x, (1, 0, 2))                                  # (T, B, 138)
    x = jnp.pad(x, ((0, 0), (0, Bp - B),
                    (0, D_IN_PAD - (EMB_DIM + FEAT_DIM))))           # (T, Bp, 256)
    x0 = x.reshape(T * Bp, D_IN_PAD).astype(jnp.bfloat16)            # (T*Bp, 256)

    logits_pad = fused_lstm_fc(x0, params["wih"], params["whh"], params["b"],
                               params["fc_w"], params["fc_b"],
                               T=T, Bp=Bp)                           # (T*Bp, V_pad)

    v_pad = params["fc_w"].shape[1]
    logits = logits_pad.reshape(T, Bp, v_pad)[:, :B, :vocab]         # (T, B, V)
    return jnp.transpose(logits, (1, 0, 2))                          # (B, T, V)


if __name__ == "__main__":
    VOCAB = 40
    B, T = 2, 8

    key = jax.random.PRNGKey(0)
    k_params, k_feat, k_desc = jax.random.split(key, 3)

    params = init_params(k_params, VOCAB)
    features = jax.random.normal(k_feat, (B, FEAT_DIM), jnp.float32)
    descriptions = jax.random.randint(k_desc, (B, T), 0, VOCAB, jnp.int32)

    logits = lstm_model_forward(params, features, descriptions)
    jax.block_until_ready(logits)

    assert logits.shape == (B, T, VOCAB), logits.shape
    assert logits.dtype == jnp.float32
    assert bool(jnp.all(jnp.isfinite(logits)))
    print("KERNEL_OK")
</pallas_src>

<mosaic_0001>
module attributes {stable_mosaic.version = 11 : i64} {
  func.func @kernel(%arg0: i32, %arg1: memref<64x256xbf16, #tpu.memory_space<vmem>>, %arg2: memref<1x256x1024xbf16, #tpu.memory_space<vmem>>, %arg3: memref<1x256x1024xbf16, #tpu.memory_space<vmem>>, %arg4: memref<1x1x1024xf32, #tpu.memory_space<vmem>>, %arg5: memref<256x128xbf16, #tpu.memory_space<vmem>>, %arg6: memref<1x128xf32, #tpu.memory_space<vmem>>, %arg7: memref<64x128xf32, #tpu.memory_space<vmem>>, %arg8: memref<64x256xf32, #tpu.memory_space<vmem>>, %arg9: memref<64x1024xf32, #tpu.memory_space<vmem>>, %arg10: memref<8x256xbf16, #tpu.memory_space<vmem>>, %arg11: memref<8x256xf32, #tpu.memory_space<vmem>>) attributes {dimension_semantics = [#tpu.dimension_semantics<arbitrary>], iteration_bounds = array<i64: 6>, scalar_prefetch = 0 : i64, scratch_operands = 4 : i64, tpu.core_type = #tpu.core_type<tc>, window_params = [{pipeline_mode = #tpu.pipeline_mode<synchronous>, transform_indices = @transform_0, window_bounds = array<i64: 64, 256>}, {transform_indices = @transform_1, window_bounds = array<i64: 1, 256, 1024>}, {transform_indices = @transform_2, window_bounds = array<i64: 1, 256, 1024>}, {transform_indices = @transform_3, window_bounds = array<i64: 1, 1, 1024>}, {pipeline_mode = #tpu.pipeline_mode<synchronous>, transform_indices = @transform_4, window_bounds = array<i64: 256, 128>}, {pipeline_mode = #tpu.pipeline_mode<synchronous>, transform_indices = @transform_5, window_bounds = array<i64: 1, 128>}, {pipeline_mode = #tpu.pipeline_mode<synchronous>, transform_indices = @transform_6, window_bounds = array<i64: 64, 128>}]} {
    %c0 = arith.constant 0 : index
    %c0_0 = arith.constant 0 : index
    %c0_1 = arith.constant 0 : index
    %0 = vector.load %arg2[%c0, %c0_0, %c0_1] : memref<1x256x1024xbf16, #tpu.memory_space<vmem>>, vector<1x256x1024xbf16>
    %1 = vector.shape_cast %0 : vector<1x256x1024xbf16> to vector<256x1024xbf16>
    %c0_2 = arith.constant 0 : index
    %c0_3 = arith.constant 0 : index
    %c0_4 = arith.constant 0 : index
    %2 = vector.load %arg3[%c0_2, %c0_3, %c0_4] : memref<1x256x1024xbf16, #tpu.memory_space<vmem>>, vector<1x256x1024xbf16>
    %3 = vector.shape_cast %2 : vector<1x256x1024xbf16> to vector<256x1024xbf16>
    %c0_5 = arith.constant 0 : index
    %c0_6 = arith.constant 0 : index
    %c0_7 = arith.constant 0 : index
    %4 = vector.load %arg4[%c0_5, %c0_6, %c0_7] : memref<1x1x1024xf32, #tpu.memory_space<vmem>>, vector<1x1x1024xf32>
    %5 = vector.shape_cast %4 : vector<1x1x1024xf32> to vector<1x1024xf32>
    %c0_i32 = arith.constant 0 : i32
    %6 = arith.cmpi eq, %arg0, %c0_i32 : i32
    %7 = arith.extui %6 : i1 to i32
    %c0_i32_8 = arith.constant 0 : i32
    %8 = arith.cmpi ne, %7, %c0_i32_8 : i32
    scf.if %8 {
      %c0_139 = arith.constant 0 : index
      %c0_140 = arith.constant 0 : index
      %323 = vector.load %arg1[%c0_139, %c0_140] : memref<64x256xbf16, #tpu.memory_space<vmem>>, vector<64x256xbf16>
      %cst_141 = arith.constant dense<0.000000e+00> : vector<64x1024xf32>
      %324 = tpu.matmul %323, %1, %cst_141 {dimension_numbers = #tpu.dot_dimension_numbers<[1], [0], [0], [1], [0, 0, 1, 1], [], []>} : vector<64x256xbf16>, vector<256x1024xbf16>, vector<64x1024xf32> -> vector<64x1024xf32>
      %325 = vector.broadcast %5 : vector<1x1024xf32> to vector<64x1024xf32>
      %326 = arith.addf %324, %325 : vector<64x1024xf32>
      %c0_142 = arith.constant 0 : index
      %c0_143 = arith.constant 0 : index
      %327 = vector.load %arg9[%c0_142, %c0_143] : memref<64x1024xf32, #tpu.memory_space<vmem>>, vector<64x1024xf32>
      tpu.vector_store %arg9[%c0_142, %c0_143], %326 {strides = array<i32>} : memref<64x1024xf32, #tpu.memory_space<vmem>>, vector<64x1024xf32>,
    } else {
    }
    %c0_i32_9 = arith.constant 0 : i32
    %9 = arith.cmpi sgt, %arg0, %c0_i32_9 : i32
    %10 = arith.extui %9 : i1 to i32
    %c0_i32_10 = arith.constant 0 : i32
    %11 = arith.cmpi ne, %10, %c0_i32_10 : i32
    scf.if %11 {
      %c0_139 = arith.constant 0 : index
      %c0_140 = arith.constant 0 : index
      %323 = vector.load %arg8[%c0_139, %c0_140] : memref<64x256xf32, #tpu.memory_space<vmem>>, vector<64x256xf32>
      %324 = arith.truncf %323 : vector<64x256xf32> to vector<64x256xbf16>
      %cst_141 = arith.constant dense<0.000000e+00> : vector<64x1024xf32>
      %325 = tpu.matmul %324, %1, %cst_141 {dimension_numbers = #tpu.dot_dimension_numbers<[1], [0], [0], [1], [0, 0, 1, 1], [], []>} : vector<64x256xbf16>, vector<256x1024xbf16>, vector<64x1024xf32> -> vector<64x1024xf32>
      %326 = vector.broadcast %5 : vector<1x1024xf32> to vector<64x1024xf32>
      %327 = arith.addf %325, %326 : vector<64x1024xf32>
      %c0_142 = arith.constant 0 : index
      %c0_143 = arith.constant 0 : index
      %328 = vector.load %arg9[%c0_142, %c0_143] : memref<64x1024xf32, #tpu.memory_space<vmem>>, vector<64x1024xf32>
      tpu.vector_store %arg9[%c0_142, %c0_143], %327 {strides = array<i32>} : memref<64x1024xf32, #tpu.memory_space<vmem>>, vector<64x1024xf32>,
    } else {
    }
    %cst = arith.constant 0.000000e+00 : bf16
    %12 = vector.broadcast %cst : bf16 to vector<8x256xbf16>
    %c0_11 = arith.constant 0 : index
    %c0_12 = arith.constant 0 : index
    %13 = vector.load %arg10[%c0_11, %c0_12] : memref<8x256xbf16, #tpu.memory_space<vmem>>, vector<8x256xbf16>
    tpu.vector_store %arg10[%c0_11, %c0_12], %12 {strides = array<i32>} : memref<8x256xbf16, #tpu.memory_space<vmem>>, vector<8x256xbf16>,
    %cst_13 = arith.constant 0.000000e+00 : f32
    %14 = vector.broadcast %cst_13 : f32 to vector<8x256xf32>
    %c0_14 = arith.constant 0 : index
    %c0_15 = arith.constant 0 : index
    %15 = vector.load %arg11[%c0_14, %c0_15] : memref<8x256xf32, #tpu.memory_space<vmem>>, vector<8x256xf32>
    tpu.vector_store %arg11[%c0_14, %c0_15], %14 {strides = array<i32>} : memref<8x256xf32, #tpu.memory_space<vmem>>, vector<8x256xf32>,
    %c0_i32_16 = arith.constant 0 : i32
    %c8_i32 = arith.constant 8 : i32
    %16 = arith.muli %c0_i32_16, %c8_i32 : i32
    %17 = tpu.assume_multiple %16, 8 : i32
    %18 = arith.index_cast %17 : i32 to index
    %c0_17 = arith.constant 0 : index
    %19 = vector.load %arg9[%18, %c0_17] : memref<64x1024xf32, #tpu.memory_space<vmem>>, vector<8x1024xf32>
    %c0_18 = arith.constant 0 : index
    %c0_19 = arith.constant 0 : index
    %20 = vector.load %arg10[%c0_18, %c0_19] : memref<8x256xbf16, #tpu.memory_space<vmem>>, vector<8x256xbf16>
    %cst_20 = arith.constant dense<0.000000e+00> : vector<8x1024xf32>
    %21 = tpu.matmul %20, %3, %cst_20 {dimension_numbers = #tpu.dot_dimension_numbers<[1], [0], [0], [1], [0, 0, 1, 1], [], []>} : vector<8x256xbf16>, vector<256x1024xbf16>, vector<8x1024xf32> -> vector<8x1024xf32>
    %22 = arith.addf %19, %21 : vector<8x1024xf32>
    %23 = vector.extract_strided_slice %22 {offsets = [0, 0], sizes = [8, 256], strides = [1, 1]} : vector<8x1024xf32> to vector<8x256xf32>
    %24 = arith.negf %23 : vector<8x256xf32>
    %25 = math.exp %24 : vector<8x256xf32>
    %cst_21 = arith.constant 1.000000e+00 : f32
    %26 = vector.broadcast %cst_21 : f32 to vector<8x256xf32>
    %27 = arith.addf %26, %25 : vector<8x256xf32>
    %28 = arith.divf %26, %27 : vector<8x256xf32>
    %29 = vector.extract_strided_slice %22 {offsets = [0, 256], sizes = [8, 256], strides = [1, 1]} : vector<8x1024xf32> to vector<8x256xf32>
    %30 = arith.negf %29 : vector<8x256xf32>
    %31 = math.exp %30 : vector<8x256xf32>
    %cst_22 = arith.constant 1.000000e+00 : f32
    %32 = vector.broadcast %cst_22 : f32 to vector<8x256xf32>
    %33 = arith.addf %32, %31 : vector<8x256xf32>
    %34 = arith.divf %32, %33 : vector<8x256xf32>
    %35 = vector.extract_strided_slice %22 {offsets = [0, 512], sizes = [8, 256], strides = [1, 1]} : vector<8x1024xf32> to vector<8x256xf32>
    %36 = math.tanh %35 : vector<8x256xf32>
    %37 = vector.extract_strided_slice %22 {offsets = [0, 768], sizes = [8, 256], strides = [1, 1]} : vector<8x1024xf32> to vector<8x256xf32>
    %38 = arith.negf %37 : vector<8x256xf32>
    %39 = math.exp %38 : vector<8x256xf32>
    %cst_23 = arith.constant 1.000000e+00 : f32
    %40 = vector.broadcast %cst_23 : f32 to vector<8x256xf32>
    %41 = arith.addf %40, %39 : vector<8x256xf32>
    %42 = arith.divf %40, %41 : vector<8x256xf32>
    %c0_24 = arith.constant 0 : index
    %c0_25 = arith.constant 0 : index
    %43 = vector.load %arg11[%c0_24, %c0_25] : memref<8x256xf32, #tpu.memory_space<vmem>>, vector<8x256xf32>
    %44 = arith.mulf %34, %43 : vector<8x256xf32>
    %45 = arith.mulf %28, %36 : vector<8x256xf32>
    %46 = arith.addf %44, %45 : vector<8x256xf32>
    %47 = math.tanh %46 : vector<8x256xf32>
    %48 = arith.mulf %42, %47 : vector<8x256xf32>
    %c0_26 = arith.constant 0 : index
    %c0_27 = arith.constant 0 : index
    %49 = vector.load %arg11[%c0_26, %c0_27] : memref<8x256xf32, #tpu.memory_space<vmem>>, vector<8x256xf32>
    tpu.vector_store %arg11[%c0_26, %c0_27], %46 {strides = array<i32>} : memref<8x256xf32, #tpu.memory_space<vmem>>, vector<8x256xf32>,
    %50 = arith.truncf %48 : vector<8x256xf32> to vector<8x256xbf16>
    %c0_28 = arith.constant 0 : index
    %c0_29 = arith.constant 0 : index
    %51 = vector.load %arg10[%c0_28, %c0_29] : memref<8x256xbf16, #tpu.memory_space<vmem>>, vector<8x256xbf16>
    tpu.vector_store %arg10[%c0_28, %c0_29], %50 {strides = array<i32>} : memref<8x256xbf16, #tpu.memory_space<vmem>>, vector<8x256xbf16>,
    %52 = arith.index_cast %17 : i32 to index
    %c0_30 = arith.constant 0 : index
    %53 = vector.load %arg8[%52, %c0_30] : memref<64x256xf32, #tpu.memory_space<vmem>>, vector<8x256xf32>
    tpu.vector_store %arg8[%52, %c0_30], %48 {strides = array<i32>} : memref<64x256xf32, #tpu.memory_space<vmem>>, vector<8x256xf32>,
    %c1_i32 = arith.constant 1 : i32
    %c8_i32_31 = arith.constant 8 : i32
    %54 = arith.muli %c1_i32, %c8_i32_31 : i32
    %55 = tpu.assume_multiple %54, 8 : i32
    %56 = arith.index_cast %55 : i32 to index
    %c0_32 = arith.constant 0 : index
    %57 = vector.load %arg9[%56, %c0_32] : memref<64x1024xf32, #tpu.memory_space<vmem>>, vector<8x1024xf32>
    %c0_33 = arith.constant 0 : index
    %c0_34 = arith.constant 0 : index
    %58 = vector.load %arg10[%c0_33, %c0_34] : memref<8x256xbf16, #tpu.memory_space<vmem>>, vector<8x256xbf16>
    %cst_35 = arith.constant dense<0.000000e+00> : vector<8x1024xf32>
    %59 = tpu.matmul %58, %3, %cst_35 {dimension_numbers = #tpu.dot_dimension_numbers<[1], [0], [0], [1], [0, 0, 1, 1], [], []>} : vector<8x256xbf16>, vector<256x1024xbf16>, vector<8x1024xf32> -> vector<8x1024xf32>
    %60 = arith.addf %57, %59 : vector<8x1024xf32>
    %61 = vector.extract_strided_slice %60 {offsets = [0, 0], sizes = [8, 256], strides = [1, 1]} : vector<8x1024xf32> to vector<8x256xf32>
    %62 = arith.negf %61 : vector<8x256xf32>
    %63 = math.exp %62 : vector<8x256xf32>
    %cst_36 = arith.constant 1.000000e+00 : f32
    %64 = vector.broadcast %cst_36 : f32 to vector<8x256xf32>
    %65 = arith.addf %64, %63 : vector<8x256xf32>
    %66 = arith.divf %64, %65 : vector<8x256xf32>
    %67 = vector.extract_strided_slice %60 {offsets = [0, 256], sizes = [8, 256], strides = [1, 1]} : vector<8x1024xf32> to vector<8x256xf32>
    %68 = arith.negf %67 : vector<8x256xf32>
    %69 = math.exp %68 : vector<8x256xf32>
    %cst_37 = arith.constant 1.000000e+00 : f32
    %70 = vector.broadcast %cst_37 : f32 to vector<8x256xf32>
    %71 = arith.addf %70, %69 : vector<8x256xf32>
    %72 = arith.divf %70, %71 : vector<8x256xf32>
    %73 = vector.extract_strided_slice %60 {offsets = [0, 512], sizes = [8, 256], strides = [1, 1]} : vector<8x1024xf32> to vector<8x256xf32>
    %74 = math.tanh %73 : vector<8x256xf32>
    %75 = vector.extract_strided_slice %60 {offsets = [0, 768], sizes = [8, 256], strides = [1, 1]} : vector<8x1024xf32> to vector<8x256xf32>
    %76 = arith.negf %75 : vector<8x256xf32>
    %77 = math.exp %76 : vector<8x256xf32>
    %cst_38 = arith.constant 1.000000e+00 : f32
    %78 = vector.broadcast %cst_38 : f32 to vector<8x256xf32>
    %79 = arith.addf %78, %77 : vector<8x256xf32>
    %80 = arith.divf %78, %79 : vector<8x256xf32>
    %c0_39 = arith.constant 0 : index
    %c0_40 = arith.constant 0 : index
    %81 = vector.load %arg11[%c0_39, %c0_40] : memref<8x256xf32, #tpu.memory_space<vmem>>, vector<8x256xf32>
    %82 = arith.mulf %72, %81 : vector<8x256xf32>
    %83 = arith.mulf %66, %74 : vector<8x256xf32>
    %84 = arith.addf %82, %83 : vector<8x256xf32>
    %85 = math.tanh %84 : vector<8x256xf32>
    %86 = arith.mulf %80, %85 : vector<8x256xf32>
    %c0_41 = arith.constant 0 : index
    %c0_42 = arith.constant 0 : index
    %87 = vector.load %arg11[%c0_41, %c0_42] : memref<8x256xf32, #tpu.memory_space<vmem>>, vector<8x256xf32>
    tpu.vector_store %arg11[%c0_41, %c0_42], %84 {strides = array<i32>} : memref<8x256xf32, #tpu.memory_space<vmem>>, vector<8x256xf32>,
    %88 = arith.truncf %86 : vector<8x256xf32> to vector<8x256xbf16>
    %c0_43 = arith.constant 0 : index
    %c0_44 = arith.constant 0 : index
    %89 = vector.load %arg10[%c0_43, %c0_44] : memref<8x256xbf16, #tpu.memory_space<vmem>>, vector<8x256xbf16>
    tpu.vector_store %arg10[%c0_43, %c0_44], %88 {strides = array<i32>} : memref<8x256xbf16, #tpu.memory_space<vmem>>, vector<8x256xbf16>,
    %90 = arith.index_cast %55 : i32 to index
    %c0_45 = arith.constant 0 : index
    %91 = vector.load %arg8[%90, %c0_45] : memref<64x256xf32, #tpu.memory_space<vmem>>, vector<8x256xf32>
    tpu.vector_store %arg8[%90, %c0_45], %86 {strides = array<i32>} : memref<64x256xf32, #tpu.memory_space<vmem>>, vector<8x256xf32>,
    %c2_i32 = arith.constant 2 : i32
    %c8_i32_46 = arith.constant 8 : i32
    %92 = arith.muli %c2_i32, %c8_i32_46 : i32
    %93 = tpu.assume_multiple %92, 8 : i32
    %94 = arith.index_cast %93 : i32 to index
    %c0_47 = arith.constant 0 : index
    %95 = vector.load %arg9[%94, %c0_47] : memref<64x1024xf32, #tpu.memory_space<vmem>>, vector<8x1024xf32>
    %c0_48 = arith.constant 0 : index
    %c0_49 = arith.constant 0 : index
    %96 = vector.load %arg10[%c0_48, %c0_49] : memref<8x256xbf16, #tpu.memory_space<vmem>>, vector<8x256xbf16>
    %cst_50 = arith.constant dense<0.000000e+00> : vector<8x1024xf32>
    %97 = tpu.matmul %96, %3, %cst_50 {dimension_numbers = #tpu.dot_dimension_numbers<[1], [0], [0], [1], [0, 0, 1, 1], [], []>} : vector<8x256xbf16>, vector<256x1024xbf16>, vector<8x1024xf32> -> vector<8x1024xf32>
    %98 = arith.addf %95, %97 : vector<8x1024xf32>
    %99 = vector.extract_strided_slice %98 {offsets = [0, 0], sizes = [8, 256], strides = [1, 1]} : vector<8x1024xf32> to vector<8x256xf32>
    %100 = arith.negf %99 : vector<8x256xf32>
    %101 = math.exp %100 : vector<8x256xf32>
    %cst_51 = arith.constant 1.000000e+00 : f32
    %102 = vector.broadcast %cst_51 : f32 to vector<8x256xf32>
    %103 = arith.addf %102, %101 : vector<8x256xf32>
    %104 = arith.divf %102, %103 : vector<8x256xf32>
    %105 = vector.extract_strided_slice %98 {offsets = [0, 256], sizes = [8, 256], strides = [1, 1]} : vector<8x1024xf32> to vector<8x256xf32>
    %106 = arith.negf %105 : vector<8x256xf32>
    %107 = math.exp %106 : vector<8x256xf32>
    %cst_52 = arith.constant 1.000000e+00 : f32
    %108 = vector.broadcast %cst_52 : f32 to vector<8x256xf32>
    %109 = arith.addf %108, %107 : vector<8x256xf32>
    %110 = arith.divf %108, %109 : vector<8x256xf32>
    %111 = vector.extract_strided_slice %98 {offsets = [0, 512], sizes = [8, 256], strides = [1, 1]} : vector<8x1024xf32> to vector<8x256xf32>
    %112 = math.tanh %111 : vector<8x256xf32>
    %113 = vector.extract_strided_slice %98 {offsets = [0, 768], sizes = [8, 256], strides = [1, 1]} : vector<8x1024xf32> to vector<8x256xf32>
    %114 = arith.negf %113 : vector<8x256xf32>
    %115 = math.exp %114 : vector<8x256xf32>
    %cst_53 = arith.constant 1.000000e+00 : f32
    %116 = vector.broadcast %cst_53 : f32 to vector<8x256xf32>
    %117 = arith.addf %116, %115 : vector<8x256xf32>
    %118 = arith.divf %116, %117 : vector<8x256xf32>
    %c0_54 = arith.constant 0 : index
    %c0_55 = arith.constant 0 : index
    %119 = vector.load %arg11[%c0_54, %c0_55] : memref<8x256xf32, #tpu.memory_space<vmem>>, vector<8x256xf32>
    %120 = arith.mulf %110, %119 : vector<8x256xf32>
    %121 = arith.mulf %104, %112 : vector<8x256xf32>
    %122 = arith.addf %120, %121 : vector<8x256xf32>
    %123 = math.tanh %122 : vector<8x256xf32>
    %124 = arith.mulf %118, %123 : vector<8x256xf32>
    %c0_56 = arith.constant 0 : index
    %c0_57 = arith.constant 0 : index
    %125 = vector.load %arg11[%c0_56, %c0_57] : memref<8x256xf32, #tpu.memory_space<vmem>>, vector<8x256xf32>
    tpu.vector_store %arg11[%c0_56, %c0_57], %122 {strides = array<i32>} : memref<8x256xf32, #tpu.memory_space<vmem>>, vector<8x256xf32>,
    %126 = arith.truncf %124 : vector<8x256xf32> to vector<8x256xbf16>
    %c0_58 = arith.constant 0 : index
    %c0_59 = arith.constant 0 : index
    %127 = vector.load %arg10[%c0_58, %c0_59] : memref<8x256xbf16, #tpu.memory_space<vmem>>, vector<8x256xbf16>
    tpu.vector_store %arg10[%c0_58, %c0_59], %126 {strides = array<i32>} : memref<8x256xbf16, #tpu.memory_space<vmem>>, vector<8x256xbf16>,
    %128 = arith.index_cast %93 : i32 to index
    %c0_60 = arith.constant 0 : index
    %129 = vector.load %arg8[%128, %c0_60] : memref<64x256xf32, #tpu.memory_space<vmem>>, vector<8x256xf32>
    tpu.vector_store %arg8[%128, %c0_60], %124 {strides = array<i32>} : memref<64x256xf32, #tpu.memory_space<vmem>>, vector<8x256xf32>,
    %c3_i32 = arith.constant 3 : i32
    %c8_i32_61 = arith.constant 8 : i32
    %130 = arith.muli %c3_i32, %c8_i32_61 : i32
    %131 = tpu.assume_multiple %130, 8 : i32
    %132 = arith.index_cast %131 : i32 to index
    %c0_62 = arith.constant 0 : index
    %133 = vector.load %arg9[%132, %c0_62] : memref<64x1024xf32, #tpu.memory_space<vmem>>, vector<8x1024xf32>
    %c0_63 = arith.constant 0 : index
    %c0_64 = arith.constant 0 : index
    %134 = vector.load %arg10[%c0_63, %c0_64] : memref<8x256xbf16, #tpu.memory_space<vmem>>, vector<8x256xbf16>
    %cst_65 = arith.constant dense<0.000000e+00> : vector<8x1024xf32>
    %135 = tpu.matmul %134, %3, %cst_65 {dimension_numbers = #tpu.dot_dimension_numbers<[1], [0], [0], [1], [0, 0, 1, 1], [], []>} : vector<8x256xbf16>, vector<256x1024xbf16>, vector<8x1024xf32> -> vector<8x1024xf32>
    %136 = arith.addf %133, %135 : vector<8x1024xf32>
    %137 = vector.extract_strided_slice %136 {offsets = [0, 0], sizes = [8, 256], strides = [1, 1]} : vector<8x1024xf32> to vector<8x256xf32>
    %138 = arith.negf %137 : vector<8x256xf32>
    %139 = math.exp %138 : vector<8x256xf32>
    %cst_66 = arith.constant 1.000000e+00 : f32
    %140 = vector.broadcast %cst_66 : f32 to vector<8x256xf32>
    %141 = arith.addf %140, %139 : vector<8x256xf32>
    %142 = arith.divf %140, %141 : vector<8x256xf32>
    %143 = vector.extract_strided_slice %136 {offsets = [0, 256], sizes = [8, 256], strides = [1, 1]} : vector<8x1024xf32> to vector<8x256xf32>
    %144 = arith.negf %143 : vector<8x256xf32>
    %145 = math.exp %144 : vector<8x256xf32>
    %cst_67 = arith.constant 1.000000e+00 : f32
    %146 = vector.broadcast %cst_67 : f32 to vector<8x256xf32>
    %147 = arith.addf %146, %145 : vector<8x256xf32>
    %148 = arith.divf %146, %147 : vector<8x256xf32>
    %149 = vector.extract_strided_slice %136 {offsets = [0, 512], sizes = [8, 256], strides = [1, 1]} : vector<8x1024xf32> to vector<8x256xf32>
    %150 = math.tanh %149 : vector<8x256xf32>
    %151 = vector.extract_strided_slice %136 {offsets = [0, 768], sizes = [8, 256], strides = [1, 1]} : vector<8x1024xf32> to vector<8x256xf32>
    %152 = arith.negf %151 : vector<8x256xf32>
    %153 = math.exp %152 : vector<8x256xf32>
    %cst_68 = arith.constant 1.000000e+00 : f32
    %154 = vector.broadcast %cst_68 : f32 to vector<8x256xf32>
    %155 = arith.addf %154, %153 : vector<8x256xf32>
    %156 = arith.divf %154, %155 : vector<8x256xf32>
    %c0_69 = arith.constant 0 : index
    %c0_70 = arith.constant 0 : index
    %157 = vector.load %arg11[%c0_69, %c0_70] : memref<8x256xf32, #tpu.memory_space<vmem>>, vector<8x256xf32>
    %158 = arith.mulf %148, %157 : vector<8x256xf32>
    %159 = arith.mulf %142, %150 : vector<8x256xf32>
    %160 = arith.addf %158, %159 : vector<8x256xf32>
    %161 = math.tanh %160 : vector<8x256xf32>
    %162 = arith.mulf %156, %161 : vector<8x256xf32>
    %c0_71 = arith.constant 0 : index
    %c0_72 = arith.constant 0 : index
    %163 = vector.load %arg11[%c0_71, %c0_72] : memref<8x256xf32, #tpu.memory_space<vmem>>, vector<8x256xf32>
    tpu.vector_store %arg11[%c0_71, %c0_72], %160 {strides = array<i32>} : memref<8x256xf32, #tpu.memory_space<vmem>>, vector<8x256xf32>,
    %164 = arith.truncf %162 : vector<8x256xf32> to vector<8x256xbf16>
    %c0_73 = arith.constant 0 : index
    %c0_74 = arith.constant 0 : index
    %165 = vector.load %arg10[%c0_73, %c0_74] : memref<8x256xbf16, #tpu.memory_space<vmem>>, vector<8x256xbf16>
    tpu.vector_store %arg10[%c0_73, %c0_74], %164 {strides = array<i32>} : memref<8x256xbf16, #tpu.memory_space<vmem>>, vector<8x256xbf16>,
    %166 = arith.index_cast %131 : i32 to index
    %c0_75 = arith.constant 0 : index
    %167 = vector.load %arg8[%166, %c0_75] : memref<64x256xf32, #tpu.memory_space<vmem>>, vector<8x256xf32>
    tpu.vector_store %arg8[%166, %c0_75], %162 {strides = array<i32>} : memref<64x256xf32, #tpu.memory_space<vmem>>, vector<8x256xf32>,
    %c4_i32 = arith.constant 4 : i32
    %c8_i32_76 = arith.constant 8 : i32
    %168 = arith.muli %c4_i32, %c8_i32_76 : i32
    %169 = tpu.assume_multiple %168, 8 : i32
    %170 = arith.index_cast %169 : i32 to index
    %c0_77 = arith.constant 0 : index
    %171 = vector.load %arg9[%170, %c0_77] : memref<64x1024xf32, #tpu.memory_space<vmem>>, vector<8x1024xf32>
    %c0_78 = arith.constant 0 : index
    %c0_79 = arith.constant 0 : index
    %172 = vector.load %arg10[%c0_78, %c0_79] : memref<8x256xbf16, #tpu.memory_space<vmem>>, vector<8x256xbf16>
    %cst_80 = arith.constant dense<0.000000e+00> : vector<8x1024xf32>
    %173 = tpu.matmul %172, %3, %cst_80 {dimension_numbers = #tpu.dot_dimension_numbers<[1], [0], [0], [1], [0, 0, 1, 1], [], []>} : vector<8x256xbf16>, vector<256x1024xbf16>, vector<8x1024xf32> -> vector<8x1024xf32>
    %174 = arith.addf %171, %173 : vector<8x1024xf32>
    %175 = vector.extract_strided_slice %174 {offsets = [0, 0], sizes = [8, 256], strides = [1, 1]} : vector<8x1024xf32> to vector<8x256xf32>
    %176 = arith.negf %175 : vector<8x256xf32>
    %177 = math.exp %176 : vector<8x256xf32>
    %cst_81 = arith.constant 1.000000e+00 : f32
    %178 = vector.broadcast %cst_81 : f32 to vector<8x256xf32>
    %179 = arith.addf %178, %177 : vector<8x256xf32>
    %180 = arith.divf %178, %179 : vector<8x256xf32>
    %181 = vector.extract_strided_slice %174 {offsets = [0, 256], sizes = [8, 256], strides = [1, 1]} : vector<8x1024xf32> to vector<8x256xf32>
    %182 = arith.negf %181 : vector<8x256xf32>
    %183 = math.exp %182 : vector<8x256xf32>
    %cst_82 = arith.constant 1.000000e+00 : f32
    %184 = vector.broadcast %cst_82 : f32 to vector<8x256xf32>
    %185 = arith.addf %184, %183 : vector<8x256xf32>
    %186 = arith.divf %184, %185 : vector<8x256xf32>
    %187 = vector.extract_strided_slice %174 {offsets = [0, 512], sizes = [8, 256], strides = [1, 1]} : vector<8x1024xf32> to vector<8x256xf32>
    %188 = math.tanh %187 : vector<8x256xf32>
    %189 = vector.extract_strided_slice %174 {offsets = [0, 768], sizes = [8, 256], strides = [1, 1]} : vector<8x1024xf32> to vector<8x256xf32>
    %190 = arith.negf %189 : vector<8x256xf32>
    %191 = math.exp %190 : vector<8x256xf32>
    %cst_83 = arith.constant 1.000000e+00 : f32
    %192 = vector.broadcast %cst_83 : f32 to vector<8x256xf32>
    %193 = arith.addf %192, %191 : vector<8x256xf32>
    %194 = arith.divf %192, %193 : vector<8x256xf32>
    %c0_84 = arith.constant 0 : index
    %c0_85 = arith.constant 0 : index
    %195 = vector.load %arg11[%c0_84, %c0_85] : memref<8x256xf32, #tpu.memory_space<vmem>>, vector<8x256xf32>
    %196 = arith.mulf %186, %195 : vector<8x256xf32>
    %197 = arith.mulf %180, %188 : vector<8x256xf32>
    %198 = arith.addf %196, %197 : vector<8x256xf32>
    %199 = math.tanh %198 : vector<8x256xf32>
    %200 = arith.mulf %194, %199 : vector<8x256xf32>
    %c0_86 = arith.constant 0 : index
    %c0_87 = arith.constant 0 : index
    %201 = vector.load %arg11[%c0_86, %c0_87] : memref<8x256xf32, #tpu.memory_space<vmem>>, vector<8x256xf32>
    tpu.vector_store %arg11[%c0_86, %c0_87], %198 {strides = array<i32>} : memref<8x256xf32, #tpu.memory_space<vmem>>, vector<8x256xf32>,
    %202 = arith.truncf %200 : vector<8x256xf32> to vector<8x256xbf16>
    %c0_88 = arith.constant 0 : index
    %c0_89 = arith.constant 0 : index
    %203 = vector.load %arg10[%c0_88, %c0_89] : memref<8x256xbf16, #tpu.memory_space<vmem>>, vector<8x256xbf16>
    tpu.vector_store %arg10[%c0_88, %c0_89], %202 {strides = array<i32>} : memref<8x256xbf16, #tpu.memory_space<vmem>>, vector<8x256xbf16>,
    %204 = arith.index_cast %169 : i32 to index
    %c0_90 = arith.constant 0 : index
    %205 = vector.load %arg8[%204, %c0_90] : memref<64x256xf32, #tpu.memory_space<vmem>>, vector<8x256xf32>
    tpu.vector_store %arg8[%204, %c0_90], %200 {strides = array<i32>} : memref<64x256xf32, #tpu.memory_space<vmem>>, vector<8x256xf32>,
    %c5_i32 = arith.constant 5 : i32
    %c8_i32_91 = arith.constant 8 : i32
    %206 = arith.muli %c5_i32, %c8_i32_91 : i32
    %207 = tpu.assume_multiple %206, 8 : i32
    %208 = arith.index_cast %207 : i32 to index
    %c0_92 = arith.constant 0 : index
    %209 = vector.load %arg9[%208, %c0_92] : memref<64x1024xf32, #tpu.memory_space<vmem>>, vector<8x1024xf32>
    %c0_93 = arith.constant 0 : index
    %c0_94 = arith.constant 0 : index
    %210 = vector.load %arg10[%c0_93, %c0_94] : memref<8x256xbf16, #tpu.memory_space<vmem>>, vector<8x256xbf16>
    %cst_95 = arith.constant dense<0.000000e+00> : vector<8x1024xf32>
    %211 = tpu.matmul %210, %3, %cst_95 {dimension_numbers = #tpu.dot_dimension_numbers<[1], [0], [0], [1], [0, 0, 1, 1], [], []>} : vector<8x256xbf16>, vector<256x1024xbf16>, vector<8x1024xf32> -> vector<8x1024xf32>
    %212 = arith.addf %209, %211 : vector<8x1024xf32>
    %213 = vector.extract_strided_slice %212 {offsets = [0, 0], sizes = [8, 256], strides = [1, 1]} : vector<8x1024xf32> to vector<8x256xf32>
    %214 = arith.negf %213 : vector<8x256xf32>
    %215 = math.exp %214 : vector<8x256xf32>
    %cst_96 = arith.constant 1.000000e+00 : f32
    %216 = vector.broadcast %cst_96 : f32 to vector<8x256xf32>
    %217 = arith.addf %216, %215 : vector<8x256xf32>
    %218 = arith.divf %216, %217 : vector<8x256xf32>
    %219 = vector.extract_strided_slice %212 {offsets = [0, 256], sizes = [8, 256], strides = [1, 1]} : vector<8x1024xf32> to vector<8x256xf32>
    %220 = arith.negf %219 : vector<8x256xf32>
    %221 = math.exp %220 : vector<8x256xf32>
    %cst_97 = arith.constant 1.000000e+00 : f32
    %222 = vector.broadcast %cst_97 : f32 to vector<8x256xf32>
    %223 = arith.addf %222, %221 : vector<8x256xf32>
    %224 = arith.divf %222, %223 : vector<8x256xf32>
    %225 = vector.extract_strided_slice %212 {offsets = [0, 512], sizes = [8, 256], strides = [1, 1]} : vector<8x1024xf32> to vector<8x256xf32>
    %226 = math.tanh %225 : vector<8x256xf32>
    %227 = vector.extract_strided_slice %212 {offsets = [0, 768], sizes = [8, 256], strides = [1, 1]} : vector<8x1024xf32> to vector<8x256xf32>
    %228 = arith.negf %227 : vector<8x256xf32>
    %229 = math.exp %228 : vector<8x256xf32>
    %cst_98 = arith.constant 1.000000e+00 : f32
    %230 = vector.broadcast %cst_98 : f32 to vector<8x256xf32>
    %231 = arith.addf %230, %229 : vector<8x256xf32>
    %232 = arith.divf %230, %231 : vector<8x256xf32>
    %c0_99 = arith.constant 0 : index
    %c0_100 = arith.constant 0 : index
    %233 = vector.load %arg11[%c0_99, %c0_100] : memref<8x256xf32, #tpu.memory_space<vmem>>, vector<8x256xf32>
    %234 = arith.mulf %224, %233 : vector<8x256xf32>
    %235 = arith.mulf %218, %226 : vector<8x256xf32>
    %236 = arith.addf %234, %235 : vector<8x256xf32>
    %237 = math.tanh %236 : vector<8x256xf32>
    %238 = arith.mulf %232, %237 : vector<8x256xf32>
    %c0_101 = arith.constant 0 : index
    %c0_102 = arith.constant 0 : index
    %239 = vector.load %arg11[%c0_101, %c0_102] : memref<8x256xf32, #tpu.memory_space<vmem>>, vector<8x256xf32>
    tpu.vector_store %arg11[%c0_101, %c0_102], %236 {strides = array<i32>} : memref<8x256xf32, #tpu.memory_space<vmem>>, vector<8x256xf32>,
    %240 = arith.truncf %238 : vector<8x256xf32> to vector<8x256xbf16>
    %c0_103 = arith.constant 0 : index
    %c0_104 = arith.constant 0 : index
    %241 = vector.load %arg10[%c0_103, %c0_104] : memref<8x256xbf16, #tpu.memory_space<vmem>>, vector<8x256xbf16>
    tpu.vector_store %arg10[%c0_103, %c0_104], %240 {strides = array<i32>} : memref<8x256xbf16, #tpu.memory_space<vmem>>, vector<8x256xbf16>,
    %242 = arith.index_cast %207 : i32 to index
    %c0_105 = arith.constant 0 : index
    %243 = vector.load %arg8[%242, %c0_105] : memref<64x256xf32, #tpu.memory_space<vmem>>, vector<8x256xf32>
    tpu.vector_store %arg8[%242, %c0_105], %238 {strides = array<i32>} : memref<64x256xf32, #tpu.memory_space<vmem>>, vector<8x256xf32>,
    %c6_i32 = arith.constant 6 : i32
    %c8_i32_106 = arith.constant 8 : i32
    %244 = arith.muli %c6_i32, %c8_i32_106 : i32
    %245 = tpu.assume_multiple %244, 8 : i32
    %246 = arith.index_cast %245 : i32 to index
    %c0_107 = arith.constant 0 : index
    %247 = vector.load %arg9[%246, %c0_107] : memref<64x1024xf32, #tpu.memory_space<vmem>>, vector<8x1024xf32>
    %c0_108 = arith.constant 0 : index
    %c0_109 = arith.constant 0 : index
    %248 = vector.load %arg10[%c0_108, %c0_109] : memref<8x256xbf16, #tpu.memory_space<vmem>>, vector<8x256xbf16>
    %cst_110 = arith.constant dense<0.000000e+00> : vector<8x1024xf32>
    %249 = tpu.matmul %248, %3, %cst_110 {dimension_numbers = #tpu.dot_dimension_numbers<[1], [0], [0], [1], [0, 0, 1, 1], [], []>} : vector<8x256xbf16>, vector<256x1024xbf16>, vector<8x1024xf32> -> vector<8x1024xf32>
    %250 = arith.addf %247, %249 : vector<8x1024xf32>
    %251 = vector.extract_strided_slice %250 {offsets = [0, 0], sizes = [8, 256], strides = [1, 1]} : vector<8x1024xf32> to vector<8x256xf32>
    %252 = arith.negf %251 : vector<8x256xf32>
    %253 = math.exp %252 : vector<8x256xf32>
    %cst_111 = arith.constant 1.000000e+00 : f32
    %254 = vector.broadcast %cst_111 : f32 to vector<8x256xf32>
    %255 = arith.addf %254, %253 : vector<8x256xf32>
    %256 = arith.divf %254, %255 : vector<8x256xf32>
    %257 = vector.extract_strided_slice %250 {offsets = [0, 256], sizes = [8, 256], strides = [1, 1]} : vector<8x1024xf32> to vector<8x256xf32>
    %258 = arith.negf %257 : vector<8x256xf32>
    %259 = math.exp %258 : vector<8x256xf32>
    %cst_112 = arith.constant 1.000000e+00 : f32
    %260 = vector.broadcast %cst_112 : f32 to vector<8x256xf32>
    %261 = arith.addf %260, %259 : vector<8x256xf32>
    %262 = arith.divf %260, %261 : vector<8x256xf32>
    %263 = vector.extract_strided_slice %250 {offsets = [0, 512], sizes = [8, 256], strides = [1, 1]} : vector<8x1024xf32> to vector<8x256xf32>
    %264 = math.tanh %263 : vector<8x256xf32>
    %265 = vector.extract_strided_slice %250 {offsets = [0, 768], sizes = [8, 256], strides = [1, 1]} : vector<8x1024xf32> to vector<8x256xf32>
    %266 = arith.negf %265 : vector<8x256xf32>
    %267 = math.exp %266 : vector<8x256xf32>
    %cst_113 = arith.constant 1.000000e+00 : f32
    %268 = vector.broadcast %cst_113 : f32 to vector<8x256xf32>
    %269 = arith.addf %268, %267 : vector<8x256xf32>
    %270 = arith.divf %268, %269 : vector<8x256xf32>
    %c0_114 = arith.constant 0 : index
    %c0_115 = arith.constant 0 : index
    %271 = vector.load %arg11[%c0_114, %c0_115] : memref<8x256xf32, #tpu.memory_space<vmem>>, vector<8x256xf32>
    %272 = arith.mulf %262, %271 : vector<8x256xf32>
    %273 = arith.mulf %256, %264 : vector<8x256xf32>
    %274 = arith.addf %272, %273 : vector<8x256xf32>
    %275 = math.tanh %274 : vector<8x256xf32>
    %276 = arith.mulf %270, %275 : vector<8x256xf32>
    %c0_116 = arith.constant 0 : index
    %c0_117 = arith.constant 0 : index
    %277 = vector.load %arg11[%c0_116, %c0_117] : memref<8x256xf32, #tpu.memory_space<vmem>>, vector<8x256xf32>
    tpu.vector_store %arg11[%c0_116, %c0_117], %274 {strides = array<i32>} : memref<8x256xf32, #tpu.memory_space<vmem>>, vector<8x256xf32>,
    %278 = arith.truncf %276 : vector<8x256xf32> to vector<8x256xbf16>
    %c0_118 = arith.constant 0 : index
    %c0_119 = arith.constant 0 : index
    %279 = vector.load %arg10[%c0_118, %c0_119] : memref<8x256xbf16, #tpu.memory_space<vmem>>, vector<8x256xbf16>
    tpu.vector_store %arg10[%c0_118, %c0_119], %278 {strides = array<i32>} : memref<8x256xbf16, #tpu.memory_space<vmem>>, vector<8x256xbf16>,
    %280 = arith.index_cast %245 : i32 to index
    %c0_120 = arith.constant 0 : index
    %281 = vector.load %arg8[%280, %c0_120] : memref<64x256xf32, #tpu.memory_space<vmem>>, vector<8x256xf32>
    tpu.vector_store %arg8[%280, %c0_120], %276 {strides = array<i32>} : memref<64x256xf32, #tpu.memory_space<vmem>>, vector<8x256xf32>,
    %c7_i32 = arith.constant 7 : i32
    %c8_i32_121 = arith.constant 8 : i32
    %282 = arith.muli %c7_i32, %c8_i32_121 : i32
    %283 = tpu.assume_multiple %282, 8 : i32
    %284 = arith.index_cast %283 : i32 to index
    %c0_122 = arith.constant 0 : index
    %285 = vector.load %arg9[%284, %c0_122] : memref<64x1024xf32, #tpu.memory_space<vmem>>, vector<8x1024xf32>
    %c0_123 = arith.constant 0 : index
    %c0_124 = arith.constant 0 : index
    %286 = vector.load %arg10[%c0_123, %c0_124] : memref<8x256xbf16, #tpu.memory_space<vmem>>, vector<8x256xbf16>
    %cst_125 = arith.constant dense<0.000000e+00> : vector<8x1024xf32>
    %287 = tpu.matmul %286, %3, %cst_125 {dimension_numbers = #tpu.dot_dimension_numbers<[1], [0], [0], [1], [0, 0, 1, 1], [], []>} : vector<8x256xbf16>, vector<256x1024xbf16>, vector<8x1024xf32> -> vector<8x1024xf32>
    %288 = arith.addf %285, %287 : vector<8x1024xf32>
    %289 = vector.extract_strided_slice %288 {offsets = [0, 0], sizes = [8, 256], strides = [1, 1]} : vector<8x1024xf32> to vector<8x256xf32>
    %290 = arith.negf %289 : vector<8x256xf32>
    %291 = math.exp %290 : vector<8x256xf32>
    %cst_126 = arith.constant 1.000000e+00 : f32
    %292 = vector.broadcast %cst_126 : f32 to vector<8x256xf32>
    %293 = arith.addf %292, %291 : vector<8x256xf32>
    %294 = arith.divf %292, %293 : vector<8x256xf32>
    %295 = vector.extract_strided_slice %288 {offsets = [0, 256], sizes = [8, 256], strides = [1, 1]} : vector<8x1024xf32> to vector<8x256xf32>
    %296 = arith.negf %295 : vector<8x256xf32>
    %297 = math.exp %296 : vector<8x256xf32>
    %cst_127 = arith.constant 1.000000e+00 : f32
    %298 = vector.broadcast %cst_127 : f32 to vector<8x256xf32>
    %299 = arith.addf %298, %297 : vector<8x256xf32>
    %300 = arith.divf %298, %299 : vector<8x256xf32>
    %301 = vector.extract_strided_slice %288 {offsets = [0, 512], sizes = [8, 256], strides = [1, 1]} : vector<8x1024xf32> to vector<8x256xf32>
    %302 = math.tanh %301 : vector<8x256xf32>
    %303 = vector.extract_strided_slice %288 {offsets = [0, 768], sizes = [8, 256], strides = [1, 1]} : vector<8x1024xf32> to vector<8x256xf32>
    %304 = arith.negf %303 : vector<8x256xf32>
    %305 = math.exp %304 : vector<8x256xf32>
    %cst_128 = arith.constant 1.000000e+00 : f32
    %306 = vector.broadcast %cst_128 : f32 to vector<8x256xf32>
    %307 = arith.addf %306, %305 : vector<8x256xf32>
    %308 = arith.divf %306, %307 : vector<8x256xf32>
    %c0_129 = arith.constant 0 : index
    %c0_130 = arith.constant 0 : index
    %309 = vector.load %arg11[%c0_129, %c0_130] : memref<8x256xf32, #tpu.memory_space<vmem>>, vector<8x256xf32>
    %310 = arith.mulf %300, %309 : vector<8x256xf32>
    %311 = arith.mulf %294, %302 : vector<8x256xf32>
    %312 = arith.addf %310, %311 : vector<8x256xf32>
    %313 = math.tanh %312 : vector<8x256xf32>
    %314 = arith.mulf %308, %313 : vector<8x256xf32>
    %c0_131 = arith.constant 0 : index
    %c0_132 = arith.constant 0 : index
    %315 = vector.load %arg11[%c0_131, %c0_132] : memref<8x256xf32, #tpu.memory_space<vmem>>, vector<8x256xf32>
    tpu.vector_store %arg11[%c0_131, %c0_132], %312 {strides = array<i32>} : memref<8x256xf32, #tpu.memory_space<vmem>>, vector<8x256xf32>,
    %316 = arith.truncf %314 : vector<8x256xf32> to vector<8x256xbf16>
    %c0_133 = arith.constant 0 : index
    %c0_134 = arith.constant 0 : index
    %317 = vector.load %arg10[%c0_133, %c0_134] : memref<8x256xbf16, #tpu.memory_space<vmem>>, vector<8x256xbf16>
    tpu.vector_store %arg10[%c0_133, %c0_134], %316 {strides = array<i32>} : memref<8x256xbf16, #tpu.memory_space<vmem>>, vector<8x256xbf16>,
    %318 = arith.index_cast %283 : i32 to index
    %c0_135 = arith.constant 0 : index
    %319 = vector.load %arg8[%318, %c0_135] : memref<64x256xf32, #tpu.memory_space<vmem>>, vector<8x256xf32>
    tpu.vector_store %arg8[%318, %c0_135], %314 {strides = array<i32>} : memref<64x256xf32, #tpu.memory_space<vmem>>, vector<8x256xf32>,
    %c8_i32_136 = arith.constant 8 : i32
    %c5_i32_137 = arith.constant 5 : i32
    %320 = arith.cmpi eq, %arg0, %c5_i32_137 : i32
    %321 = arith.extui %320 : i1 to i32
    %c0_i32_138 = arith.constant 0 : i32
    %322 = arith.cmpi ne, %321, %c0_i32_138 : i32
    scf.if %322 {
      %c0_139 = arith.constant 0 : index
      %c0_140 = arith.constant 0 : index
      %323 = vector.load %arg8[%c0_139, %c0_140] : memref<64x256xf32, #tpu.memory_space<vmem>>, vector<64x256xf32>
      %324 = arith.truncf %323 : vector<64x256xf32> to vector<64x256xbf16>
      %c0_141 = arith.constant 0 : index
      %c0_142 = arith.constant 0 : index
      %325 = vector.load %arg5[%c0_141, %c0_142] : memref<256x128xbf16, #tpu.memory_space<vmem>>, vector<256x128xbf16>
      %cst_143 = arith.constant dense<0.000000e+00> : vector<64x128xf32>
      %326 = tpu.matmul %324, %325, %cst_143 {dimension_numbers = #tpu.dot_dimension_numbers<[1], [0], [0], [1], [0, 0, 1, 1], [], []>} : vector<64x256xbf16>, vector<256x128xbf16>, vector<64x128xf32> -> vector<64x128xf32>
      %c0_144 = arith.constant 0 : index
      %c0_145 = arith.constant 0 : index
      %327 = vector.load %arg6[%c0_144, %c0_145] : memref<1x128xf32, #tpu.memory_space<vmem>>, vector<1x128xf32>
      %328 = vector.broadcast %327 : vector<1x128xf32> to vector<64x128xf32>
      %329 = arith.addf %326, %328 : vector<64x128xf32>
      %c0_146 = arith.constant 0 : index
      %c0_147 = arith.constant 0 : index
      %330 = vector.load %arg7[%c0_146, %c0_147] : memref<64x128xf32, #tpu.memory_space<vmem>>, vector<64x128xf32>
      tpu.vector_store %arg7[%c0_146, %c0_147], %329 {strides = array<i32>} : memref<64x128xf32, #tpu.memory_space<vmem>>, vector<64x128xf32>,
    } else {
    }
    return
  }
  func.func @transform_0(%arg0: i32) -> (i32, i32) {
    %c0_i32 = arith.constant 0 : i32
    %c0_i32_0 = arith.constant 0 : i32
    %c0_i32_1 = arith.constant 0 : i32
    return %c0_i32, %c0_i32_0 : i32, i32
  }
  func.func @transform_1(%arg0: i32) -> (i32, i32, i32) {
    %c0_i32 = arith.constant 0 : i32
    %c0_i32_0 = arith.constant 0 : i32
    %c0_i32_1 = arith.constant 0 : i32
    return %arg0, %c0_i32, %c0_i32_0 : i32, i32, i32
  }
  func.func @transform_2(%arg0: i32) -> (i32, i32, i32) {
    %c0_i32 = arith.constant 0 : i32
    %c0_i32_0 = arith.constant 0 : i32
    %c0_i32_1 = arith.constant 0 : i32
    return %arg0, %c0_i32, %c0_i32_0 : i32, i32, i32
  }
  func.func @transform_3(%arg0: i32) -> (i32, i32, i32) {
    %c0_i32 = arith.constant 0 : i32
    %c0_i32_0 = arith.constant 0 : i32
    %c0_i32_1 = arith.constant 0 : i32
    return %arg0, %c0_i32, %c0_i32_0 : i32, i32, i32
  }
  func.func @transform_4(%arg0: i32) -> (i32, i32) {
    %c0_i32 = arith.constant 0 : i32
    %c0_i32_0 = arith.constant 0 : i32
    %c0_i32_1 = arith.constant 0 : i32
    return %c0_i32, %c0_i32_0 : i32, i32
  }
  func.func @transform_5(%arg0: i32) -> (i32, i32) {
    %c0_i32 = arith.constant 0 : i32
    %c0_i32_0 = arith.constant 0 : i32
    %c0_i32_1 = arith.constant 0 : i32
    return %c0_i32, %c0_i32_0 : i32, i32
  }
  func.func @transform_6(%arg0: i32) -> (i32, i32) {
    %c0_i32 = arith.constant 0 : i32
    %c0_i32_0 = arith.constant 0 : i32
    %c0_i32_1 = arith.constant 0 : i32
    return %c0_i32, %c0_i32_0 : i32, i32
  }
}

</mosaic_0001>

<llo_original>
// kernel: lstm_model_forward.1
$region0: #{lstm_model_forward.1}
  #allocation0 [shape = 'u32[]', space=smem, size = 0x4, offset = 0x4, fixed_abs, tag = 'smem constant byte address 0x4 - core index']
  #allocation1 [shape = 'u32[144,128]{1,0:T(1,128)}', space=vmem, size = 0x12000, scoped, tag = 'internal scratch']
  #allocation2 [shape = 'f32[64,256]{1,0:T(8,128)}', space=vmem, size = 0x10000, scoped, tag = 'scratch operand']
  #allocation3 [shape = 'f32[64,1024]{1,0:T(8,128)}', space=vmem, size = 0x40000, scoped, tag = 'scratch operand']
  #allocation4 [shape = 'bf16[8,256]{1,0:T(8,128)(2,1)}', space=vmem, size = 0x1000, scoped, tag = 'scratch operand']
  #allocation5 [shape = 'f32[8,256]{1,0:T(8,128)}', space=vmem, size = 0x2000, scoped, tag = 'scratch operand']
  %s0 = inlined_call_operand.vmem [shape: bf16[64,256], index: 0, kind: input, shape index: {}]
  %s1 = inlined_call_operand.hbm [shape: bf16[6,256,1024], index: 1, kind: input, shape index: {}]
  %s2 = inlined_call_operand.hbm [shape: bf16[6,256,1024], index: 2, kind: input, shape index: {}]
  %s3 = inlined_call_operand.hbm [shape: f32[6,1,1024], index: 3, kind: input, shape index: {}]
  %s4 = inlined_call_operand.hbm [shape: bf16[256,128], index: 4, kind: input, shape index: {}]
  %s5 = inlined_call_operand.hbm [shape: f32[1,128], index: 5, kind: input, shape index: {}]
  %s6 = inlined_call_operand.vmem [shape: f32[64,128], index: 6, kind: output, shape index: {}]
  %s7 = sld [smem:[#allocation0]]
  $region89: #{lstm_model_forward.1} parent=0
    _
  %s9 = ssub.s32 1, %s7
  %s10 = scalar_select 0, %s9, %s7
  $region1: #{lstm_model_forward.1} parent=0
    #allocation6 [shape = 'u8[1048576]{0}', space=vmem, size = 0x100000, scoped, tag = 'input window, operand 1']
    #allocation7 [shape = 's32[2]{0}', space=sflag, size = 0x8, scoped, tag = 'scoped memory for lstm_model_forward.1']
    #allocation8 [shape = 'u8[1048576]{0}', space=vmem, size = 0x100000, scoped, tag = 'input window, operand 2']
    #allocation9 [shape = 's32[2]{0}', space=sflag, size = 0x8, scoped, tag = 'scoped memory for lstm_model_forward.1']
    #allocation10 [shape = 'u8[8192]{0}', space=vmem, size = 0x2000, scoped, tag = 'input window, operand 3']
    #allocation11 [shape = 'u8[65536]{0}', space=vmem, size = 0x10000, scoped, tag = 'input window, operand 4, single buffered']
    #allocation12 [shape = 's32[1]{0}', space=sflag, size = 0x4, scoped, tag = 'scoped memory for lstm_model_forward.1']
    #allocation13 [shape = 'u8[512]{0}', space=vmem, size = 0x400, scoped, tag = 'input window, operand 5, single buffered']
    %11 = vsyncpa [#allocation7], 0
    %s12 = scalar_lea.sflag [#allocation7], 1
    %13 = vsyncpa %s12, 0
    %14 = vsyncpa [#allocation9], 0
    %s15 = scalar_lea.sflag [#allocation9], 1
    %16 = vsyncpa %s15, 0
    %17 = vsyncpa [#allocation12], 0
    loop: start=0, step=1, limit=8
    $region2: #{lstm_model_forward.1} parent=1 // loop_pre_header
      _
    $region3: #{lstm_model_forward.1} parent=1 // loop_header
      %s19 = sphi 0, %s23
      %p20 = scmp.ge.s32.totalorder %s19, 8
      %s27 = sphi 0, %s27
      %s29 = sphi 0, %s27
      %s30 = sphi 0, %s29
      %s44 = sphi 0, %s30
      %s50 = sphi 0, %s52
      %s53 = sphi 0, %s50
      %s54 = sphi 0, %s53
      %s70 = sphi 0, %s54
      %s76 = sphi 0, %s78
      %s79 = sphi 0, %s76
      %s80 = sphi 0, %s79
      %s96 = sphi 0, %s80
      %s102 = sphi 0, %s104
      %s105 = sphi 0, %s102
      %s106 = sphi 0, %s105
      %s122 = sphi 0, %s106
      %s126 = sphi 0, %s126
      %s128 = sphi 0, %s126
      %s129 = sphi 0, %s128
      %s143 = sphi 0, %s129
      %s147 = sphi 0, %s147
      %s149 = sphi 0, %s147
      %s150 = sphi 0, %s149
      %s164 = sphi 0, %s150
      %s168 = sphi 0, %s168
      %s170 = sphi 0, %s168
      %s171 = sphi 0, %s170
      %s185 = sphi 0, %s171
    $region4: #{lstm_model_forward.1} parent=1 // loop_header_branch
      %22 = sbr.rel (%p20) target = $region8
    $region5: #{lstm_model_forward.1} parent=1 // loop_body
      %s24 = ssub.s32 %s19, 1
      %s25 = ssub.s32 %s19, 2
      %s26 = sadd.s32 %s19, 1
      %s28 = sadd.s32 %s27, 1
      %p31 = scmp.eq.s32.totalorder %s19, 5
      %p32 = scmp.ne.s32.totalorder %s27, %s29
      %p33 = scmp.eq.s32.totalorder %s19, 0
      %p34 = por %p32, %p33
      %p35 = scmp.ne.s32.totalorder %s27, %s29
      %p36 = scmp.eq.s32.totalorder %s24, 5
      %p37 = por %p35, %p36
      %p38 = scmp.ne.s32.totalorder %s29, %s30
      %p39 = scmp.eq.s32.totalorder %s24, 0
      %p40 = por %p38, %p39
      %p41 = scmp.ne.s32.totalorder %s29, %s30
      %p42 = scmp.eq.s32.totalorder %s25, 5
      %p43 = por %p41, %p42
      %p45 = scmp.ne.s32.totalorder %s30, %s44
      %p46 = scmp.eq.s32.totalorder %s25, 0
      %p47 = por %p45, %p46
      %s48 = ssub.s32 %s19, %s26
      %p49 = scmp.eq.s32.totalorder %s48, 0
      %s51 = sadd.s32 %s50, 1
      %s52 = scalar_select %p49, %s50, %s51
      %p55 = pneg %p49
      %p56 = scmp.eq.s32.totalorder %s19, 5
      %p57 = por %p55, %p56
      %p58 = scmp.ne.s32.totalorder %s50, %s53
      %p59 = scmp.eq.s32.totalorder %s19, 0
      %p60 = por %p58, %p59
      %p61 = scmp.ne.s32.totalorder %s50, %s53
      %p62 = scmp.eq.s32.totalorder %s24, 5
      %p63 = por %p61, %p62
      %p64 = scmp.ne.s32.totalorder %s53, %s54
      %p65 = scmp.eq.s32.totalorder %s24, 0
      %p66 = por %p64, %p65
      %p67 = scmp.ne.s32.totalorder %s53, %s54
      %p68 = scmp.eq.s32.totalorder %s25, 5
      %p69 = por %p67, %p68
      %p71 = scmp.ne.s32.totalorder %s54, %s70
      %p72 = scmp.eq.s32.totalorder %s25, 0
      %p73 = por %p71, %p72
      %s74 = ssub.s32 %s19, %s26
      %p75 = scmp.eq.s32.totalorder %s74, 0
      %s77 = sadd.s32 %s76, 1
      %s78 = scalar_select %p75, %s76, %s77
      %p81 = pneg %p75
      %p82 = scmp.eq.s32.totalorder %s19, 5
      %p83 = por %p81, %p82
      %p84 = scmp.ne.s32.totalorder %s76, %s79
      %p85 = scmp.eq.s32.totalorder %s19, 0
      %p86 = por %p84, %p85
      %p87 = scmp.ne.s32.totalorder %s76, %s79
      %p88 = scmp.eq.s32.totalorder %s24, 5
      %p89 = por %p87, %p88
      %p90 = scmp.ne.s32.totalorder %s79, %s80
      %p91 = scmp.eq.s32.totalorder %s24, 0
      %p92 = por %p90, %p91
      %p93 = scmp.ne.s32.totalorder %s79, %s80
      %p94 = scmp.eq.s32.totalorder %s25, 5
      %p95 = por %p93, %p94
      %p97 = scmp.ne.s32.totalorder %s80, %s96
      %p98 = scmp.eq.s32.totalorder %s25, 0
      %p99 = por %p97, %p98
      %s100 = ssub.s32 %s19, %s26
      %p101 = scmp.eq.s32.totalorder %s100, 0
      %s103 = sadd.s32 %s102, 1
      %s104 = scalar_select %p101, %s102, %s103
      %p107 = pneg %p101
      %p108 = scmp.eq.s32.totalorder %s19, 5
      %p109 = por %p107, %p108
      %p110 = scmp.ne.s32.totalorder %s102, %s105
      %p111 = scmp.eq.s32.totalorder %s19, 0
      %p112 = por %p110, %p111
      %p113 = scmp.ne.s32.totalorder %s102, %s105
      %p114 = scmp.eq.s32.totalorder %s24, 5
      %p115 = por %p113, %p114
      %p116 = scmp.ne.s32.totalorder %s105, %s106
      %p117 = scmp.eq.s32.totalorder %s24, 0
      %p118 = por %p116, %p117
      %p119 = scmp.ne.s32.totalorder %s105, %s106
      %p120 = scmp.eq.s32.totalorder %s25, 5
      %p121 = por %p119, %p120
      %p123 = scmp.ne.s32.totalorder %s106, %s122
      %p124 = scmp.eq.s32.totalorder %s25, 0
      %p125 = por %p123, %p124
      %s127 = sadd.s32 %s126, 1
      %p130 = scmp.eq.s32.totalorder %s19, 5
      %p131 = scmp.ne.s32.totalorder %s126, %s128
      %p132 = scmp.eq.s32.totalorder %s19, 0
      %p133 = por %p131, %p132
      %p134 = scmp.ne.s32.totalorder %s126, %s128
      %p135 = scmp.eq.s32.totalorder %s24, 5
      %p136 = por %p134, %p135
      %p137 = scmp.ne.s32.totalorder %s128, %s129
      %p138 = scmp.eq.s32.totalorder %s24, 0
      %p139 = por %p137, %p138
      %p140 = scmp.ne.s32.totalorder %s128, %s129
      %p141 = scmp.eq.s32.totalorder %s25, 5
      %p142 = por %p140, %p141
      %p144 = scmp.ne.s32.totalorder %s129, %s143
      %p145 = scmp.eq.s32.totalorder %s25, 0
      %p146 = por %p144, %p145
      %s148 = sadd.s32 %s147, 1
      %p151 = scmp.eq.s32.totalorder %s19, 5
      %p152 = scmp.ne.s32.totalorder %s147, %s149
      %p153 = scmp.eq.s32.totalorder %s19, 0
      %p154 = por %p152, %p153
      %p155 = scmp.ne.s32.totalorder %s147, %s149
      %p156 = scmp.eq.s32.totalorder %s24, 5
      %p157 = por %p155, %p156
      %p158 = scmp.ne.s32.totalorder %s149, %s150
      %p159 = scmp.eq.s32.totalorder %s24, 0
      %p160 = por %p158, %p159
      %p161 = scmp.ne.s32.totalorder %s149, %s150
      %p162 = scmp.eq.s32.totalorder %s25, 5
      %p163 = por %p161, %p162
      %p165 = scmp.ne.s32.totalorder %s150, %s164
      %p166 = scmp.eq.s32.totalorder %s25, 0
      %p167 = por %p165, %p166
      %s169 = sadd.s32 %s168, 1
      %p172 = scmp.eq.s32.totalorder %s19, 5
      %p173 = scmp.ne.s32.totalorder %s168, %s170
      %p174 = scmp.eq.s32.totalorder %s19, 0
      %p175 = por %p173, %p174
      %p176 = scmp.ne.s32.totalorder %s168, %s170
      %p177 = scmp.eq.s32.totalorder %s24, 5
      %p178 = por %p176, %p177
      %p179 = scmp.ne.s32.totalorder %s170, %s171
      %p180 = scmp.eq.s32.totalorder %s24, 0
      %p181 = por %p179, %p180
      %p182 = scmp.ne.s32.totalorder %s170, %s171
      %p183 = scmp.eq.s32.totalorder %s25, 5
      %p184 = por %p182, %p183
      %p186 = scmp.ne.s32.totalorder %s171, %s185
      %p187 = scmp.eq.s32.totalorder %s25, 0
      %p188 = por %p186, %p187
      %p189 = scmp.le.s32.totalorder 1, %s19
      %p190 = scmp.lt.s32.totalorder %s19, 7
      %p191 = pnand %p189, %p190
      %p192 = pneg %p191
      // Predicated region
      $region9: #{lstm_model_forward.1} parent=5 // pred_check
        _
      $region10: #{lstm_model_forward.1} parent=5 // pred_check_branch
        %194 = sbr.rel (%p191) target = $region12
      $region11: #{lstm_model_forward.1} parent=5 // pred_region
        %s195 = ssub.s32 %s19, 1
        // Predicated region
        $region13: #{lstm_model_forward.1} parent=11 // pred_check
          %p196 = pneg %p40
        $region14: #{lstm_model_forward.1} parent=11 // pred_check_branch
          %198 = sbr.rel (%p196) target = $region16
        $region15: #{lstm_model_forward.1} parent=11 // pred_region
          _
        $region16: #{lstm_model_forward.1} parent=11 // pred_fallthru
          _
        // Predicated region
        $region17: #{lstm_model_forward.1} parent=11 // pred_check
          %p199 = pneg %p139
        $region18: #{lstm_model_forward.1} parent=11 // pred_check_branch
          %201 = sbr.rel (%p199) target = $region20
        $region19: #{lstm_model_forward.1} parent=11 // pred_region
          %s203 = ssub.s32 2048, 2048
          %204 = vsyncadd [#allocation12], %s203
          %s205 = sshll.u32 [#allocation11], 4
          %s206 = int_to_ptr.vmem [resolvable:$true] %s205
          %211 = dma.hbm_to_vmem [thread:$0]  %s4, 2048, %s206, [#allocation12], 64, 64, 4
        $region20: #{lstm_model_forward.1} parent=11 // pred_fallthru
          _
        // Predicated region
        $region21: #{lstm_model_forward.1} parent=11 // pred_check
          %p212 = pneg %p160
        $region22: #{lstm_model_forward.1} parent=11 // pred_check_branch
          %214 = sbr.rel (%p212) target = $region24
        $region23: #{lstm_model_forward.1} parent=11 // pred_region
          %s216 = ssub.s32 16, 16
          %217 = vsyncadd [#allocation12], %s216
          %s219 = sshll.u32 [#allocation13], 4
          %s220 = int_to_ptr.vmem [resolvable:$true] %s219
          %222 = dma.hbm_to_vmem [thread:$0]  %s5, 16, %s220, [#allocation12]
        $region24: #{lstm_model_forward.1} parent=11 // pred_fallthru
          _
      $region12: #{lstm_model_forward.1} parent=5 // pred_fallthru
        _
      %p223 = scmp.lt.s32.totalorder %s19, 6
      // Predicated region
      $region25: #{lstm_model_forward.1} parent=5 // pred_check
        %p224 = pneg %p223
      $region26: #{lstm_model_forward.1} parent=5 // pred_check_branch
        %226 = sbr.rel (%p224) target = $region28
      $region27: #{lstm_model_forward.1} parent=5 // pred_region
        // Predicated region
        $region29: #{lstm_model_forward.1} parent=27 // pred_check
          %p227 = pneg %p60
        $region30: #{lstm_model_forward.1} parent=27 // pred_check_branch
          %229 = sbr.rel (%p227) target = $region32
        $region31: #{lstm_model_forward.1} parent=27 // pred_region
          %s230 = sand.u32 %s50, 1
          %s231 = scalar_lea.sflag [#allocation7], %s230
          %s232 = sand.u32 %s50, 1
          %s233 = smul.addr %s232, 1024
          %s234 = scalar_lea.vmem [#allocation6], %s233
          %s236 = ssub.s32 16384, 16384
          %237 = vsyncadd %s231, %s236
          %s238 = smul.addr %s19, 256
          %s239 = smul.addr %s238, 64
          %s240 = scalar_lea.hbm %s1, %s239
          %s241 = sshll.u32 %s234, 4
          %s242 = int_to_ptr.vmem [resolvable:$true] %s241
          %247 = dma.hbm_to_vmem [thread:$0]  %s240, 16384, %s242, %s231, 512, 512, 32
        $region32: #{lstm_model_forward.1} parent=27 // pred_fallthru
          _
        // Predicated region
        $region33: #{lstm_model_forward.1} parent=27 // pred_check
          %p248 = pneg %p86
        $region34: #{lstm_model_forward.1} parent=27 // pred_check_branch
          %250 = sbr.rel (%p248) target = $region36
        $region35: #{lstm_model_forward.1} parent=27 // pred_region
          %s251 = sand.u32 %s19, 1
          %s252 = scalar_lea.sflag [#allocation9], %s251
          %s253 = sand.u32 %s76, 1
          %s254 = smul.addr %s253, 1024
          %s255 = scalar_lea.vmem [#allocation8], %s254
          %s257 = ssub.s32 16384, 16384
          %258 = vsyncadd %s252, %s257
          %s259 = smul.addr %s19, 256
          %s260 = smul.addr %s259, 64
          %s261 = scalar_lea.hbm %s2, %s260
          %s262 = sshll.u32 %s255, 4
          %s263 = int_to_ptr.vmem [resolvable:$true] %s262
          %268 = dma.hbm_to_vmem [thread:$0]  %s261, 16384, %s263, %s252, 512, 512, 32
        $region36: #{lstm_model_forward.1} parent=27 // pred_fallthru
          _
        // Predicated region
        $region37: #{lstm_model_forward.1} parent=27 // pred_check
          %p269 = pneg %p112
        $region38: #{lstm_model_forward.1} parent=27 // pred_check_branch
          %271 = sbr.rel (%p269) target = $region40
        $region39: #{lstm_model_forward.1} parent=27 // pred_region
          %s272 = sand.u32 %s19, 1
          %s273 = scalar_lea.sflag [#allocation9], %s272
          %s274 = sand.u32 %s102, 1
          %s275 = smul.addr %s274, 8
          %s276 = scalar_lea.vmem [#allocation10], %s275
          %s278 = ssub.s32 128, 128
          %279 = vsyncadd %s273, %s278
          %s280 = smul.addr %s19, 8
          %s281 = smul.addr %s280, 16
          %s282 = scalar_lea.hbm %s3, %s281
          %s284 = sshll.u32 %s276, 4
          %s285 = int_to_ptr.vmem [resolvable:$true] %s284
          %287 = dma.hbm_to_vmem [thread:$0]  %s282, 128, %s285, %s273
        $region40: #{lstm_model_forward.1} parent=27 // pred_fallthru
          _
      $region28: #{lstm_model_forward.1} parent=5 // pred_fallthru
        _
      %p288 = scmp.le.s32.totalorder 1, %s19
      %p289 = scmp.lt.s32.totalorder %s19, 7
      %p290 = pnand %p288, %p289
      %p291 = pneg %p290
      // Predicated region
      $region41: #{lstm_model_forward.1} parent=5 // pred_check
        _
      $region42: #{lstm_model_forward.1} parent=5 // pred_check_branch
        %293 = sbr.rel (%p290) target = $region44
      $region43: #{lstm_model_forward.1} parent=5 // pred_region
        %s294 = ssub.s32 %s19, 1
        %s295 = sand.u32 %s53, 1
        %s296 = scalar_lea.sflag [#allocation7], %s295
        %s297 = sand.u32 %s53, 1
        %s298 = smul.addr %s297, 1024
        %s299 = scalar_lea.vmem [#allocation6], %s298
        // Predicated region
        $region45: #{lstm_model_forward.1} parent=43 // pred_check
          %p300 = pneg %p66
        $region46: #{lstm_model_forward.1} parent=43 // pred_check_branch
          %302 = sbr.rel (%p300) target = $region48
        $region47: #{lstm_model_forward.1} parent=43 // pred_region
          %303 = dma.done %s296, 16384
        $region48: #{lstm_model_forward.1} parent=43 // pred_fallthru
          _
        %s304 = sand.u32 %s24, 1
        %s305 = scalar_lea.sflag [#allocation9], %s304
        %s306 = sand.u32 %s79, 1
        %s307 = smul.addr %s306, 1024
        %s308 = scalar_lea.vmem [#allocation8], %s307
        // Predicated region
        $region49: #{lstm_model_forward.1} parent=43 // pred_check
          %p309 = pneg %p92
        $region50: #{lstm_model_forward.1} parent=43 // pred_check_branch
          %311 = sbr.rel (%p309) target = $region52
        $region51: #{lstm_model_forward.1} parent=43 // pred_region
          %312 = dma.done %s305, 16384
        $region52: #{lstm_model_forward.1} parent=43 // pred_fallthru
          _
        %s313 = sand.u32 %s24, 1
        %s314 = scalar_lea.sflag [#allocation9], %s313
        %s315 = sand.u32 %s105, 1
        %s316 = smul.addr %s315, 8
        %s317 = scalar_lea.vmem [#allocation10], %s316
        // Predicated region
        $region53: #{lstm_model_forward.1} parent=43 // pred_check
          %p318 = pneg %p118
        $region54: #{lstm_model_forward.1} parent=43 // pred_check_branch
          %320 = sbr.rel (%p318) target = $region56
        $region55: #{lstm_model_forward.1} parent=43 // pred_region
          %321 = dma.done %s314, 128
        $region56: #{lstm_model_forward.1} parent=43 // pred_fallthru
          _
        // Predicated region
        $region57: #{lstm_model_forward.1} parent=43 // pred_check
          %p322 = pneg %p139
        $region58: #{lstm_model_forward.1} parent=43 // pred_check_branch
          %324 = sbr.rel (%p322) target = $region60
        $region59: #{lstm_model_forward.1} parent=43 // pred_region
          %325 = dma.done [#allocation12], 2048
        $region60: #{lstm_model_forward.1} parent=43 // pred_fallthru
          _
        // Predicated region
        $region61: #{lstm_model_forward.1} parent=43 // pred_check
          %p326 = pneg %p160
        $region62: #{lstm_model_forward.1} parent=43 // pred_check_branch
          %328 = sbr.rel (%p326) target = $region64
        $region63: #{lstm_model_forward.1} parent=43 // pred_region
          %329 = dma.done [#allocation12], 16
        $region64: #{lstm_model_forward.1} parent=43 // pred_fallthru
          _
        %p330 = pneg %p40
        %p331 = pneg %p37
        %s332 = sand.u32 %s53, 1
        %s333 = scalar_lea.sflag [#allocation7], %s332
        %s334 = sand.u32 %s53, 1
        %s335 = smul.addr %s334, 1024
        %s336 = scalar_lea.vmem [#allocation6], %s335
        %p337 = pneg %p66
        %p338 = pneg %p63
        %s339 = sand.u32 %s24, 1
        %s340 = scalar_lea.sflag [#allocation9], %s339
        %s341 = sand.u32 %s79, 1
        %s342 = smul.addr %s341, 1024
        %s343 = scalar_lea.vmem [#allocation8], %s342
        %p344 = pneg %p92
        %p345 = pneg %p89
        %s346 = sand.u32 %s24, 1
        %s347 = scalar_lea.sflag [#allocation9], %s346
        %s348 = sand.u32 %s105, 1
        %s349 = smul.addr %s348, 8
        %s350 = scalar_lea.vmem [#allocation10], %s349
        %p351 = pneg %p118
        %p352 = pneg %p115
        %p353 = pneg %p139
        %p354 = pneg %p136
        %p355 = pneg %p160
        %p356 = pneg %p157
        %p357 = pneg %p181
        %p358 = pneg %p178
        %v360 = vld [vmem:[%s299] sm:$0xff]
        %v361 = vld [vmem:[%s299 + $0x8] sm:$0xff]
        %v362 = vld [vmem:[%s299 + $0x10] sm:$0xff]
        %v363 = vld [vmem:[%s299 + $0x18] sm:$0xff]
        %v364 = vld [vmem:[%s299 + $0x20] sm:$0xff]
        %v365 = vld [vmem:[%s299 + $0x28] sm:$0xff]
        %v366 = vld [vmem:[%s299 + $0x30] sm:$0xff]
        %v367 = vld [vmem:[%s299 + $0x38] sm:$0xff]
        %v368 = vld [vmem:[%s299 + $0x40] sm:$0xff]
        %v369 = vld [vmem:[%s299 + $0x48] sm:$0xff]
        %v370 = vld [vmem:[%s299 + $0x50] sm:$0xff]
        %v371 = vld [vmem:[%s299 + $0x58] sm:$0xff]
        %v372 = vld [vmem:[%s299 + $0x60] sm:$0xff]
        %v373 = vld [vmem:[%s299 + $0x68] sm:$0xff]
        %v374 = vld [vmem:[%s299 + $0x70] sm:$0xff]
        %v375 = vld [vmem:[%s299 + $0x78] sm:$0xff]
        %v376 = vld [vmem:[%s299 + $0x80] sm:$0xff]
        %v377 = vld [vmem:[%s299 + $0x88] sm:$0xff]
        %v378 = vld [vmem:[%s299 + $0x90] sm:$0xff]
        %v379 = vld [vmem:[%s299 + $0x98] sm:$0xff]
        %v380 = vld [vmem:[%s299 + $0xa0] sm:$0xff]
        %v381 = vld [vmem:[%s299 + $0xa8] sm:$0xff]
        %v382 = vld [vmem:[%s299 + $0xb0] sm:$0xff]
        %v383 = vld [vmem:[%s299 + $0xb8] sm:$0xff]
        %v384 = vld [vmem:[%s299 + $0xc0] sm:$0xff]
        %v385 = vld [vmem:[%s299 + $0xc8] sm:$0xff]
        %v386 = vld [vmem:[%s299 + $0xd0] sm:$0xff]
        %v387 = vld [vmem:[%s299 + $0xd8] sm:$0xff]
        %v388 = vld [vmem:[%s299 + $0xe0] sm:$0xff]
        %v389 = vld [vmem:[%s299 + $0xe8] sm:$0xff]
        %v390 = vld [vmem:[%s299 + $0xf0] sm:$0xff]
        %v391 = vld [vmem:[%s299 + $0xf8] sm:$0xff]
        %v392 = vld [vmem:[%s299 + $0x100] sm:$0xff]
        %v393 = vld [vmem:[%s299 + $0x108] sm:$0xff]
        %v394 = vld [vmem:[%s299 + $0x110] sm:$0xff]
        %v395 = vld [vmem:[%s299 + $0x118] sm:$0xff]
        %v396 = vld [vmem:[%s299 + $0x120] sm:$0xff]
        %v397 = vld [vmem:[%s299 + $0x128] sm:$0xff]
        %v398 = vld [vmem:[%s299 + $0x130] sm:$0xff]
        %v399 = vld [vmem:[%s299 + $0x138] sm:$0xff]
        %v400 = vld [vmem:[%s299 + $0x140] sm:$0xff]
        %v401 = vld [vmem:[%s299 + $0x148] sm:$0xff]
        %v402 = vld [vmem:[%s299 + $0x150] sm:$0xff]
        %v403 = vld [vmem:[%s299 + $0x158] sm:$0xff]
        %v404 = vld [vmem:[%s299 + $0x160] sm:$0xff]
        %v405 = vld [vmem:[%s299 + $0x168] sm:$0xff]
        %v406 = vld [vmem:[%s299 + $0x170] sm:$0xff]
        %v407 = vld [vmem:[%s299 + $0x178] sm:$0xff]
        %v408 = vld [vmem:[%s299 + $0x180] sm:$0xff]
        %v409 = vld [vmem:[%s299 + $0x188] sm:$0xff]
        %v410 = vld [vmem:[%s299 + $0x190] sm:$0xff]
        %v411 = vld [vmem:[%s299 + $0x198] sm:$0xff]
        %v412 = vld [vmem:[%s299 + $0x1a0] sm:$0xff]
        %v413 = vld [vmem:[%s299 + $0x1a8] sm:$0xff]
        %v414 = vld [vmem:[%s299 + $0x1b0] sm:$0xff]
        %v415 = vld [vmem:[%s299 + $0x1b8] sm:$0xff]
        %v416 = vld [vmem:[%s299 + $0x1c0] sm:$0xff]
        %v417 = vld [vmem:[%s299 + $0x1c8] sm:$0xff]
        %v418 = vld [vmem:[%s299 + $0x1d0] sm:$0xff]
        %v419 = vld [vmem:[%s299 + $0x1d8] sm:$0xff]
        %v420 = vld [vmem:[%s299 + $0x1e0] sm:$0xff]
        %v421 = vld [vmem:[%s299 + $0x1e8] sm:$0xff]
        %v422 = vld [vmem:[%s299 + $0x1f0] sm:$0xff]
        %v423 = vld [vmem:[%s299 + $0x1f8] sm:$0xff]
        %v424 = vld [vmem:[%s299 + $0x200] sm:$0xff]
        %v425 = vld [vmem:[%s299 + $0x208] sm:$0xff]
        %v426 = vld [vmem:[%s299 + $0x210] sm:$0xff]
        %v427 = vld [vmem:[%s299 + $0x218] sm:$0xff]
        %v428 = vld [vmem:[%s299 + $0x220] sm:$0xff]
        %v429 = vld [vmem:[%s299 + $0x228] sm:$0xff]
        %v430 = vld [vmem:[%s299 + $0x230] sm:$0xff]
        %v431 = vld [vmem:[%s299 + $0x238] sm:$0xff]
        %v432 = vld [vmem:[%s299 + $0x240] sm:$0xff]
        %v433 = vld [vmem:[%s299 + $0x248] sm:$0xff]
        %v434 = vld [vmem:[%s299 + $0x250] sm:$0xff]
        %v435 = vld [vmem:[%s299 + $0x258] sm:$0xff]
        %v436 = vld [vmem:[%s299 + $0x260] sm:$0xff]
        %v437 = vld [vmem:[%s299 + $0x268] sm:$0xff]
        %v438 = vld [vmem:[%s299 + $0x270] sm:$0xff]
        %v439 = vld [vmem:[%s299 + $0x278] sm:$0xff]
        %v440 = vld [vmem:[%s299 + $0x280] sm:$0xff]
        %v441 = vld [vmem:[%s299 + $0x288] sm:$0xff]
        %v442 = vld [vmem:[%s299 + $0x290] sm:$0xff]
        %v443 = vld [vmem:[%s299 + $0x298] sm:$0xff]
        %v444 = vld [vmem:[%s299 + $0x2a0] sm:$0xff]
        %v445 = vld [vmem:[%s299 + $0x2a8] sm:$0xff]
        %v446 = vld [vmem:[%s299 + $0x2b0] sm:$0xff]
        %v447 = vld [vmem:[%s299 + $0x2b8] sm:$0xff]
        %v448 = vld [vmem:[%s299 + $0x2c0] sm:$0xff]
        %v449 = vld [vmem:[%s299 + $0x2c8] sm:$0xff]
        %v450 = vld [vmem:[%s299 + $0x2d0] sm:$0xff]
        %v451 = vld [vmem:[%s299 + $0x2d8] sm:$0xff]
        %v452 = vld [vmem:[%s299 + $0x2e0] sm:$0xff]
        %v453 = vld [vmem:[%s299 + $0x2e8] sm:$0xff]
        %v454 = vld [vmem:[%s299 + $0x2f0] sm:$0xff]
        %v455 = vld [vmem:[%s299 + $0x2f8] sm:$0xff]
        %v456 = vld [vmem:[%s299 + $0x300] sm:$0xff]
        %v457 = vld [vmem:[%s299 + $0x308] sm:$0xff]
        %v458 = vld [vmem:[%s299 + $0x310] sm:$0xff]
        %v459 = vld [vmem:[%s299 + $0x318] sm:$0xff]
        %v460 = vld [vmem:[%s299 + $0x320] sm:$0xff]
        %v461 = vld [vmem:[%s299 + $0x328] sm:$0xff]
        %v462 = vld [vmem:[%s299 + $0x330] sm:$0xff]
        %v463 = vld [vmem:[%s299 + $0x338] sm:$0xff]
        %v464 = vld [vmem:[%s299 + $0x340] sm:$0xff]
        %v465 = vld [vmem:[%s299 + $0x348] sm:$0xff]
        %v466 = vld [vmem:[%s299 + $0x350] sm:$0xff]
        %v467 = vld [vmem:[%s299 + $0x358] sm:$0xff]
        %v468 = vld [vmem:[%s299 + $0x360] sm:$0xff]
        %v469 = vld [vmem:[%s299 + $0x368] sm:$0xff]
        %v470 = vld [vmem:[%s299 + $0x370] sm:$0xff]
        %v471 = vld [vmem:[%s299 + $0x378] sm:$0xff]
        %v472 = vld [vmem:[%s299 + $0x380] sm:$0xff]
        %v473 = vld [vmem:[%s299 + $0x388] sm:$0xff]
        %v474 = vld [vmem:[%s299 + $0x390] sm:$0xff]
        %v475 = vld [vmem:[%s299 + $0x398] sm:$0xff]
        %v476 = vld [vmem:[%s299 + $0x3a0] sm:$0xff]
        %v477 = vld [vmem:[%s299 + $0x3a8] sm:$0xff]
        %v478 = vld [vmem:[%s299 + $0x3b0] sm:$0xff]
        %v479 = vld [vmem:[%s299 + $0x3b8] sm:$0xff]
        %v480 = vld [vmem:[%s299 + $0x3c0] sm:$0xff]
        %v481 = vld [vmem:[%s299 + $0x3c8] sm:$0xff]
        %v482 = vld [vmem:[%s299 + $0x3d0] sm:$0xff]
        %v483 = vld [vmem:[%s299 + $0x3d8] sm:$0xff]
        %v484 = vld [vmem:[%s299 + $0x3e0] sm:$0xff]
        %v485 = vld [vmem:[%s299 + $0x3e8] sm:$0xff]
        %v486 = vld [vmem:[%s299 + $0x3f0] sm:$0xff]
        %v487 = vld [vmem:[%s299 + $0x3f8] sm:$0xff]
        %v488 = vld [vmem:[%s308] sm:$0xff]
        %v489 = vld [vmem:[%s308 + $0x8] sm:$0xff]
        %v490 = vld [vmem:[%s308 + $0x10] sm:$0xff]
        %v491 = vld [vmem:[%s308 + $0x18] sm:$0xff]
        %v492 = vld [vmem:[%s308 + $0x20] sm:$0xff]
        %v493 = vld [vmem:[%s308 + $0x28] sm:$0xff]
        %v494 = vld [vmem:[%s308 + $0x30] sm:$0xff]
        %v495 = vld [vmem:[%s308 + $0x38] sm:$0xff]
        %v496 = vld [vmem:[%s308 + $0x40] sm:$0xff]
        %v497 = vld [vmem:[%s308 + $0x48] sm:$0xff]
        %v498 = vld [vmem:[%s308 + $0x50] sm:$0xff]
        %v499 = vld [vmem:[%s308 + $0x58] sm:$0xff]
        %v500 = vld [vmem:[%s308 + $0x60] sm:$0xff]
        %v501 = vld [vmem:[%s308 + $0x68] sm:$0xff]
        %v502 = vld [vmem:[%s308 + $0x70] sm:$0xff]
        %v503 = vld [vmem:[%s308 + $0x78] sm:$0xff]
        %v504 = vld [vmem:[%s308 + $0x80] sm:$0xff]
        %v505 = vld [vmem:[%s308 + $0x88] sm:$0xff]
        %v506 = vld [vmem:[%s308 + $0x90] sm:$0xff]
        %v507 = vld [vmem:[%s308 + $0x98] sm:$0xff]
        %v508 = vld [vmem:[%s308 + $0xa0] sm:$0xff]
        %v509 = vld [vmem:[%s308 + $0xa8] sm:$0xff]
        %v510 = vld [vmem:[%s308 + $0xb0] sm:$0xff]
        %v511 = vld [vmem:[%s308 + $0xb8] sm:$0xff]
        %v512 = vld [vmem:[%s308 + $0xc0] sm:$0xff]
        %v513 = vld [vmem:[%s308 + $0xc8] sm:$0xff]
        %v514 = vld [vmem:[%s308 + $0xd0] sm:$0xff]
        %v515 = vld [vmem:[%s308 + $0xd8] sm:$0xff]
        %v516 = vld [vmem:[%s308 + $0xe0] sm:$0xff]
        %v517 = vld [vmem:[%s308 + $0xe8] sm:$0xff]
        %v518 = vld [vmem:[%s308 + $0xf0] sm:$0xff]
        %v519 = vld [vmem:[%s308 + $0xf8] sm:$0xff]
        %v520 = vld [vmem:[%s308 + $0x100] sm:$0xff]
        %v521 = vld [vmem:[%s308 + $0x108] sm:$0xff]
        %v522 = vld [vmem:[%s308 + $0x110] sm:$0xff]
        %v523 = vld [vmem:[%s308 + $0x118] sm:$0xff]
        %v524 = vld [vmem:[%s308 + $0x120] sm:$0xff]
        %v525 = vld [vmem:[%s308 + $0x128] sm:$0xff]
        %v526 = vld [vmem:[%s308 + $0x130] sm:$0xff]
        %v527 = vld [vmem:[%s308 + $0x138] sm:$0xff]
        %v528 = vld [vmem:[%s308 + $0x140] sm:$0xff]
        %v529 = vld [vmem:[%s308 + $0x148] sm:$0xff]
        %v530 = vld [vmem:[%s308 + $0x150] sm:$0xff]
        %v531 = vld [vmem:[%s308 + $0x158] sm:$0xff]
        %v532 = vld [vmem:[%s308 + $0x160] sm:$0xff]
        %v533 = vld [vmem:[%s308 + $0x168] sm:$0xff]
        %v534 = vld [vmem:[%s308 + $0x170] sm:$0xff]
        %v535 = vld [vmem:[%s308 + $0x178] sm:$0xff]
        %v536 = vld [vmem:[%s308 + $0x180] sm:$0xff]
        %v537 = vld [vmem:[%s308 + $0x188] sm:$0xff]
        %v538 = vld [vmem:[%s308 + $0x190] sm:$0xff]
        %v539 = vld [vmem:[%s308 + $0x198] sm:$0xff]
        %v540 = vld [vmem:[%s308 + $0x1a0] sm:$0xff]
        %v541 = vld [vmem:[%s308 + $0x1a8] sm:$0xff]
        %v542 = vld [vmem:[%s308 + $0x1b0] sm:$0xff]
        %v543 = vld [vmem:[%s308 + $0x1b8] sm:$0xff]
        %v544 = vld [vmem:[%s308 + $0x1c0] sm:$0xff]
        %v545 = vld [vmem:[%s308 + $0x1c8] sm:$0xff]
        %v546 = vld [vmem:[%s308 + $0x1d0] sm:$0xff]
        %v547 = vld [vmem:[%s308 + $0x1d8] sm:$0xff]
        %v548 = vld [vmem:[%s308 + $0x1e0] sm:$0xff]
        %v549 = vld [vmem:[%s308 + $0x1e8] sm:$0xff]
        %v550 = vld [vmem:[%s308 + $0x1f0] sm:$0xff]
        %v551 = vld [vmem:[%s308 + $0x1f8] sm:$0xff]
        %v552 = vld [vmem:[%s308 + $0x200] sm:$0xff]
        %v553 = vld [vmem:[%s308 + $0x208] sm:$0xff]
        %v554 = vld [vmem:[%s308 + $0x210] sm:$0xff]
        %v555 = vld [vmem:[%s308 + $0x218] sm:$0xff]
        %v556 = vld [vmem:[%s308 + $0x220] sm:$0xff]
        %v557 = vld [vmem:[%s308 + $0x228] sm:$0xff]
        %v558 = vld [vmem:[%s308 + $0x230] sm:$0xff]
        %v559 = vld [vmem:[%s308 + $0x238] sm:$0xff]
        %v560 = vld [vmem:[%s308 + $0x240] sm:$0xff]
        %v561 = vld [vmem:[%s308 + $0x248] sm:$0xff]
        %v562 = vld [vmem:[%s308 + $0x250] sm:$0xff]
        %v563 = vld [vmem:[%s308 + $0x258] sm:$0xff]
        %v564 = vld [vmem:[%s308 + $0x260] sm:$0xff]
        %v565 = vld [vmem:[%s308 + $0x268] sm:$0xff]
        %v566 = vld [vmem:[%s308 + $0x270] sm:$0xff]
        %v567 = vld [vmem:[%s308 + $0x278] sm:$0xff]
        %v568 = vld [vmem:[%s308 + $0x280] sm:$0xff]
        %v569 = vld [vmem:[%s308 + $0x288] sm:$0xff]
        %v570 = vld [vmem:[%s308 + $0x290] sm:$0xff]
        %v571 = vld [vmem:[%s308 + $0x298] sm:$0xff]
        %v572 = vld [vmem:[%s308 + $0x2a0] sm:$0xff]
        %v573 = vld [vmem:[%s308 + $0x2a8] sm:$0xff]
        %v574 = vld [vmem:[%s308 + $0x2b0] sm:$0xff]
        %v575 = vld [vmem:[%s308 + $0x2b8] sm:$0xff]
        %v576 = vld [vmem:[%s308 + $0x2c0] sm:$0xff]
        %v577 = vld [vmem:[%s308 + $0x2c8] sm:$0xff]
        %v578 = vld [vmem:[%s308 + $0x2d0] sm:$0xff]
        %v579 = vld [vmem:[%s308 + $0x2d8] sm:$0xff]
        %v580 = vld [vmem:[%s308 + $0x2e0] sm:$0xff]
        %v581 = vld [vmem:[%s308 + $0x2e8] sm:$0xff]
        %v582 = vld [vmem:[%s308 + $0x2f0] sm:$0xff]
        %v583 = vld [vmem:[%s308 + $0x2f8] sm:$0xff]
        %v584 = vld [vmem:[%s308 + $0x300] sm:$0xff]
        %v585 = vld [vmem:[%s308 + $0x308] sm:$0xff]
        %v586 = vld [vmem:[%s308 + $0x310] sm:$0xff]
        %v587 = vld [vmem:[%s308 + $0x318] sm:$0xff]
        %v588 = vld [vmem:[%s308 + $0x320] sm:$0xff]
        %v589 = vld [vmem:[%s308 + $0x328] sm:$0xff]
        %v590 = vld [vmem:[%s308 + $0x330] sm:$0xff]
        %v591 = vld [vmem:[%s308 + $0x338] sm:$0xff]
        %v592 = vld [vmem:[%s308 + $0x340] sm:$0xff]
        %v593 = vld [vmem:[%s308 + $0x348] sm:$0xff]
        %v594 = vld [vmem:[%s308 + $0x350] sm:$0xff]
        %v595 = vld [vmem:[%s308 + $0x358] sm:$0xff]
        %v596 = vld [vmem:[%s308 + $0x360] sm:$0xff]
        %v597 = vld [vmem:[%s308 + $0x368] sm:$0xff]
        %v598 = vld [vmem:[%s308 + $0x370] sm:$0xff]
        %v599 = vld [vmem:[%s308 + $0x378] sm:$0xff]
        %v600 = vld [vmem:[%s308 + $0x380] sm:$0xff]
        %v601 = vld [vmem:[%s308 + $0x388] sm:$0xff]
        %v602 = vld [vmem:[%s308 + $0x390] sm:$0xff]
        %v603 = vld [vmem:[%s308 + $0x398] sm:$0xff]
        %v604 = vld [vmem:[%s308 + $0x3a0] sm:$0xff]
        %v605 = vld [vmem:[%s308 + $0x3a8] sm:$0xff]
        %v606 = vld [vmem:[%s308 + $0x3b0] sm:$0xff]
        %v607 = vld [vmem:[%s308 + $0x3b8] sm:$0xff]
        %v608 = vld [vmem:[%s308 + $0x3c0] sm:$0xff]
        %v609 = vld [vmem:[%s308 + $0x3c8] sm:$0xff]
        %v610 = vld [vmem:[%s308 + $0x3d0] sm:$0xff]
        %v611 = vld [vmem:[%s308 + $0x3d8] sm:$0xff]
        %v612 = vld [vmem:[%s308 + $0x3e0] sm:$0xff]
        %v613 = vld [vmem:[%s308 + $0x3e8] sm:$0xff]
        %v614 = vld [vmem:[%s308 + $0x3f0] sm:$0xff]
        %v615 = vld [vmem:[%s308 + $0x3f8] sm:$0xff]
        %v616 = vld [vmem:[%s317] sm:$0xff]
        %p617 = scmp.eq.s32.totalorder %s24, 0
        // Predicated region
        $region65: #{lstm_model_forward.1} parent=43 // pred_check
          %p618 = pneg %p617
        $region66: #{lstm_model_forward.1} parent=43 // pred_check_branch
          %620 = sbr.rel (%p618) target = $region68
        $region67: #{lstm_model_forward.1} parent=43 // pred_region
          %v621 = vld [vmem:[%s0] sm:$0xff]
          %v622 = vld [vmem:[%s0 + $0x8] sm:$0xff]
          %v623 = vld [vmem:[%s0 + $0x10] sm:$0xff]
          %v624 = vld [vmem:[%s0 + $0x18] sm:$0xff]
          %v625 = vld [vmem:[%s0 + $0x20] sm:$0xff]
          %v626 = vld [vmem:[%s0 + $0x28] sm:$0xff]
          %v627 = vld [vmem:[%s0 + $0x30] sm:$0xff]
          %v628 = vld [vmem:[%s0 + $0x38] sm:$0xff]
          %v630 = vlaneseq
          %v631 = vshrl.u32 %v630, 7
          %v632 = vsub.s32 0, %v631
          %v633 = vrot.slane %v616, %v632
          %v634 = vlaneseq
          %v635 = vshrl.u32 %v634, 7
          %v636 = vsub.s32 1, %v635
          %v637 = vrot.slane %v616, %v636
          %v638 = vlaneseq
          %v639 = vshrl.u32 %v638, 7
          %v640 = vsub.s32 2, %v639
          %v641 = vrot.slane %v616, %v640
          %v642 = vlaneseq
          %v643 = vshrl.u32 %v642, 7
          %v644 = vsub.s32 3, %v643
          %v645 = vrot.slane %v616, %v644
          %v646 = vlaneseq
          %v647 = vshrl.u32 %v646, 7
          %v648 = vsub.s32 4, %v647
          %v649 = vrot.slane %v616, %v648
          %v650 = vlaneseq
          %v651 = vshrl.u32 %v650, 7
          %v652 = vsub.s32 5, %v651
          %v653 = vrot.slane %v616, %v652
          %v654 = vlaneseq
          %v655 = vshrl.u32 %v654, 7
          %v656 = vsub.s32 6, %v655
          %v657 = vrot.slane %v616, %v656
          %v658 = vlaneseq
          %v659 = vshrl.u32 %v658, 7
          %v660 = vsub.s32 7, %v659
          %v661 = vrot.slane %v616, %v660
          %v678 = vunpack.c.l.b16 %v621
          %v679 = vunpack.c.h.b16 %v621
          %v680 = vunpack.c.l.b16 %v622
          %v681 = vunpack.c.h.b16 %v622
          %v682 = vunpack.c.l.b16 %v623
          %v683 = vunpack.c.h.b16 %v623
          %v684 = vunpack.c.l.b16 %v624
          %v685 = vunpack.c.h.b16 %v624
          %v686 = vunpack.c.l.b16 %v625
          %v687 = vunpack.c.h.b16 %v625
          %v688 = vunpack.c.l.b16 %v626
          %v689 = vunpack.c.h.b16 %v626
          %v690 = vunpack.c.l.b16 %v627
          %v691 = vunpack.c.h.b16 %v627
          %v692 = vunpack.c.l.b16 %v628
          %v693 = vunpack.c.h.b16 %v628
          %v694 = vpack.c.b16 %v680, %v678
          %v695 = vpack.c.b16 %v681, %v679
          %v696 = vpack.c.b16 %v684, %v682
          %v697 = vpack.c.b16 %v685, %v683
          %v698 = vpack.c.b16 %v688, %v686
          %v699 = vpack.c.b16 %v689, %v687
          %v700 = vpack.c.b16 %v692, %v690
          %v701 = vpack.c.b16 %v693, %v691
          %v838 = vunpack.c.l.b16 %v360
          %v839 = vunpack.c.h.b16 %v360
          %v840 = vunpack.c.l.b16 %v361
          %v841 = vunpack.c.h.b16 %v361
          %v842 = vunpack.c.l.b16 %v362
          %v843 = vunpack.c.h.b16 %v362
          %v844 = vunpack.c.l.b16 %v363
          %v845 = vunpack.c.h.b16 %v363
          %v846 = vunpack.c.l.b16 %v364
          %v847 = vunpack.c.h.b16 %v364
          %v848 = vunpack.c.l.b16 %v365
          %v849 = vunpack.c.h.b16 %v365
          %v850 = vunpack.c.l.b16 %v366
          %v851 = vunpack.c.h.b16 %v366
          %v852 = vunpack.c.l.b16 %v367
          %v853 = vunpack.c.h.b16 %v367
          %v854 = vunpack.c.l.b16 %v368
          %v855 = vunpack.c.h.b16 %v368
          %v856 = vunpack.c.l.b16 %v369
          %v857 = vunpack.c.h.b16 %v369
          %v858 = vunpack.c.l.b16 %v370
          %v859 = vunpack.c.h.b16 %v370
          %v860 = vunpack.c.l.b16 %v371
          %v861 = vunpack.c.h.b16 %v371
          %v862 = vunpack.c.l.b16 %v372
          %v863 = vunpack.c.h.b16 %v372
          %v864 = vunpack.c.l.b16 %v373
          %v865 = vunpack.c.h.b16 %v373
          %v866 = vunpack.c.l.b16 %v374
          %v867 = vunpack.c.h.b16 %v374
          %v868 = vunpack.c.l.b16 %v375
          %v869 = vunpack.c.h.b16 %v375
          %v870 = vunpack.c.l.b16 %v376
          %v871 = vunpack.c.h.b16 %v376
          %v872 = vunpack.c.l.b16 %v377
          %v873 = vunpack.c.h.b16 %v377
          %v874 = vunpack.c.l.b16 %v378
          %v875 = vunpack.c.h.b16 %v378
          %v876 = vunpack.c.l.b16 %v379
          %v877 = vunpack.c.h.b16 %v379
          %v878 = vunpack.c.l.b16 %v380
          %v879 = vunpack.c.h.b16 %v380
          %v880 = vunpack.c.l.b16 %v381
          %v881 = vunpack.c.h.b16 %v381
          %v882 = vunpack.c.l.b16 %v382
          %v883 = vunpack.c.h.b16 %v382
          %v884 = vunpack.c.l.b16 %v383
          %v885 = vunpack.c.h.b16 %v383
          %v886 = vunpack.c.l.b16 %v384
          %v887 = vunpack.c.h.b16 %v384
          %v888 = vunpack.c.l.b16 %v385
          %v889 = vunpack.c.h.b16 %v385
          %v890 = vunpack.c.l.b16 %v386
          %v891 = vunpack.c.h.b16 %v386
          %v892 = vunpack.c.l.b16 %v387
          %v893 = vunpack.c.h.b16 %v387
          %v894 = vunpack.c.l.b16 %v388
          %v895 = vunpack.c.h.b16 %v388
          %v896 = vunpack.c.l.b16 %v389
          %v897 = vunpack.c.h.b16 %v389
          %v898 = vunpack.c.l.b16 %v390
          %v899 = vunpack.c.h.b16 %v390
          %v900 = vunpack.c.l.b16 %v391
          %v901 = vunpack.c.h.b16 %v391
          %v902 = vunpack.c.l.b16 %v392
          %v903 = vunpack.c.h.b16 %v392
          %v904 = vunpack.c.l.b16 %v393
          %v905 = vunpack.c.h.b16 %v393
          %v906 = vunpack.c.l.b16 %v394
          %v907 = vunpack.c.h.b16 %v394
          %v908 = vunpack.c.l.b16 %v395
          %v909 = vunpack.c.h.b16 %v395
          %v910 = vunpack.c.l.b16 %v396
          %v911 = vunpack.c.h.b16 %v396
          %v912 = vunpack.c.l.b16 %v397
          %v913 = vunpack.c.h.b16 %v397
          %v914 = vunpack.c.l.b16 %v398
          %v915 = vunpack.c.h.b16 %v398
          %v916 = vunpack.c.l.b16 %v399
          %v917 = vunpack.c.h.b16 %v399
          %v918 = vunpack.c.l.b16 %v400
          %v919 = vunpack.c.h.b16 %v400
          %v920 = vunpack.c.l.b16 %v401
          %v921 = vunpack.c.h.b16 %v401
          %v922 = vunpack.c.l.b16 %v402
          %v923 = vunpack.c.h.b16 %v402
          %v924 = vunpack.c.l.b16 %v403
          %v925 = vunpack.c.h.b16 %v403
          %v926 = vunpack.c.l.b16 %v404
          %v927 = vunpack.c.h.b16 %v404
          %v928 = vunpack.c.l.b16 %v405
          %v929 = vunpack.c.h.b16 %v405
          %v930 = vunpack.c.l.b16 %v406
          %v931 = vunpack.c.h.b16 %v406
          %v932 = vunpack.c.l.b16 %v407
          %v933 = vunpack.c.h.b16 %v407
          %v934 = vunpack.c.l.b16 %v408
          %v935 = vunpack.c.h.b16 %v408
          %v936 = vunpack.c.l.b16 %v409
          %v937 = vunpack.c.h.b16 %v409
          %v938 = vunpack.c.l.b16 %v410
          %v939 = vunpack.c.h.b16 %v410
          %v940 = vunpack.c.l.b16 %v411
          %v941 = vunpack.c.h.b16 %v411
          %v942 = vunpack.c.l.b16 %v412
          %v943 = vunpack.c.h.b16 %v412
          %v944 = vunpack.c.l.b16 %v413
          %v945 = vunpack.c.h.b16 %v413
          %v946 = vunpack.c.l.b16 %v414
          %v947 = vunpack.c.h.b16 %v414
          %v948 = vunpack.c.l.b16 %v415
          %v949 = vunpack.c.h.b16 %v415
          %v950 = vunpack.c.l.b16 %v416
          %v951 = vunpack.c.h.b16 %v416
          %v952 = vunpack.c.l.b16 %v417
          %v953 = vunpack.c.h.b16 %v417
          %v954 = vunpack.c.l.b16 %v418
          %v955 = vunpack.c.h.b16 %v418
          %v956 = vunpack.c.l.b16 %v419
          %v957 = vunpack.c.h.b16 %v419
          %v958 = vunpack.c.l.b16 %v420
          %v959 = vunpack.c.h.b16 %v420
          %v960 = vunpack.c.l.b16 %v421
          %v961 = vunpack.c.h.b16 %v421
          %v962 = vunpack.c.l.b16 %v422
          %v963 = vunpack.c.h.b16 %v422
          %v964 = vunpack.c.l.b16 %v423
          %v965 = vunpack.c.h.b16 %v423
          %v966 = vunpack.c.l.b16 %v424
          %v967 = vunpack.c.h.b16 %v424
          %v968 = vunpack.c.l.b16 %v425
          %v969 = vunpack.c.h.b16 %v425
          %v970 = vunpack.c.l.b16 %v426
          %v971 = vunpack.c.h.b16 %v426
          %v972 = vunpack.c.l.b16 %v427
          %v973 = vunpack.c.h.b16 %v427
          %v974 = vunpack.c.l.b16 %v428
          %v975 = vunpack.c.h.b16 %v428
          %v976 = vunpack.c.l.b16 %v429
          %v977 = vunpack.c.h.b16 %v429
          %v978 = vunpack.c.l.b16 %v430
          %v979 = vunpack.c.h.b16 %v430
          %v980 = vunpack.c.l.b16 %v431
          %v981 = vunpack.c.h.b16 %v431
          %v982 = vunpack.c.l.b16 %v432
          %v983 = vunpack.c.h.b16 %v432
          %v984 = vunpack.c.l.b16 %v433
          %v985 = vunpack.c.h.b16 %v433
          %v986 = vunpack.c.l.b16 %v434
          %v987 = vunpack.c.h.b16 %v434
          %v988 = vunpack.c.l.b16 %v435
          %v989 = vunpack.c.h.b16 %v435
          %v990 = vunpack.c.l.b16 %v436
          %v991 = vunpack.c.h.b16 %v436
          %v992 = vunpack.c.l.b16 %v437
          %v993 = vunpack.c.h.b16 %v437
          %v994 = vunpack.c.l.b16 %v438
          %v995 = vunpack.c.h.b16 %v438
          %v996 = vunpack.c.l.b16 %v439
          %v997 = vunpack.c.h.b16 %v439
          %v998 = vunpack.c.l.b16 %v440
          %v999 = vunpack.c.h.b16 %v440
          %v1000 = vunpack.c.l.b16 %v441
          %v1001 = vunpack.c.h.b16 %v441
          %v1002 = vunpack.c.l.b16 %v442
          %v1003 = vunpack.c.h.b16 %v442
          %v1004 = vunpack.c.l.b16 %v443
          %v1005 = vunpack.c.h.b16 %v443
          %v1006 = vunpack.c.l.b16 %v444
          %v1007 = vunpack.c.h.b16 %v444
          %v1008 = vunpack.c.l.b16 %v445
          %v1009 = vunpack.c.h.b16 %v445
          %v1010 = vunpack.c.l.b16 %v446
          %v1011 = vunpack.c.h.b16 %v446
          %v1012 = vunpack.c.l.b16 %v447
          %v1013 = vunpack.c.h.b16 %v447
          %v1014 = vunpack.c.l.b16 %v448
          %v1015 = vunpack.c.h.b16 %v448
          %v1016 = vunpack.c.l.b16 %v449
          %v1017 = vunpack.c.h.b16 %v449
          %v1018 = vunpack.c.l.b16 %v450
          %v1019 = vunpack.c.h.b16 %v450
          %v1020 = vunpack.c.l.b16 %v451
          %v1021 = vunpack.c.h.b16 %v451
          %v1022 = vunpack.c.l.b16 %v452
          %v1023 = vunpack.c.h.b16 %v452
          %v1024 = vunpack.c.l.b16 %v453
          %v1025 = vunpack.c.h.b16 %v453
          %v1026 = vunpack.c.l.b16 %v454
          %v1027 = vunpack.c.h.b16 %v454
          %v1028 = vunpack.c.l.b16 %v455
          %v1029 = vunpack.c.h.b16 %v455
          %v1030 = vunpack.c.l.b16 %v456
          %v1031 = vunpack.c.h.b16 %v456
          %v1032 = vunpack.c.l.b16 %v457
          %v1033 = vunpack.c.h.b16 %v457
          %v1034 = vunpack.c.l.b16 %v458
          %v1035 = vunpack.c.h.b16 %v458
          %v1036 = vunpack.c.l.b16 %v459
          %v1037 = vunpack.c.h.b16 %v459
          %v1038 = vunpack.c.l.b16 %v460
          %v1039 = vunpack.c.h.b16 %v460
          %v1040 = vunpack.c.l.b16 %v461
          %v1041 = vunpack.c.h.b16 %v461
          %v1042 = vunpack.c.l.b16 %v462
          %v1043 = vunpack.c.h.b16 %v462
          %v1044 = vunpack.c.l.b16 %v463
          %v1045 = vunpack.c.h.b16 %v463
          %v1046 = vunpack.c.l.b16 %v464
          %v1047 = vunpack.c.h.b16 %v464
          %v1048 = vunpack.c.l.b16 %v465
          %v1049 = vunpack.c.h.b16 %v465
          %v1050 = vunpack.c.l.b16 %v466
          %v1051 = vunpack.c.h.b16 %v466
          %v1052 = vunpack.c.l.b16 %v467
          %v1053 = vunpack.c.h.b16 %v467
          %v1054 = vunpack.c.l.b16 %v468
          %v1055 = vunpack.c.h.b16 %v468
          %v1056 = vunpack.c.l.b16 %v469
          %v1057 = vunpack.c.h.b16 %v469
          %v1058 = vunpack.c.l.b16 %v470
          %v1059 = vunpack.c.h.b16 %v470
          %v1060 = vunpack.c.l.b16 %v471
          %v1061 = vunpack.c.h.b16 %v471
          %v1062 = vunpack.c.l.b16 %v472
          %v1063 = vunpack.c.h.b16 %v472
          %v1064 = vunpack.c.l.b16 %v473
          %v1065 = vunpack.c.h.b16 %v473
          %v1066 = vunpack.c.l.b16 %v474
          %v1067 = vunpack.c.h.b16 %v474
          %v1068 = vunpack.c.l.b16 %v475
          %v1069 = vunpack.c.h.b16 %v475
          %v1070 = vunpack.c.l.b16 %v476
          %v1071 = vunpack.c.h.b16 %v476
          %v1072 = vunpack.c.l.b16 %v477
          %v1073 = vunpack.c.h.b16 %v477
          %v1074 = vunpack.c.l.b16 %v478
          %v1075 = vunpack.c.h.b16 %v478
          %v1076 = vunpack.c.l.b16 %v479
          %v1077 = vunpack.c.h.b16 %v479
          %v1078 = vunpack.c.l.b16 %v480
          %v1079 = vunpack.c.h.b16 %v480
          %v1080 = vunpack.c.l.b16 %v481
          %v1081 = vunpack.c.h.b16 %v481
          %v1082 = vunpack.c.l.b16 %v482
          %v1083 = vunpack.c.h.b16 %v482
          %v1084 = vunpack.c.l.b16 %v483
          %v1085 = vunpack.c.h.b16 %v483
          %v1086 = vunpack.c.l.b16 %v484
          %v1087 = vunpack.c.h.b16 %v484
          %v1088 = vunpack.c.l.b16 %v485
          %v1089 = vunpack.c.h.b16 %v485
          %v1090 = vunpack.c.l.b16 %v486
          %v1091 = vunpack.c.h.b16 %v486
          %v1092 = vunpack.c.l.b16 %v487
          %v1093 = vunpack.c.h.b16 %v487
          %v1094 = vpack.c.b16 %v846, %v838
          %v1095 = vpack.c.b16 %v847, %v839
          %v1096 = vpack.c.b16 %v848, %v840
          %v1097 = vpack.c.b16 %v849, %v841
          %v1098 = vpack.c.b16 %v850, %v842
          %v1099 = vpack.c.b16 %v851, %v843
          %v1100 = vpack.c.b16 %v852, %v844
          %v1101 = vpack.c.b16 %v853, %v845
          %v1102 = vpack.c.b16 %v862, %v854
          %v1103 = vpack.c.b16 %v863, %v855
          %v1104 = vpack.c.b16 %v864, %v856
          %v1105 = vpack.c.b16 %v865, %v857
          %v1106 = vpack.c.b16 %v866, %v858
          %v1107 = vpack.c.b16 %v867, %v859
          %v1108 = vpack.c.b16 %v868, %v860
          %v1109 = vpack.c.b16 %v869, %v861
          %v1110 = vpack.c.b16 %v878, %v870
          %v1111 = vpack.c.b16 %v879, %v871
          %v1112 = vpack.c.b16 %v880, %v872
          %v1113 = vpack.c.b16 %v881, %v873
          %v1114 = vpack.c.b16 %v882, %v874
          %v1115 = vpack.c.b16 %v883, %v875
          %v1116 = vpack.c.b16 %v884, %v876
          %v1117 = vpack.c.b16 %v885, %v877
          %v1118 = vpack.c.b16 %v894, %v886
          %v1119 = vpack.c.b16 %v895, %v887
          %v1120 = vpack.c.b16 %v896, %v888
          %v1121 = vpack.c.b16 %v897, %v889
          %v1122 = vpack.c.b16 %v898, %v890
          %v1123 = vpack.c.b16 %v899, %v891
          %v1124 = vpack.c.b16 %v900, %v892
          %v1125 = vpack.c.b16 %v901, %v893
          %v1126 = vpack.c.b16 %v910, %v902
          %v1127 = vpack.c.b16 %v911, %v903
          %v1128 = vpack.c.b16 %v912, %v904
          %v1129 = vpack.c.b16 %v913, %v905
          %v1130 = vpack.c.b16 %v914, %v906
          %v1131 = vpack.c.b16 %v915, %v907
          %v1132 = vpack.c.b16 %v916, %v908
          %v1133 = vpack.c.b16 %v917, %v909
          %v1134 = vpack.c.b16 %v926, %v918
          %v1135 = vpack.c.b16 %v927, %v919
          %v1136 = vpack.c.b16 %v928, %v920
          %v1137 = vpack.c.b16 %v929, %v921
          %v1138 = vpack.c.b16 %v930, %v922
          %v1139 = vpack.c.b16 %v931, %v923
          %v1140 = vpack.c.b16 %v932, %v924
          %v1141 = vpack.c.b16 %v933, %v925
          %v1142 = vpack.c.b16 %v942, %v934
          %v1143 = vpack.c.b16 %v943, %v935
          %v1144 = vpack.c.b16 %v944, %v936
          %v1145 = vpack.c.b16 %v945, %v937
          %v1146 = vpack.c.b16 %v946, %v938
          %v1147 = vpack.c.b16 %v947, %v939
          %v1148 = vpack.c.b16 %v948, %v940
          %v1149 = vpack.c.b16 %v949, %v941
          %v1150 = vpack.c.b16 %v958, %v950
          %v1151 = vpack.c.b16 %v959, %v951
          %v1152 = vpack.c.b16 %v960, %v952
          %v1153 = vpack.c.b16 %v961, %v953
          %v1154 = vpack.c.b16 %v962, %v954
          %v1155 = vpack.c.b16 %v963, %v955
          %v1156 = vpack.c.b16 %v964, %v956
          %v1157 = vpack.c.b16 %v965, %v957
          %v1158 = vpack.c.b16 %v974, %v966
          %v1159 = vpack.c.b16 %v975, %v967
          %v1160 = vpack.c.b16 %v976, %v968
          %v1161 = vpack.c.b16 %v977, %v969
          %v1162 = vpack.c.b16 %v978, %v970
          %v1163 = vpack.c.b16 %v979, %v971
          %v1164 = vpack.c.b16 %v980, %v972
          %v1165 = vpack.c.b16 %v981, %v973
          %v1166 = vpack.c.b16 %v990, %v982
          %v1167 = vpack.c.b16 %v991, %v983
          %v1168 = vpack.c.b16 %v992, %v984
          %v1169 = vpack.c.b16 %v993, %v985
          %v1170 = vpack.c.b16 %v994, %v986
          %v1171 = vpack.c.b16 %v995, %v987
          %v1172 = vpack.c.b16 %v996, %v988
          %v1173 = vpack.c.b16 %v997, %v989
          %v1174 = vpack.c.b16 %v1006, %v998
          %v1175 = vpack.c.b16 %v1007, %v999
          %v1176 = vpack.c.b16 %v1008, %v1000
          %v1177 = vpack.c.b16 %v1009, %v1001
          %v1178 = vpack.c.b16 %v1010, %v1002
          %v1179 = vpack.c.b16 %v1011, %v1003
          %v1180 = vpack.c.b16 %v1012, %v1004
          %v1181 = vpack.c.b16 %v1013, %v1005
          %v1182 = vpack.c.b16 %v1022, %v1014
          %v1183 = vpack.c.b16 %v1023, %v1015
          %v1184 = vpack.c.b16 %v1024, %v1016
          %v1185 = vpack.c.b16 %v1025, %v1017
          %v1186 = vpack.c.b16 %v1026, %v1018
          %v1187 = vpack.c.b16 %v1027, %v1019
          %v1188 = vpack.c.b16 %v1028, %v1020
          %v1189 = vpack.c.b16 %v1029, %v1021
          %v1190 = vpack.c.b16 %v1038, %v1030
          %v1191 = vpack.c.b16 %v1039, %v1031
          %v1192 = vpack.c.b16 %v1040, %v1032
          %v1193 = vpack.c.b16 %v1041, %v1033
          %v1194 = vpack.c.b16 %v1042, %v1034
          %v1195 = vpack.c.b16 %v1043, %v1035
          %v1196 = vpack.c.b16 %v1044, %v1036
          %v1197 = vpack.c.b16 %v1045, %v1037
          %v1198 = vpack.c.b16 %v1054, %v1046
          %v1199 = vpack.c.b16 %v1055, %v1047
          %v1200 = vpack.c.b16 %v1056, %v1048
          %v1201 = vpack.c.b16 %v1057, %v1049
          %v1202 = vpack.c.b16 %v1058, %v1050
          %v1203 = vpack.c.b16 %v1059, %v1051
          %v1204 = vpack.c.b16 %v1060, %v1052
          %v1205 = vpack.c.b16 %v1061, %v1053
          %v1206 = vpack.c.b16 %v1070, %v1062
          %v1207 = vpack.c.b16 %v1071, %v1063
          %v1208 = vpack.c.b16 %v1072, %v1064
          %v1209 = vpack.c.b16 %v1073, %v1065
          %v1210 = vpack.c.b16 %v1074, %v1066
          %v1211 = vpack.c.b16 %v1075, %v1067
          %v1212 = vpack.c.b16 %v1076, %v1068
          %v1213 = vpack.c.b16 %v1077, %v1069
          %v1214 = vpack.c.b16 %v1086, %v1078
          %v1215 = vpack.c.b16 %v1087, %v1079
          %v1216 = vpack.c.b16 %v1088, %v1080
          %v1217 = vpack.c.b16 %v1089, %v1081
          %v1218 = vpack.c.b16 %v1090, %v1082
          %v1219 = vpack.c.b16 %v1091, %v1083
          %v1220 = vpack.c.b16 %v1092, %v1084
          %v1221 = vpack.c.b16 %v1093, %v1085
          %1350 = vmatprep.subr.bf16.mxu0 %v1095
          %1351 = vmatpush1.bf16.msra.mxu0 %v1094
          %1352 = vmatprep.subr.bf16.mxu0 %v1103
          %1353 = vmatpush1.bf16.msra.mxu0 %v1102
          %1354 = vmatprep.subr.bf16.mxu0 %v1111
          %1355 = vmatpush1.bf16.msra.mxu0 %v1110
          %1356 = vmatprep.subr.bf16.mxu0 %v1119
          %1357 = vmatpush1.bf16.msra.mxu0 %v1118
          %1358 = vmatprep.subr.bf16.mxu0 %v1127
          %1359 = vmatpush1.bf16.msra.mxu0 %v1126
          %1360 = vmatprep.subr.bf16.mxu0 %v1135
          %1361 = vmatpush1.bf16.msra.mxu0 %v1134
          %1362 = vmatprep.subr.bf16.mxu0 %v1143
          %1363 = vmatpush1.bf16.msra.mxu0 %v1142
          %1364 = vmatprep.subr.bf16.mxu0 %v1151
          %1365 = vmatpush1.bf16.msra.mxu0 %v1150
          %1366 = vmatprep.subr.bf16.mxu0 %v1159
          %1367 = vmatpush1.bf16.msra.mxu0 %v1158
          %1368 = vmatprep.subr.bf16.mxu0 %v1167
          %1369 = vmatpush1.bf16.msra.mxu0 %v1166
          %1370 = vmatprep.subr.bf16.mxu0 %v1175
          %1371 = vmatpush1.bf16.msra.mxu0 %v1174
          %1372 = vmatprep.subr.bf16.mxu0 %v1183
          %1373 = vmatpush1.bf16.msra.mxu0 %v1182
          %1374 = vmatprep.subr.bf16.mxu0 %v1191
          %1375 = vmatpush1.bf16.msra.mxu0 %v1190
          %1376 = vmatprep.subr.bf16.mxu0 %v1199
          %1377 = vmatpush1.bf16.msra.mxu0 %v1198
          %1378 = vmatprep.subr.bf16.mxu0 %v1207
          %1379 = vmatpush1.bf16.msra.mxu0 %v1206
          %1380 = vmatprep.subr.bf16.mxu0 %v1215
          %1381 = vmatpush1.bf16.msra.mxu0 %v1214
          %1382 = vmatprep.mubr.bf16.mxu0 %v695
          %1383 = vmatmul.mubr.bf16.gmra.mrb[0].mxu0 %v694
          %v1384 = vpop.f32.mrb[0].mxu0
          %v1385 = vadd.f32 %v633, %v1384
          %v1386 = vpop.f32.mrb[0].mxu0
          %v1387 = vadd.f32 %v637, %v1386
          %v1388 = vpop.f32.mrb[0].mxu0
          %v1389 = vadd.f32 %v633, %v1388
          %v1390 = vpop.f32.mrb[0].mxu0
          %v1391 = vadd.f32 %v637, %v1390
          %1392 = vmatprep.mubr.bf16.mxu0 %v697
          %1393 = vmatmul.mubr.bf16.gmra.mrb[0].mxu0 %v696
          %v1394 = vpop.f32.mrb[0].mxu0
          %v1395 = vadd.f32 %v633, %v1394
          %v1396 = vpop.f32.mrb[0].mxu0
          %v1397 = vadd.f32 %v637, %v1396
          %v1398 = vpop.f32.mrb[0].mxu0
          %v1399 = vadd.f32 %v633, %v1398
          %v1400 = vpop.f32.mrb[0].mxu0
          %v1401 = vadd.f32 %v637, %v1400
          %1402 = vmatprep.mubr.bf16.mxu0 %v699
          %1403 = vmatmul.mubr.bf16.gmra.mrb[0].mxu0 %v698
          %v1404 = vpop.f32.mrb[0].mxu0
          %v1405 = vadd.f32 %v633, %v1404
          %v1406 = vpop.f32.mrb[0].mxu0
          %v1407 = vadd.f32 %v637, %v1406
          %v1408 = vpop.f32.mrb[0].mxu0
          %v1409 = vadd.f32 %v633, %v1408
          %v1410 = vpop.f32.mrb[0].mxu0
          %v1411 = vadd.f32 %v637, %v1410
          %1412 = vmatprep.mubr.bf16.mxu0 %v701
          %1413 = vmatmul.mubr.bf16.gmra.mrb[0].mxu0 %v700
          %v1414 = vpop.f32.mrb[0].mxu0
          %v1415 = vadd.f32 %v633, %v1414
          %v1416 = vpop.f32.mrb[0].mxu0
          %v1417 = vadd.f32 %v637, %v1416
          %v1418 = vpop.f32.mrb[0].mxu0
          %v1419 = vadd.f32 %v633, %v1418
          %v1420 = vpop.f32.mrb[0].mxu0
          %v1421 = vadd.f32 %v637, %v1420
          %1422 = vdwg.mxu0
          %1423 = vmatprep.subr.bf16.mxu0 %v1097
          %1424 = vmatpush1.bf16.msra.mxu0 %v1096
          %1425 = vmatprep.subr.bf16.mxu0 %v1105
          %1426 = vmatpush1.bf16.msra.mxu0 %v1104
          %1427 = vmatprep.subr.bf16.mxu0 %v1113
          %1428 = vmatpush1.bf16.msra.mxu0 %v1112
          %1429 = vmatprep.subr.bf16.mxu0 %v1121
          %1430 = vmatpush1.bf16.msra.mxu0 %v1120
          %1431 = vmatprep.subr.bf16.mxu0 %v1129
          %1432 = vmatpush1.bf16.msra.mxu0 %v1128
          %1433 = vmatprep.subr.bf16.mxu0 %v1137
          %1434 = vmatpush1.bf16.msra.mxu0 %v1136
          %1435 = vmatprep.subr.bf16.mxu0 %v1145
          %1436 = vmatpush1.bf16.msra.mxu0 %v1144
          %1437 = vmatprep.subr.bf16.mxu0 %v1153
          %1438 = vmatpush1.bf16.msra.mxu0 %v1152
          %1439 = vmatprep.subr.bf16.mxu0 %v1161
          %1440 = vmatpush1.bf16.msra.mxu0 %v1160
          %1441 = vmatprep.subr.bf16.mxu0 %v1169
          %1442 = vmatpush1.bf16.msra.mxu0 %v1168
          %1443 = vmatprep.subr.bf16.mxu0 %v1177
          %1444 = vmatpush1.bf16.msra.mxu0 %v1176
          %1445 = vmatprep.subr.bf16.mxu0 %v1185
          %1446 = vmatpush1.bf16.msra.mxu0 %v1184
          %1447 = vmatprep.subr.bf16.mxu0 %v1193
          %1448 = vmatpush1.bf16.msra.mxu0 %v1192
          %1449 = vmatprep.subr.bf16.mxu0 %v1201
          %1450 = vmatpush1.bf16.msra.mxu0 %v1200
          %1451 = vmatprep.subr.bf16.mxu0 %v1209
          %1452 = vmatpush1.bf16.msra.mxu0 %v1208
          %1453 = vmatprep.subr.bf16.mxu0 %v1217
          %1454 = vmatpush1.bf16.msra.mxu0 %v1216
          %1455 = vmatprep.mubr.bf16.mxu0 %v695
          %1456 = vmatmul.mubr.bf16.gmra.mrb[0].mxu0 %v694
          %v1457 = vpop.f32.mrb[0].mxu0
          %v1458 = vadd.f32 %v641, %v1457
          %v1459 = vpop.f32.mrb[0].mxu0
          %v1460 = vadd.f32 %v645, %v1459
          %v1461 = vpop.f32.mrb[0].mxu0
          %v1462 = vadd.f32 %v641, %v1461
          %v1463 = vpop.f32.mrb[0].mxu0
          %v1464 = vadd.f32 %v645, %v1463
          %1465 = vmatprep.mubr.bf16.mxu0 %v697
          %1466 = vmatmul.mubr.bf16.gmra.mrb[0].mxu0 %v696
          %v1467 = vpop.f32.mrb[0].mxu0
          %v1468 = vadd.f32 %v641, %v1467
          %v1469 = vpop.f32.mrb[0].mxu0
          %v1470 = vadd.f32 %v645, %v1469
          %v1471 = vpop.f32.mrb[0].mxu0
          %v1472 = vadd.f32 %v641, %v1471
          %v1473 = vpop.f32.mrb[0].mxu0
          %v1474 = vadd.f32 %v645, %v1473
          %1475 = vmatprep.mubr.bf16.mxu0 %v699
          %1476 = vmatmul.mubr.bf16.gmra.mrb[0].mxu0 %v698
          %v1477 = vpop.f32.mrb[0].mxu0
          %v1478 = vadd.f32 %v641, %v1477
          %v1479 = vpop.f32.mrb[0].mxu0
          %v1480 = vadd.f32 %v645, %v1479
          %v1481 = vpop.f32.mrb[0].mxu0
          %v1482 = vadd.f32 %v641, %v1481
          %v1483 = vpop.f32.mrb[0].mxu0
          %v1484 = vadd.f32 %v645, %v1483
          %1485 = vmatprep.mubr.bf16.mxu0 %v701
          %1486 = vmatmul.mubr.bf16.gmra.mrb[0].mxu0 %v700
          %v1487 = vpop.f32.mrb[0].mxu0
          %v1488 = vadd.f32 %v641, %v1487
          %v1489 = vpop.f32.mrb[0].mxu0
          %v1490 = vadd.f32 %v645, %v1489
          %v1491 = vpop.f32.mrb[0].mxu0
          %v1492 = vadd.f32 %v641, %v1491
          %v1493 = vpop.f32.mrb[0].mxu0
          %v1494 = vadd.f32 %v645, %v1493
          %1495 = vdwg.mxu0
          %1496 = vmatprep.subr.bf16.mxu0 %v1099
          %1497 = vmatpush1.bf16.msra.mxu0 %v1098
          %1498 = vmatprep.subr.bf16.mxu0 %v1107
          %1499 = vmatpush1.bf16.msra.mxu0 %v1106
          %1500 = vmatprep.subr.bf16.mxu0 %v1115
          %1501 = vmatpush1.bf16.msra.mxu0 %v1114
          %1502 = vmatprep.subr.bf16.mxu0 %v1123
          %1503 = vmatpush1.bf16.msra.mxu0 %v1122
          %1504 = vmatprep.subr.bf16.mxu0 %v1131
          %1505 = vmatpush1.bf16.msra.mxu0 %v1130
          %1506 = vmatprep.subr.bf16.mxu0 %v1139
          %1507 = vmatpush1.bf16.msra.mxu0 %v1138
          %1508 = vmatprep.subr.bf16.mxu0 %v1147
          %1509 = vmatpush1.bf16.msra.mxu0 %v1146
          %1510 = vmatprep.subr.bf16.mxu0 %v1155
          %1511 = vmatpush1.bf16.msra.mxu0 %v1154
          %1512 = vmatprep.subr.bf16.mxu0 %v1163
          %1513 = vmatpush1.bf16.msra.mxu0 %v1162
          %1514 = vmatprep.subr.bf16.mxu0 %v1171
          %1515 = vmatpush1.bf16.msra.mxu0 %v1170
          %1516 = vmatprep.subr.bf16.mxu0 %v1179
          %1517 = vmatpush1.bf16.msra.mxu0 %v1178
          %1518 = vmatprep.subr.bf16.mxu0 %v1187
          %1519 = vmatpush1.bf16.msra.mxu0 %v1186
          %1520 = vmatprep.subr.bf16.mxu0 %v1195
          %1521 = vmatpush1.bf16.msra.mxu0 %v1194
          %1522 = vmatprep.subr.bf16.mxu0 %v1203
          %1523 = vmatpush1.bf16.msra.mxu0 %v1202
          %1524 = vmatprep.subr.bf16.mxu0 %v1211
          %1525 = vmatpush1.bf16.msra.mxu0 %v1210
          %1526 = vmatprep.subr.bf16.mxu0 %v1219
          %1527 = vmatpush1.bf16.msra.mxu0 %v1218
          %1528 = vmatprep.mubr.bf16.mxu0 %v695
          %1529 = vmatmul.mubr.bf16.gmra.mrb[0].mxu0 %v694
          %v1530 = vpop.f32.mrb[0].mxu0
          %v1531 = vadd.f32 %v649, %v1530
          %v1532 = vpop.f32.mrb[0].mxu0
          %v1533 = vadd.f32 %v653, %v1532
          %v1534 = vpop.f32.mrb[0].mxu0
          %v1535 = vadd.f32 %v649, %v1534
          %v1536 = vpop.f32.mrb[0].mxu0
          %v1537 = vadd.f32 %v653, %v1536
          %1538 = vmatprep.mubr.bf16.mxu0 %v697
          %1539 = vmatmul.mubr.bf16.gmra.mrb[0].mxu0 %v696
          %v1540 = vpop.f32.mrb[0].mxu0
          %v1541 = vadd.f32 %v649, %v1540
          %v1542 = vpop.f32.mrb[0].mxu0
          %v1543 = vadd.f32 %v653, %v1542
          %v1544 = vpop.f32.mrb[0].mxu0
          %v1545 = vadd.f32 %v649, %v1544
          %v1546 = vpop.f32.mrb[0].mxu0
          %v1547 = vadd.f32 %v653, %v1546
          %1548 = vmatprep.mubr.bf16.mxu0 %v699
          %1549 = vmatmul.mubr.bf16.gmra.mrb[0].mxu0 %v698
          %v1550 = vpop.f32.mrb[0].mxu0
          %v1551 = vadd.f32 %v649, %v1550
          %v1552 = vpop.f32.mrb[0].mxu0
          %v1553 = vadd.f32 %v653, %v1552
          %v1554 = vpop.f32.mrb[0].mxu0
          %v1555 = vadd.f32 %v649, %v1554
          %v1556 = vpop.f32.mrb[0].mxu0
          %v1557 = vadd.f32 %v653, %v1556
          %1558 = vmatprep.mubr.bf16.mxu0 %v701
          %1559 = vmatmul.mubr.bf16.gmra.mrb[0].mxu0 %v700
          %v1560 = vpop.f32.mrb[0].mxu0
          %v1561 = vadd.f32 %v649, %v1560
          %v1562 = vpop.f32.mrb[0].mxu0
          %v1563 = vadd.f32 %v653, %v1562
          %v1564 = vpop.f32.mrb[0].mxu0
          %v1565 = vadd.f32 %v649, %v1564
          %v1566 = vpop.f32.mrb[0].mxu0
          %v1567 = vadd.f32 %v653, %v1566
          %1568 = vdwg.mxu0
          %1569 = vmatprep.subr.bf16.mxu0 %v1101
          %1570 = vmatpush1.bf16.msra.mxu0 %v1100
          %1571 = vmatprep.subr.bf16.mxu0 %v1109
          %1572 = vmatpush1.bf16.msra.mxu0 %v1108
          %1573 = vmatprep.subr.bf16.mxu0 %v1117
          %1574 = vmatpush1.bf16.msra.mxu0 %v1116
          %1575 = vmatprep.subr.bf16.mxu0 %v1125
          %1576 = vmatpush1.bf16.msra.mxu0 %v1124
          %1577 = vmatprep.subr.bf16.mxu0 %v1133
          %1578 = vmatpush1.bf16.msra.mxu0 %v1132
          %1579 = vmatprep.subr.bf16.mxu0 %v1141
          %1580 = vmatpush1.bf16.msra.mxu0 %v1140
          %1581 = vmatprep.subr.bf16.mxu0 %v1149
          %1582 = vmatpush1.bf16.msra.mxu0 %v1148
          %1583 = vmatprep.subr.bf16.mxu0 %v1157
          %1584 = vmatpush1.bf16.msra.mxu0 %v1156
          %1585 = vmatprep.subr.bf16.mxu0 %v1165
          %1586 = vmatpush1.bf16.msra.mxu0 %v1164
          %1587 = vmatprep.subr.bf16.mxu0 %v1173
          %1588 = vmatpush1.bf16.msra.mxu0 %v1172
          %1589 = vmatprep.subr.bf16.mxu0 %v1181
          %1590 = vmatpush1.bf16.msra.mxu0 %v1180
          %1591 = vmatprep.subr.bf16.mxu0 %v1189
          %1592 = vmatpush1.bf16.msra.mxu0 %v1188
          %1593 = vmatprep.subr.bf16.mxu0 %v1197
          %1594 = vmatpush1.bf16.msra.mxu0 %v1196
          %1595 = vmatprep.subr.bf16.mxu0 %v1205
          %1596 = vmatpush1.bf16.msra.mxu0 %v1204
          %1597 = vmatprep.subr.bf16.mxu0 %v1213
          %1598 = vmatpush1.bf16.msra.mxu0 %v1212
          %1599 = vmatprep.subr.bf16.mxu0 %v1221
          %1600 = vmatpush1.bf16.msra.mxu0 %v1220
          %1601 = vmatprep.mubr.bf16.mxu0 %v695
          %1602 = vmatmul.mubr.bf16.gmra.mrb[0].mxu0 %v694
          %v1603 = vpop.f32.mrb[0].mxu0
          %v1604 = vadd.f32 %v657, %v1603
          %v1605 = vpop.f32.mrb[0].mxu0
          %v1606 = vadd.f32 %v661, %v1605
          %v1607 = vpop.f32.mrb[0].mxu0
          %v1608 = vadd.f32 %v657, %v1607
          %v1609 = vpop.f32.mrb[0].mxu0
          %v1610 = vadd.f32 %v661, %v1609
          %1611 = vmatprep.mubr.bf16.mxu0 %v697
          %1612 = vmatmul.mubr.bf16.gmra.mrb[0].mxu0 %v696
          %v1613 = vpop.f32.mrb[0].mxu0
          %v1614 = vadd.f32 %v657, %v1613
          %v1615 = vpop.f32.mrb[0].mxu0
          %v1616 = vadd.f32 %v661, %v1615
          %v1617 = vpop.f32.mrb[0].mxu0
          %v1618 = vadd.f32 %v657, %v1617
          %v1619 = vpop.f32.mrb[0].mxu0
          %v1620 = vadd.f32 %v661, %v1619
          %1621 = vmatprep.mubr.bf16.mxu0 %v699
          %1622 = vmatmul.mubr.bf16.gmra.mrb[0].mxu0 %v698
          %v1623 = vpop.f32.mrb[0].mxu0
          %v1624 = vadd.f32 %v657, %v1623
          %v1625 = vpop.f32.mrb[0].mxu0
          %v1626 = vadd.f32 %v661, %v1625
          %v1627 = vpop.f32.mrb[0].mxu0
          %v1628 = vadd.f32 %v657, %v1627
          %v1629 = vpop.f32.mrb[0].mxu0
          %v1630 = vadd.f32 %v661, %v1629
          %1631 = vmatprep.mubr.bf16.mxu0 %v701
          %1632 = vmatmul.mubr.bf16.gmra.mrb[0].mxu0 %v700
          %v1633 = vpop.f32.mrb[0].mxu0
          %v1634 = vadd.f32 %v657, %v1633
          %v1635 = vpop.f32.mrb[0].mxu0
          %v1636 = vadd.f32 %v661, %v1635
          %v1637 = vpop.f32.mrb[0].mxu0
          %v1638 = vadd.f32 %v657, %v1637
          %v1639 = vpop.f32.mrb[0].mxu0
          %v1640 = vadd.f32 %v661, %v1639
          %1641 = vdwg.mxu0
          %1642 = vst [vmem:[#allocation3] sm:$0xff] %v1385
          %1643 = vst [vmem:[#allocation3 + $0x8] sm:$0xff] %v1387
          %1644 = vst [vmem:[#allocation3 + $0x10] sm:$0xff] %v1458
          %1645 = vst [vmem:[#allocation3 + $0x18] sm:$0xff] %v1460
          %1646 = vst [vmem:[#allocation3 + $0x20] sm:$0xff] %v1531
          %1647 = vst [vmem:[#allocation3 + $0x28] sm:$0xff] %v1533
          %1648 = vst [vmem:[#allocation3 + $0x30] sm:$0xff] %v1604
          %1649 = vst [vmem:[#allocation3 + $0x38] sm:$0xff] %v1606
          %1650 = vst [vmem:[#allocation3 + $0x40] sm:$0xff] %v1389
          %1651 = vst [vmem:[#allocation3 + $0x48] sm:$0xff] %v1391
          %1652 = vst [vmem:[#allocation3 + $0x50] sm:$0xff] %v1462
          %1653 = vst [vmem:[#allocation3 + $0x58] sm:$0xff] %v1464
          %1654 = vst [vmem:[#allocation3 + $0x60] sm:$0xff] %v1535
          %1655 = vst [vmem:[#allocation3 + $0x68] sm:$0xff] %v1537
          %1656 = vst [vmem:[#allocation3 + $0x70] sm:$0xff] %v1608
          %1657 = vst [vmem:[#allocation3 + $0x78] sm:$0xff] %v1610
          %1658 = vst [vmem:[#allocation3 + $0x80] sm:$0xff] %v1395
          %1659 = vst [vmem:[#allocation3 + $0x88] sm:$0xff] %v1397
          %1660 = vst [vmem:[#allocation3 + $0x90] sm:$0xff] %v1468
          %1661 = vst [vmem:[#allocation3 + $0x98] sm:$0xff] %v1470
          %1662 = vst [vmem:[#allocation3 + $0xa0] sm:$0xff] %v1541
          %1663 = vst [vmem:[#allocation3 + $0xa8] sm:$0xff] %v1543
          %1664 = vst [vmem:[#allocation3 + $0xb0] sm:$0xff] %v1614
          %1665 = vst [vmem:[#allocation3 + $0xb8] sm:$0xff] %v1616
          %1666 = vst [vmem:[#allocation3 + $0xc0] sm:$0xff] %v1399
          %1667 = vst [vmem:[#allocation3 + $0xc8] sm:$0xff] %v1401
          %1668 = vst [vmem:[#allocation3 + $0xd0] sm:$0xff] %v1472
          %1669 = vst [vmem:[#allocation3 + $0xd8] sm:$0xff] %v1474
          %1670 = vst [vmem:[#allocation3 + $0xe0] sm:$0xff] %v1545
          %1671 = vst [vmem:[#allocation3 + $0xe8] sm:$0xff] %v1547
          %1672 = vst [vmem:[#allocation3 + $0xf0] sm:$0xff] %v1618
          %1673 = vst [vmem:[#allocation3 + $0xf8] sm:$0xff] %v1620
          %1674 = vst [vmem:[#allocation3 + $0x100] sm:$0xff] %v1405
          %1675 = vst [vmem:[#allocation3 + $0x108] sm:$0xff] %v1407
          %1676 = vst [vmem:[#allocation3 + $0x110] sm:$0xff] %v1478
          %1677 = vst [vmem:[#allocation3 + $0x118] sm:$0xff] %v1480
          %1678 = vst [vmem:[#allocation3 + $0x120] sm:$0xff] %v1551
          %1679 = vst [vmem:[#allocation3 + $0x128] sm:$0xff] %v1553
          %1680 = vst [vmem:[#allocation3 + $0x130] sm:$0xff] %v1624
          %1681 = vst [vmem:[#allocation3 + $0x138] sm:$0xff] %v1626
          %1682 = vst [vmem:[#allocation3 + $0x140] sm:$0xff] %v1409
          %1683 = vst [vmem:[#allocation3 + $0x148] sm:$0xff] %v1411
          %1684 = vst [vmem:[#allocation3 + $0x150] sm:$0xff] %v1482
          %1685 = vst [vmem:[#allocation3 + $0x158] sm:$0xff] %v1484
          %1686 = vst [vmem:[#allocation3 + $0x160] sm:$0xff] %v1555
          %1687 = vst [vmem:[#allocation3 + $0x168] sm:$0xff] %v1557
          %1688 = vst [vmem:[#allocation3 + $0x170] sm:$0xff] %v1628
          %1689 = vst [vmem:[#allocation3 + $0x178] sm:$0xff] %v1630
          %1690 = vst [vmem:[#allocation3 + $0x180] sm:$0xff] %v1415
          %1691 = vst [vmem:[#allocation3 + $0x188] sm:$0xff] %v1417
          %1692 = vst [vmem:[#allocation3 + $0x190] sm:$0xff] %v1488
          %1693 = vst [vmem:[#allocation3 + $0x198] sm:$0xff] %v1490
          %1694 = vst [vmem:[#allocation3 + $0x1a0] sm:$0xff] %v1561
          %1695 = vst [vmem:[#allocation3 + $0x1a8] sm:$0xff] %v1563
          %1696 = vst [vmem:[#allocation3 + $0x1b0] sm:$0xff] %v1634
          %1697 = vst [vmem:[#allocation3 + $0x1b8] sm:$0xff] %v1636
          %1698 = vst [vmem:[#allocation3 + $0x1c0] sm:$0xff] %v1419
          %1699 = vst [vmem:[#allocation3 + $0x1c8] sm:$0xff] %v1421
          %1700 = vst [vmem:[#allocation3 + $0x1d0] sm:$0xff] %v1492
          %1701 = vst [vmem:[#allocation3 + $0x1d8] sm:$0xff] %v1494
          %1702 = vst [vmem:[#allocation3 + $0x1e0] sm:$0xff] %v1565
          %1703 = vst [vmem:[#allocation3 + $0x1e8] sm:$0xff] %v1567
          %1704 = vst [vmem:[#allocation3 + $0x1f0] sm:$0xff] %v1638
          %1705 = vst [vmem:[#allocation3 + $0x1f8] sm:$0xff] %v1640
        $region68: #{lstm_model_forward.1} parent=43 // pred_fallthru
          _
        %p1706 = scmp.gt.s32.totalorder %s24, 0
        // Predicated region
        $region69: #{lstm_model_forward.1} parent=43 // pred_check
          %p1707 = pneg %p1706
        $region70: #{lstm_model_forward.1} parent=43 // pred_check_branch
          %1709 = sbr.rel (%p1707) target = $region72
        $region71: #{lstm_model_forward.1} parent=43 // pred_region
          %v1710 = vld [vmem:[#allocation2] sm:$0xff]
          %v1711 = vld [vmem:[#allocation2 + $0x8] sm:$0xff]
          %v1712 = vld [vmem:[#allocation2 + $0x10] sm:$0xff]
          %v1713 = vld [vmem:[#allocation2 + $0x18] sm:$0xff]
          %v1714 = vld [vmem:[#allocation2 + $0x20] sm:$0xff]
          %v1715 = vld [vmem:[#allocation2 + $0x28] sm:$0xff]
          %v1716 = vld [vmem:[#allocation2 + $0x30] sm:$0xff]
          %v1717 = vld [vmem:[#allocation2 + $0x38] sm:$0xff]
          %v1718 = vld [vmem:[#allocation2 + $0x40] sm:$0xff]
          %v1719 = vld [vmem:[#allocation2 + $0x48] sm:$0xff]
          %v1720 = vld [vmem:[#allocation2 + $0x50] sm:$0xff]
          %v1721 = vld [vmem:[#allocation2 + $0x58] sm:$0xff]
          %v1722 = vld [vmem:[#allocation2 + $0x60] sm:$0xff]
          %v1723 = vld [vmem:[#allocation2 + $0x68] sm:$0xff]
          %v1724 = vld [vmem:[#allocation2 + $0x70] sm:$0xff]
          %v1725 = vld [vmem:[#allocation2 + $0x78] sm:$0xff]
          %v1726 = vpack.c.bf16 %v1712, %v1710
          %v1727 = vpack.c.bf16 %v1713, %v1711
          %v1728 = vpack.c.bf16 %v1716, %v1714
          %v1729 = vpack.c.bf16 %v1717, %v1715
          %v1730 = vpack.c.bf16 %v1720, %v1718
          %v1731 = vpack.c.bf16 %v1721, %v1719
          %v1732 = vpack.c.bf16 %v1724, %v1722
          %v1733 = vpack.c.bf16 %v1725, %v1723
          %v1735 = vlaneseq
          %v1736 = vshrl.u32 %v1735, 7
          %v1737 = vsub.s32 0, %v1736
          %v1738 = vrot.slane %v616, %v1737
          %v1739 = vlaneseq
          %v1740 = vshrl.u32 %v1739, 7
          %v1741 = vsub.s32 1, %v1740
          %v1742 = vrot.slane %v616, %v1741
          %v1743 = vlaneseq
          %v1744 = vshrl.u32 %v1743, 7
          %v1745 = vsub.s32 2, %v1744
          %v1746 = vrot.slane %v616, %v1745
          %v1747 = vlaneseq
          %v1748 = vshrl.u32 %v1747, 7
          %v1749 = vsub.s32 3, %v1748
          %v1750 = vrot.slane %v616, %v1749
          %v1751 = vlaneseq
          %v1752 = vshrl.u32 %v1751, 7
          %v1753 = vsub.s32 4, %v1752
          %v1754 = vrot.slane %v616, %v1753
          %v1755 = vlaneseq
          %v1756 = vshrl.u32 %v1755, 7
          %v1757 = vsub.s32 5, %v1756
          %v1758 = vrot.slane %v616, %v1757
          %v1759 = vlaneseq
          %v1760 = vshrl.u32 %v1759, 7
          %v1761 = vsub.s32 6, %v1760
          %v1762 = vrot.slane %v616, %v1761
          %v1763 = vlaneseq
          %v1764 = vshrl.u32 %v1763, 7
          %v1765 = vsub.s32 7, %v1764
          %v1766 = vrot.slane %v616, %v1765
          %v1903 = vunpack.c.l.b16 %v360
          %v1904 = vunpack.c.h.b16 %v360
          %v1905 = vunpack.c.l.b16 %v361
          %v1906 = vunpack.c.h.b16 %v361
          %v1907 = vunpack.c.l.b16 %v362
          %v1908 = vunpack.c.h.b16 %v362
          %v1909 = vunpack.c.l.b16 %v363
          %v1910 = vunpack.c.h.b16 %v363
          %v1911 = vunpack.c.l.b16 %v364
          %v1912 = vunpack.c.h.b16 %v364
          %v1913 = vunpack.c.l.b16 %v365
          %v1914 = vunpack.c.h.b16 %v365
          %v1915 = vunpack.c.l.b16 %v366
          %v1916 = vunpack.c.h.b16 %v366
          %v1917 = vunpack.c.l.b16 %v367
          %v1918 = vunpack.c.h.b16 %v367
          %v1919 = vunpack.c.l.b16 %v368
          %v1920 = vunpack.c.h.b16 %v368
          %v1921 = vunpack.c.l.b16 %v369
          %v1922 = vunpack.c.h.b16 %v369
          %v1923 = vunpack.c.l.b16 %v370
          %v1924 = vunpack.c.h.b16 %v370
          %v1925 = vunpack.c.l.b16 %v371
          %v1926 = vunpack.c.h.b16 %v371
          %v1927 = vunpack.c.l.b16 %v372
          %v1928 = vunpack.c.h.b16 %v372
          %v1929 = vunpack.c.l.b16 %v373
          %v1930 = vunpack.c.h.b16 %v373
          %v1931 = vunpack.c.l.b16 %v374
          %v1932 = vunpack.c.h.b16 %v374
          %v1933 = vunpack.c.l.b16 %v375
          %v1934 = vunpack.c.h.b16 %v375
          %v1935 = vunpack.c.l.b16 %v376
          %v1936 = vunpack.c.h.b16 %v376
          %v1937 = vunpack.c.l.b16 %v377
          %v1938 = vunpack.c.h.b16 %v377
          %v1939 = vunpack.c.l.b16 %v378
          %v1940 = vunpack.c.h.b16 %v378
          %v1941 = vunpack.c.l.b16 %v379
          %v1942 = vunpack.c.h.b16 %v379
          %v1943 = vunpack.c.l.b16 %v380
          %v1944 = vunpack.c.h.b16 %v380
          %v1945 = vunpack.c.l.b16 %v381
          %v1946 = vunpack.c.h.b16 %v381
          %v1947 = vunpack.c.l.b16 %v382
          %v1948 = vunpack.c.h.b16 %v382
          %v1949 = vunpack.c.l.b16 %v383
          %v1950 = vunpack.c.h.b16 %v383
          %v1951 = vunpack.c.l.b16 %v384
          %v1952 = vunpack.c.h.b16 %v384
          %v1953 = vunpack.c.l.b16 %v385
          %v1954 = vunpack.c.h.b16 %v385
          %v1955 = vunpack.c.l.b16 %v386
          %v1956 = vunpack.c.h.b16 %v386
          %v1957 = vunpack.c.l.b16 %v387
          %v1958 = vunpack.c.h.b16 %v387
          %v1959 = vunpack.c.l.b16 %v388
          %v1960 = vunpack.c.h.b16 %v388
          %v1961 = vunpack.c.l.b16 %v389
          %v1962 = vunpack.c.h.b16 %v389
          %v1963 = vunpack.c.l.b16 %v390
          %v1964 = vunpack.c.h.b16 %v390
          %v1965 = vunpack.c.l.b16 %v391
          %v1966 = vunpack.c.h.b16 %v391
          %v1967 = vunpack.c.l.b16 %v392
          %v1968 = vunpack.c.h.b16 %v392
          %v1969 = vunpack.c.l.b16 %v393
          %v1970 = vunpack.c.h.b16 %v393
          %v1971 = vunpack.c.l.b16 %v394
          %v1972 = vunpack.c.h.b16 %v394
          %v1973 = vunpack.c.l.b16 %v395
          %v1974 = vunpack.c.h.b16 %v395
          %v1975 = vunpack.c.l.b16 %v396
          %v1976 = vunpack.c.h.b16 %v396
          %v1977 = vunpack.c.l.b16 %v397
          %v1978 = vunpack.c.h.b16 %v397
          %v1979 = vunpack.c.l.b16 %v398
          %v1980 = vunpack.c.h.b16 %v398
          %v1981 = vunpack.c.l.b16 %v399
          %v1982 = vunpack.c.h.b16 %v399
          %v1983 = vunpack.c.l.b16 %v400
          %v1984 = vunpack.c.h.b16 %v400
          %v1985 = vunpack.c.l.b16 %v401
          %v1986 = vunpack.c.h.b16 %v401
          %v1987 = vunpack.c.l.b16 %v402
          %v1988 = vunpack.c.h.b16 %v402
          %v1989 = vunpack.c.l.b16 %v403
          %v1990 = vunpack.c.h.b16 %v403
          %v1991 = vunpack.c.l.b16 %v404
          %v1992 = vunpack.c.h.b16 %v404
          %v1993 = vunpack.c.l.b16 %v405
          %v1994 = vunpack.c.h.b16 %v405
          %v1995 = vunpack.c.l.b16 %v406
          %v1996 = vunpack.c.h.b16 %v406
          %v1997 = vunpack.c.l.b16 %v407
          %v1998 = vunpack.c.h.b16 %v407
          %v1999 = vunpack.c.l.b16 %v408
          %v2000 = vunpack.c.h.b16 %v408
          %v2001 = vunpack.c.l.b16 %v409
          %v2002 = vunpack.c.h.b16 %v409
          %v2003 = vunpack.c.l.b16 %v410
          %v2004 = vunpack.c.h.b16 %v410
          %v2005 = vunpack.c.l.b16 %v411
          %v2006 = vunpack.c.h.b16 %v411
          %v2007 = vunpack.c.l.b16 %v412
          %v2008 = vunpack.c.h.b16 %v412
          %v2009 = vunpack.c.l.b16 %v413
          %v2010 = vunpack.c.h.b16 %v413
          %v2011 = vunpack.c.l.b16 %v414
          %v2012 = vunpack.c.h.b16 %v414
          %v2013 = vunpack.c.l.b16 %v415
          %v2014 = vunpack.c.h.b16 %v415
          %v2015 = vunpack.c.l.b16 %v416
          %v2016 = vunpack.c.h.b16 %v416
          %v2017 = vunpack.c.l.b16 %v417
          %v2018 = vunpack.c.h.b16 %v417
          %v2019 = vunpack.c.l.b16 %v418
          %v2020 = vunpack.c.h.b16 %v418
          %v2021 = vunpack.c.l.b16 %v419
          %v2022 = vunpack.c.h.b16 %v419
          %v2023 = vunpack.c.l.b16 %v420
          %v2024 = vunpack.c.h.b16 %v420
          %v2025 = vunpack.c.l.b16 %v421
          %v2026 = vunpack.c.h.b16 %v421
          %v2027 = vunpack.c.l.b16 %v422
          %v2028 = vunpack.c.h.b16 %v422
          %v2029 = vunpack.c.l.b16 %v423
          %v2030 = vunpack.c.h.b16 %v423
          %v2031 = vunpack.c.l.b16 %v424
          %v2032 = vunpack.c.h.b16 %v424
          %v2033 = vunpack.c.l.b16 %v425
          %v2034 = vunpack.c.h.b16 %v425
          %v2035 = vunpack.c.l.b16 %v426
          %v2036 = vunpack.c.h.b16 %v426
          %v2037 = vunpack.c.l.b16 %v427
          %v2038 = vunpack.c.h.b16 %v427
          %v2039 = vunpack.c.l.b16 %v428
          %v2040 = vunpack.c.h.b16 %v428
          %v2041 = vunpack.c.l.b16 %v429
          %v2042 = vunpack.c.h.b16 %v429
          %v2043 = vunpack.c.l.b16 %v430
          %v2044 = vunpack.c.h.b16 %v430
          %v2045 = vunpack.c.l.b16 %v431
          %v2046 = vunpack.c.h.b16 %v431
          %v2047 = vunpack.c.l.b16 %v432
          %v2048 = vunpack.c.h.b16 %v432
          %v2049 = vunpack.c.l.b16 %v433
          %v2050 = vunpack.c.h.b16 %v433
          %v2051 = vunpack.c.l.b16 %v434
          %v2052 = vunpack.c.h.b16 %v434
          %v2053 = vunpack.c.l.b16 %v435
          %v2054 = vunpack.c.h.b16 %v435
          %v2055 = vunpack.c.l.b16 %v436
          %v2056 = vunpack.c.h.b16 %v436
          %v2057 = vunpack.c.l.b16 %v437
          %v2058 = vunpack.c.h.b16 %v437
          %v2059 = vunpack.c.l.b16 %v438
          %v2060 = vunpack.c.h.b16 %v438
          %v2061 = vunpack.c.l.b16 %v439
          %v2062 = vunpack.c.h.b16 %v439
          %v2063 = vunpack.c.l.b16 %v440
          %v2064 = vunpack.c.h.b16 %v440
          %v2065 = vunpack.c.l.b16 %v441
          %v2066 = vunpack.c.h.b16 %v441
          %v2067 = vunpack.c.l.b16 %v442
          %v2068 = vunpack.c.h.b16 %v442
          %v2069 = vunpack.c.l.b16 %v443
          %v2070 = vunpack.c.h.b16 %v443
          %v2071 = vunpack.c.l.b16 %v444
          %v2072 = vunpack.c.h.b16 %v444
          %v2073 = vunpack.c.l.b16 %v445
          %v2074 = vunpack.c.h.b16 %v445
          %v2075 = vunpack.c.l.b16 %v446
          %v2076 = vunpack.c.h.b16 %v446
          %v2077 = vunpack.c.l.b16 %v447
          %v2078 = vunpack.c.h.b16 %v447
          %v2079 = vunpack.c.l.b16 %v448
          %v2080 = vunpack.c.h.b16 %v448
          %v2081 = vunpack.c.l.b16 %v449
          %v2082 = vunpack.c.h.b16 %v449
          %v2083 = vunpack.c.l.b16 %v450
          %v2084 = vunpack.c.h.b16 %v450
          %v2085 = vunpack.c.l.b16 %v451
          %v2086 = vunpack.c.h.b16 %v451
          %v2087 = vunpack.c.l.b16 %v452
          %v2088 = vunpack.c.h.b16 %v452
          %v2089 = vunpack.c.l.b16 %v453
          %v2090 = vunpack.c.h.b16 %v453
          %v2091 = vunpack.c.l.b16 %v454
          %v2092 = vunpack.c.h.b16 %v454
          %v2093 = vunpack.c.l.b16 %v455
          %v2094 = vunpack.c.h.b16 %v455
          %v2095 = vunpack.c.l.b16 %v456
          %v2096 = vunpack.c.h.b16 %v456
          %v2097 = vunpack.c.l.b16 %v457
          %v2098 = vunpack.c.h.b16 %v457
          %v2099 = vunpack.c.l.b16 %v458
          %v2100 = vunpack.c.h.b16 %v458
          %v2101 = vunpack.c.l.b16 %v459
          %v2102 = vunpack.c.h.b16 %v459
          %v2103 = vunpack.c.l.b16 %v460
          %v2104 = vunpack.c.h.b16 %v460
          %v2105 = vunpack.c.l.b16 %v461
          %v2106 = vunpack.c.h.b16 %v461
          %v2107 = vunpack.c.l.b16 %v462
          %v2108 = vunpack.c.h.b16 %v462
          %v2109 = vunpack.c.l.b16 %v463
          %v2110 = vunpack.c.h.b16 %v463
          %v2111 = vunpack.c.l.b16 %v464
          %v2112 = vunpack.c.h.b16 %v464
          %v2113 = vunpack.c.l.b16 %v465
          %v2114 = vunpack.c.h.b16 %v465
          %v2115 = vunpack.c.l.b16 %v466
          %v2116 = vunpack.c.h.b16 %v466
          %v2117 = vunpack.c.l.b16 %v467
          %v2118 = vunpack.c.h.b16 %v467
          %v2119 = vunpack.c.l.b16 %v468
          %v2120 = vunpack.c.h.b16 %v468
          %v2121 = vunpack.c.l.b16 %v469
          %v2122 = vunpack.c.h.b16 %v469
          %v2123 = vunpack.c.l.b16 %v470
          %v2124 = vunpack.c.h.b16 %v470
          %v2125 = vunpack.c.l.b16 %v471
          %v2126 = vunpack.c.h.b16 %v471
          %v2127 = vunpack.c.l.b16 %v472
          %v2128 = vunpack.c.h.b16 %v472
          %v2129 = vunpack.c.l.b16 %v473
          %v2130 = vunpack.c.h.b16 %v473
          %v2131 = vunpack.c.l.b16 %v474
          %v2132 = vunpack.c.h.b16 %v474
          %v2133 = vunpack.c.l.b16 %v475
          %v2134 = vunpack.c.h.b16 %v475
          %v2135 = vunpack.c.l.b16 %v476
          %v2136 = vunpack.c.h.b16 %v476
          %v2137 = vunpack.c.l.b16 %v477
          %v2138 = vunpack.c.h.b16 %v477
          %v2139 = vunpack.c.l.b16 %v478
          %v2140 = vunpack.c.h.b16 %v478
          %v2141 = vunpack.c.l.b16 %v479
          %v2142 = vunpack.c.h.b16 %v479
          %v2143 = vunpack.c.l.b16 %v480
          %v2144 = vunpack.c.h.b16 %v480
          %v2145 = vunpack.c.l.b16 %v481
          %v2146 = vunpack.c.h.b16 %v481
          %v2147 = vunpack.c.l.b16 %v482
          %v2148 = vunpack.c.h.b16 %v482
          %v2149 = vunpack.c.l.b16 %v483
          %v2150 = vunpack.c.h.b16 %v483
          %v2151 = vunpack.c.l.b16 %v484
          %v2152 = vunpack.c.h.b16 %v484
          %v2153 = vunpack.c.l.b16 %v485
          %v2154 = vunpack.c.h.b16 %v485
          %v2155 = vunpack.c.l.b16 %v486
          %v2156 = vunpack.c.h.b16 %v486
          %v2157 = vunpack.c.l.b16 %v487
          %v2158 = vunpack.c.h.b16 %v487
          %v2159 = vpack.c.b16 %v1911, %v1903
          %v2160 = vpack.c.b16 %v1912, %v1904
          %v2161 = vpack.c.b16 %v1913, %v1905
          %v2162 = vpack.c.b16 %v1914, %v1906
          %v2163 = vpack.c.b16 %v1915, %v1907
          %v2164 = vpack.c.b16 %v1916, %v1908
          %v2165 = vpack.c.b16 %v1917, %v1909
          %v2166 = vpack.c.b16 %v1918, %v1910
          %v2167 = vpack.c.b16 %v1927, %v1919
          %v2168 = vpack.c.b16 %v1928, %v1920
          %v2169 = vpack.c.b16 %v1929, %v1921
          %v2170 = vpack.c.b16 %v1930, %v1922
          %v2171 = vpack.c.b16 %v1931, %v1923
          %v2172 = vpack.c.b16 %v1932, %v1924
          %v2173 = vpack.c.b16 %v1933, %v1925
          %v2174 = vpack.c.b16 %v1934, %v1926
          %v2175 = vpack.c.b16 %v1943, %v1935
          %v2176 = vpack.c.b16 %v1944, %v1936
          %v2177 = vpack.c.b16 %v1945, %v1937
          %v2178 = vpack.c.b16 %v1946, %v1938
          %v2179 = vpack.c.b16 %v1947, %v1939
          %v2180 = vpack.c.b16 %v1948, %v1940
          %v2181 = vpack.c.b16 %v1949, %v1941
          %v2182 = vpack.c.b16 %v1950, %v1942
          %v2183 = vpack.c.b16 %v1959, %v1951
          %v2184 = vpack.c.b16 %v1960, %v1952
          %v2185 = vpack.c.b16 %v1961, %v1953
          %v2186 = vpack.c.b16 %v1962, %v1954
          %v2187 = vpack.c.b16 %v1963, %v1955
          %v2188 = vpack.c.b16 %v1964, %v1956
          %v2189 = vpack.c.b16 %v1965, %v1957
          %v2190 = vpack.c.b16 %v1966, %v1958
          %v2191 = vpack.c.b16 %v1975, %v1967
          %v2192 = vpack.c.b16 %v1976, %v1968
          %v2193 = vpack.c.b16 %v1977, %v1969
          %v2194 = vpack.c.b16 %v1978, %v1970
          %v2195 = vpack.c.b16 %v1979, %v1971
          %v2196 = vpack.c.b16 %v1980, %v1972
          %v2197 = vpack.c.b16 %v1981, %v1973
          %v2198 = vpack.c.b16 %v1982, %v1974
          %v2199 = vpack.c.b16 %v1991, %v1983
          %v2200 = vpack.c.b16 %v1992, %v1984
          %v2201 = vpack.c.b16 %v1993, %v1985
          %v2202 = vpack.c.b16 %v1994, %v1986
          %v2203 = vpack.c.b16 %v1995, %v1987
          %v2204 = vpack.c.b16 %v1996, %v1988
          %v2205 = vpack.c.b16 %v1997, %v1989
          %v2206 = vpack.c.b16 %v1998, %v1990
          %v2207 = vpack.c.b16 %v2007, %v1999
          %v2208 = vpack.c.b16 %v2008, %v2000
          %v2209 = vpack.c.b16 %v2009, %v2001
          %v2210 = vpack.c.b16 %v2010, %v2002
          %v2211 = vpack.c.b16 %v2011, %v2003
          %v2212 = vpack.c.b16 %v2012, %v2004
          %v2213 = vpack.c.b16 %v2013, %v2005
          %v2214 = vpack.c.b16 %v2014, %v2006
          %v2215 = vpack.c.b16 %v2023, %v2015
          %v2216 = vpack.c.b16 %v2024, %v2016
          %v2217 = vpack.c.b16 %v2025, %v2017
          %v2218 = vpack.c.b16 %v2026, %v2018
          %v2219 = vpack.c.b16 %v2027, %v2019
          %v2220 = vpack.c.b16 %v2028, %v2020
          %v2221 = vpack.c.b16 %v2029, %v2021
          %v2222 = vpack.c.b16 %v2030, %v2022
          %v2223 = vpack.c.b16 %v2039, %v2031
          %v2224 = vpack.c.b16 %v2040, %v2032
          %v2225 = vpack.c.b16 %v2041, %v2033
          %v2226 = vpack.c.b16 %v2042, %v2034
          %v2227 = vpack.c.b16 %v2043, %v2035
          %v2228 = vpack.c.b16 %v2044, %v2036
          %v2229 = vpack.c.b16 %v2045, %v2037
          %v2230 = vpack.c.b16 %v2046, %v2038
          %v2231 = vpack.c.b16 %v2055, %v2047
          %v2232 = vpack.c.b16 %v2056, %v2048
          %v2233 = vpack.c.b16 %v2057, %v2049
          %v2234 = vpack.c.b16 %v2058, %v2050
          %v2235 = vpack.c.b16 %v2059, %v2051
          %v2236 = vpack.c.b16 %v2060, %v2052
          %v2237 = vpack.c.b16 %v2061, %v2053
          %v2238 = vpack.c.b16 %v2062, %v2054
          %v2239 = vpack.c.b16 %v2071, %v2063
          %v2240 = vpack.c.b16 %v2072, %v2064
          %v2241 = vpack.c.b16 %v2073, %v2065
          %v2242 = vpack.c.b16 %v2074, %v2066
          %v2243 = vpack.c.b16 %v2075, %v2067
          %v2244 = vpack.c.b16 %v2076, %v2068
          %v2245 = vpack.c.b16 %v2077, %v2069
          %v2246 = vpack.c.b16 %v2078, %v2070
          %v2247 = vpack.c.b16 %v2087, %v2079
          %v2248 = vpack.c.b16 %v2088, %v2080
          %v2249 = vpack.c.b16 %v2089, %v2081
          %v2250 = vpack.c.b16 %v2090, %v2082
          %v2251 = vpack.c.b16 %v2091, %v2083
          %v2252 = vpack.c.b16 %v2092, %v2084
          %v2253 = vpack.c.b16 %v2093, %v2085
          %v2254 = vpack.c.b16 %v2094, %v2086
          %v2255 = vpack.c.b16 %v2103, %v2095
          %v2256 = vpack.c.b16 %v2104, %v2096
          %v2257 = vpack.c.b16 %v2105, %v2097
          %v2258 = vpack.c.b16 %v2106, %v2098
          %v2259 = vpack.c.b16 %v2107, %v2099
          %v2260 = vpack.c.b16 %v2108, %v2100
          %v2261 = vpack.c.b16 %v2109, %v2101
          %v2262 = vpack.c.b16 %v2110, %v2102
          %v2263 = vpack.c.b16 %v2119, %v2111
          %v2264 = vpack.c.b16 %v2120, %v2112
          %v2265 = vpack.c.b16 %v2121, %v2113
          %v2266 = vpack.c.b16 %v2122, %v2114
          %v2267 = vpack.c.b16 %v2123, %v2115
          %v2268 = vpack.c.b16 %v2124, %v2116
          %v2269 = vpack.c.b16 %v2125, %v2117
          %v2270 = vpack.c.b16 %v2126, %v2118
          %v2271 = vpack.c.b16 %v2135, %v2127
          %v2272 = vpack.c.b16 %v2136, %v2128
          %v2273 = vpack.c.b16 %v2137, %v2129
          %v2274 = vpack.c.b16 %v2138, %v2130
          %v2275 = vpack.c.b16 %v2139, %v2131
          %v2276 = vpack.c.b16 %v2140, %v2132
          %v2277 = vpack.c.b16 %v2141, %v2133
          %v2278 = vpack.c.b16 %v2142, %v2134
          %v2279 = vpack.c.b16 %v2151, %v2143
          %v2280 = vpack.c.b16 %v2152, %v2144
          %v2281 = vpack.c.b16 %v2153, %v2145
          %v2282 = vpack.c.b16 %v2154, %v2146
          %v2283 = vpack.c.b16 %v2155, %v2147
          %v2284 = vpack.c.b16 %v2156, %v2148
          %v2285 = vpack.c.b16 %v2157, %v2149
          %v2286 = vpack.c.b16 %v2158, %v2150
          %2415 = vmatprep.subr.bf16.mxu0 %v2160
          %2416 = vmatpush1.bf16.msra.mxu0 %v2159
          %2417 = vmatprep.subr.bf16.mxu0 %v2168
          %2418 = vmatpush1.bf16.msra.mxu0 %v2167
          %2419 = vmatprep.subr.bf16.mxu0 %v2176
          %2420 = vmatpush1.bf16.msra.mxu0 %v2175
          %2421 = vmatprep.subr.bf16.mxu0 %v2184
          %2422 = vmatpush1.bf16.msra.mxu0 %v2183
          %2423 = vmatprep.subr.bf16.mxu0 %v2192
          %2424 = vmatpush1.bf16.msra.mxu0 %v2191
          %2425 = vmatprep.subr.bf16.mxu0 %v2200
          %2426 = vmatpush1.bf16.msra.mxu0 %v2199
          %2427 = vmatprep.subr.bf16.mxu0 %v2208
          %2428 = vmatpush1.bf16.msra.mxu0 %v2207
          %2429 = vmatprep.subr.bf16.mxu0 %v2216
          %2430 = vmatpush1.bf16.msra.mxu0 %v2215
          %2431 = vmatprep.subr.bf16.mxu0 %v2224
          %2432 = vmatpush1.bf16.msra.mxu0 %v2223
          %2433 = vmatprep.subr.bf16.mxu0 %v2232
          %2434 = vmatpush1.bf16.msra.mxu0 %v2231
          %2435 = vmatprep.subr.bf16.mxu0 %v2240
          %2436 = vmatpush1.bf16.msra.mxu0 %v2239
          %2437 = vmatprep.subr.bf16.mxu0 %v2248
          %2438 = vmatpush1.bf16.msra.mxu0 %v2247
          %2439 = vmatprep.subr.bf16.mxu0 %v2256
          %2440 = vmatpush1.bf16.msra.mxu0 %v2255
          %2441 = vmatprep.subr.bf16.mxu0 %v2264
          %2442 = vmatpush1.bf16.msra.mxu0 %v2263
          %2443 = vmatprep.subr.bf16.mxu0 %v2272
          %2444 = vmatpush1.bf16.msra.mxu0 %v2271
          %2445 = vmatprep.subr.bf16.mxu0 %v2280
          %2446 = vmatpush1.bf16.msra.mxu0 %v2279
          %2447 = vmatprep.mubr.bf16.mxu0 %v1727
          %2448 = vmatmul.mubr.bf16.gmra.mrb[0].mxu0 %v1726
          %v2449 = vpop.f32.mrb[0].mxu0
          %v2450 = vadd.f32 %v1738, %v2449
          %v2451 = vpop.f32.mrb[0].mxu0
          %v2452 = vadd.f32 %v1742, %v2451
          %v2453 = vpop.f32.mrb[0].mxu0
          %v2454 = vadd.f32 %v1738, %v2453
          %v2455 = vpop.f32.mrb[0].mxu0
          %v2456 = vadd.f32 %v1742, %v2455
          %2457 = vmatprep.mubr.bf16.mxu0 %v1729
          %2458 = vmatmul.mubr.bf16.gmra.mrb[0].mxu0 %v1728
          %v2459 = vpop.f32.mrb[0].mxu0
          %v2460 = vadd.f32 %v1738, %v2459
          %v2461 = vpop.f32.mrb[0].mxu0
          %v2462 = vadd.f32 %v1742, %v2461
          %v2463 = vpop.f32.mrb[0].mxu0
          %v2464 = vadd.f32 %v1738, %v2463
          %v2465 = vpop.f32.mrb[0].mxu0
          %v2466 = vadd.f32 %v1742, %v2465
          %2467 = vmatprep.mubr.bf16.mxu0 %v1731
          %2468 = vmatmul.mubr.bf16.gmra.mrb[0].mxu0 %v1730
          %v2469 = vpop.f32.mrb[0].mxu0
          %v2470 = vadd.f32 %v1738, %v2469
          %v2471 = vpop.f32.mrb[0].mxu0
          %v2472 = vadd.f32 %v1742, %v2471
          %v2473 = vpop.f32.mrb[0].mxu0
          %v2474 = vadd.f32 %v1738, %v2473
          %v2475 = vpop.f32.mrb[0].mxu0
          %v2476 = vadd.f32 %v1742, %v2475
          %2477 = vmatprep.mubr.bf16.mxu0 %v1733
          %2478 = vmatmul.mubr.bf16.gmra.mrb[0].mxu0 %v1732
          %v2479 = vpop.f32.mrb[0].mxu0
          %v2480 = vadd.f32 %v1738, %v2479
          %v2481 = vpop.f32.mrb[0].mxu0
          %v2482 = vadd.f32 %v1742, %v2481
          %v2483 = vpop.f32.mrb[0].mxu0
          %v2484 = vadd.f32 %v1738, %v2483
          %v2485 = vpop.f32.mrb[0].mxu0
          %v2486 = vadd.f32 %v1742, %v2485
          %2487 = vdwg.mxu0
          %2488 = vmatprep.subr.bf16.mxu0 %v2162
          %2489 = vmatpush1.bf16.msra.mxu0 %v2161
          %2490 = vmatprep.subr.bf16.mxu0 %v2170
          %2491 = vmatpush1.bf16.msra.mxu0 %v2169
          %2492 = vmatprep.subr.bf16.mxu0 %v2178
          %2493 = vmatpush1.bf16.msra.mxu0 %v2177
          %2494 = vmatprep.subr.bf16.mxu0 %v2186
          %2495 = vmatpush1.bf16.msra.mxu0 %v2185
          %2496 = vmatprep.subr.bf16.mxu0 %v2194
          %2497 = vmatpush1.bf16.msra.mxu0 %v2193
          %2498 = vmatprep.subr.bf16.mxu0 %v2202
          %2499 = vmatpush1.bf16.msra.mxu0 %v2201
          %2500 = vmatprep.subr.bf16.mxu0 %v2210
          %2501 = vmatpush1.bf16.msra.mxu0 %v2209
          %2502 = vmatprep.subr.bf16.mxu0 %v2218
          %2503 = vmatpush1.bf16.msra.mxu0 %v2217
          %2504 = vmatprep.subr.bf16.mxu0 %v2226
          %2505 = vmatpush1.bf16.msra.mxu0 %v2225
          %2506 = vmatprep.subr.bf16.mxu0 %v2234
          %2507 = vmatpush1.bf16.msra.mxu0 %v2233
          %2508 = vmatprep.subr.bf16.mxu0 %v2242
          %2509 = vmatpush1.bf16.msra.mxu0 %v2241
          %2510 = vmatprep.subr.bf16.mxu0 %v2250
          %2511 = vmatpush1.bf16.msra.mxu0 %v2249
          %2512 = vmatprep.subr.bf16.mxu0 %v2258
          %2513 = vmatpush1.bf16.msra.mxu0 %v2257
          %2514 = vmatprep.subr.bf16.mxu0 %v2266
          %2515 = vmatpush1.bf16.msra.mxu0 %v2265
          %2516 = vmatprep.subr.bf16.mxu0 %v2274
          %2517 = vmatpush1.bf16.msra.mxu0 %v2273
          %2518 = vmatprep.subr.bf16.mxu0 %v2282
          %2519 = vmatpush1.bf16.msra.mxu0 %v2281
          %2520 = vmatprep.mubr.bf16.mxu0 %v1727
          %2521 = vmatmul.mubr.bf16.gmra.mrb[0].mxu0 %v1726
          %v2522 = vpop.f32.mrb[0].mxu0
          %v2523 = vadd.f32 %v1746, %v2522
          %v2524 = vpop.f32.mrb[0].mxu0
          %v2525 = vadd.f32 %v1750, %v2524
          %v2526 = vpop.f32.mrb[0].mxu0
          %v2527 = vadd.f32 %v1746, %v2526
          %v2528 = vpop.f32.mrb[0].mxu0
          %v2529 = vadd.f32 %v1750, %v2528
          %2530 = vmatprep.mubr.bf16.mxu0 %v1729
          %2531 = vmatmul.mubr.bf16.gmra.mrb[0].mxu0 %v1728
          %v2532 = vpop.f32.mrb[0].mxu0
          %v2533 = vadd.f32 %v1746, %v2532
          %v2534 = vpop.f32.mrb[0].mxu0
          %v2535 = vadd.f32 %v1750, %v2534
          %v2536 = vpop.f32.mrb[0].mxu0
          %v2537 = vadd.f32 %v1746, %v2536
          %v2538 = vpop.f32.mrb[0].mxu0
          %v2539 = vadd.f32 %v1750, %v2538
          %2540 = vmatprep.mubr.bf16.mxu0 %v1731
          %2541 = vmatmul.mubr.bf16.gmra.mrb[0].mxu0 %v1730
          %v2542 = vpop.f32.mrb[0].mxu0
          %v2543 = vadd.f32 %v1746, %v2542
          %v2544 = vpop.f32.mrb[0].mxu0
          %v2545 = vadd.f32 %v1750, %v2544
          %v2546 = vpop.f32.mrb[0].mxu0
          %v2547 = vadd.f32 %v1746, %v2546
          %v2548 = vpop.f32.mrb[0].mxu0
          %v2549 = vadd.f32 %v1750, %v2548
          %2550 = vmatprep.mubr.bf16.mxu0 %v1733
          %2551 = vmatmul.mubr.bf16.gmra.mrb[0].mxu0 %v1732
          %v2552 = vpop.f32.mrb[0].mxu0
          %v2553 = vadd.f32 %v1746, %v2552
          %v2554 = vpop.f32.mrb[0].mxu0
          %v2555 = vadd.f32 %v1750, %v2554
          %v2556 = vpop.f32.mrb[0].mxu0
          %v2557 = vadd.f32 %v1746, %v2556
          %v2558 = vpop.f32.mrb[0].mxu0
          %v2559 = vadd.f32 %v1750, %v2558
          %2560 = vdwg.mxu0
          %2561 = vmatprep.subr.bf16.mxu0 %v2164
          %2562 = vmatpush1.bf16.msra.mxu0 %v2163
          %2563 = vmatprep.subr.bf16.mxu0 %v2172
          %2564 = vmatpush1.bf16.msra.mxu0 %v2171
          %2565 = vmatprep.subr.bf16.mxu0 %v2180
          %2566 = vmatpush1.bf16.msra.mxu0 %v2179
          %2567 = vmatprep.subr.bf16.mxu0 %v2188
          %2568 = vmatpush1.bf16.msra.mxu0 %v2187
          %2569 = vmatprep.subr.bf16.mxu0 %v2196
          %2570 = vmatpush1.bf16.msra.mxu0 %v2195
          %2571 = vmatprep.subr.bf16.mxu0 %v2204
          %2572 = vmatpush1.bf16.msra.mxu0 %v2203
          %2573 = vmatprep.subr.bf16.mxu0 %v2212
          %2574 = vmatpush1.bf16.msra.mxu0 %v2211
          %2575 = vmatprep.subr.bf16.mxu0 %v2220
          %2576 = vmatpush1.bf16.msra.mxu0 %v2219
          %2577 = vmatprep.subr.bf16.mxu0 %v2228
          %2578 = vmatpush1.bf16.msra.mxu0 %v2227
          %2579 = vmatprep.subr.bf16.mxu0 %v2236
          %2580 = vmatpush1.bf16.msra.mxu0 %v2235
          %2581 = vmatprep.subr.bf16.mxu0 %v2244
          %2582 = vmatpush1.bf16.msra.mxu0 %v2243
          %2583 = vmatprep.subr.bf16.mxu0 %v2252
          %2584 = vmatpush1.bf16.msra.mxu0 %v2251
          %2585 = vmatprep.subr.bf16.mxu0 %v2260
          %2586 = vmatpush1.bf16.msra.mxu0 %v2259
          %2587 = vmatprep.subr.bf16.mxu0 %v2268
          %2588 = vmatpush1.bf16.msra.mxu0 %v2267
          %2589 = vmatprep.subr.bf16.mxu0 %v2276
          %2590 = vmatpush1.bf16.msra.mxu0 %v2275
          %2591 = vmatprep.subr.bf16.mxu0 %v2284
          %2592 = vmatpush1.bf16.msra.mxu0 %v2283
          %2593 = vmatprep.mubr.bf16.mxu0 %v1727
          %2594 = vmatmul.mubr.bf16.gmra.mrb[0].mxu0 %v1726
          %v2595 = vpop.f32.mrb[0].mxu0
          %v2596 = vadd.f32 %v1754, %v2595
          %v2597 = vpop.f32.mrb[0].mxu0
          %v2598 = vadd.f32 %v1758, %v2597
          %v2599 = vpop.f32.mrb[0].mxu0
          %v2600 = vadd.f32 %v1754, %v2599
          %v2601 = vpop.f32.mrb[0].mxu0
          %v2602 = vadd.f32 %v1758, %v2601
          %2603 = vmatprep.mubr.bf16.mxu0 %v1729
          %2604 = vmatmul.mubr.bf16.gmra.mrb[0].mxu0 %v1728
          %v2605 = vpop.f32.mrb[0].mxu0
          %v2606 = vadd.f32 %v1754, %v2605
          %v2607 = vpop.f32.mrb[0].mxu0
          %v2608 = vadd.f32 %v1758, %v2607
          %v2609 = vpop.f32.mrb[0].mxu0
          %v2610 = vadd.f32 %v1754, %v2609
          %v2611 = vpop.f32.mrb[0].mxu0
          %v2612 = vadd.f32 %v1758, %v2611
          %2613 = vmatprep.mubr.bf16.mxu0 %v1731
          %2614 = vmatmul.mubr.bf16.gmra.mrb[0].mxu0 %v1730
          %v2615 = vpop.f32.mrb[0].mxu0
          %v2616 = vadd.f32 %v1754, %v2615
          %v2617 = vpop.f32.mrb[0].mxu0
          %v2618 = vadd.f32 %v1758, %v2617
          %v2619 = vpop.f32.mrb[0].mxu0
          %v2620 = vadd.f32 %v1754, %v2619
          %v2621 = vpop.f32.mrb[0].mxu0
          %v2622 = vadd.f32 %v1758, %v2621
          %2623 = vmatprep.mubr.bf16.mxu0 %v1733
          %2624 = vmatmul.mubr.bf16.gmra.mrb[0].mxu0 %v1732
          %v2625 = vpop.f32.mrb[0].mxu0
          %v2626 = vadd.f32 %v1754, %v2625
          %v2627 = vpop.f32.mrb[0].mxu0
          %v2628 = vadd.f32 %v1758, %v2627
          %v2629 = vpop.f32.mrb[0].mxu0
          %v2630 = vadd.f32 %v1754, %v2629
          %v2631 = vpop.f32.mrb[0].mxu0
          %v2632 = vadd.f32 %v1758, %v2631
          %2633 = vdwg.mxu0
          %2634 = vmatprep.subr.bf16.mxu0 %v2166
          %2635 = vmatpush1.bf16.msra.mxu0 %v2165
          %2636 = vmatprep.subr.bf16.mxu0 %v2174
          %2637 = vmatpush1.bf16.msra.mxu0 %v2173
          %2638 = vmatprep.subr.bf16.mxu0 %v2182
          %2639 = vmatpush1.bf16.msra.mxu0 %v2181
          %2640 = vmatprep.subr.bf16.mxu0 %v2190
          %2641 = vmatpush1.bf16.msra.mxu0 %v2189
          %2642 = vmatprep.subr.bf16.mxu0 %v2198
          %2643 = vmatpush1.bf16.msra.mxu0 %v2197
          %2644 = vmatprep.subr.bf16.mxu0 %v2206
          %2645 = vmatpush1.bf16.msra.mxu0 %v2205
          %2646 = vmatprep.subr.bf16.mxu0 %v2214
          %2647 = vmatpush1.bf16.msra.mxu0 %v2213
          %2648 = vmatprep.subr.bf16.mxu0 %v2222
          %2649 = vmatpush1.bf16.msra.mxu0 %v2221
          %2650 = vmatprep.subr.bf16.mxu0 %v2230
          %2651 = vmatpush1.bf16.msra.mxu0 %v2229
          %2652 = vmatprep.subr.bf16.mxu0 %v2238
          %2653 = vmatpush1.bf16.msra.mxu0 %v2237
          %2654 = vmatprep.subr.bf16.mxu0 %v2246
          %2655 = vmatpush1.bf16.msra.mxu0 %v2245
          %2656 = vmatprep.subr.bf16.mxu0 %v2254
          %2657 = vmatpush1.bf16.msra.mxu0 %v2253
          %2658 = vmatprep.subr.bf16.mxu0 %v2262
          %2659 = vmatpush1.bf16.msra.mxu0 %v2261
          %2660 = vmatprep.subr.bf16.mxu0 %v2270
          %2661 = vmatpush1.bf16.msra.mxu0 %v2269
          %2662 = vmatprep.subr.bf16.mxu0 %v2278
          %2663 = vmatpush1.bf16.msra.mxu0 %v2277
          %2664 = vmatprep.subr.bf16.mxu0 %v2286
          %2665 = vmatpush1.bf16.msra.mxu0 %v2285
          %2666 = vmatprep.mubr.bf16.mxu0 %v1727
          %2667 = vmatmul.mubr.bf16.gmra.mrb[0].mxu0 %v1726
          %v2668 = vpop.f32.mrb[0].mxu0
          %v2669 = vadd.f32 %v1762, %v2668
          %v2670 = vpop.f32.mrb[0].mxu0
          %v2671 = vadd.f32 %v1766, %v2670
          %v2672 = vpop.f32.mrb[0].mxu0
          %v2673 = vadd.f32 %v1762, %v2672
          %v2674 = vpop.f32.mrb[0].mxu0
          %v2675 = vadd.f32 %v1766, %v2674
          %2676 = vmatprep.mubr.bf16.mxu0 %v1729
          %2677 = vmatmul.mubr.bf16.gmra.mrb[0].mxu0 %v1728
          %v2678 = vpop.f32.mrb[0].mxu0
          %v2679 = vadd.f32 %v1762, %v2678
          %v2680 = vpop.f32.mrb[0].mxu0
          %v2681 = vadd.f32 %v1766, %v2680
          %v2682 = vpop.f32.mrb[0].mxu0
          %v2683 = vadd.f32 %v1762, %v2682
          %v2684 = vpop.f32.mrb[0].mxu0
          %v2685 = vadd.f32 %v1766, %v2684
          %2686 = vmatprep.mubr.bf16.mxu0 %v1731
          %2687 = vmatmul.mubr.bf16.gmra.mrb[0].mxu0 %v1730
          %v2688 = vpop.f32.mrb[0].mxu0
          %v2689 = vadd.f32 %v1762, %v2688
          %v2690 = vpop.f32.mrb[0].mxu0
          %v2691 = vadd.f32 %v1766, %v2690
          %v2692 = vpop.f32.mrb[0].mxu0
          %v2693 = vadd.f32 %v1762, %v2692
          %v2694 = vpop.f32.mrb[0].mxu0
          %v2695 = vadd.f32 %v1766, %v2694
          %2696 = vmatprep.mubr.bf16.mxu0 %v1733
          %2697 = vmatmul.mubr.bf16.gmra.mrb[0].mxu0 %v1732
          %v2698 = vpop.f32.mrb[0].mxu0
          %v2699 = vadd.f32 %v1762, %v2698
          %v2700 = vpop.f32.mrb[0].mxu0
          %v2701 = vadd.f32 %v1766, %v2700
          %v2702 = vpop.f32.mrb[0].mxu0
          %v2703 = vadd.f32 %v1762, %v2702
          %v2704 = vpop.f32.mrb[0].mxu0
          %v2705 = vadd.f32 %v1766, %v2704
          %2706 = vdwg.mxu0
          %2707 = vst [vmem:[#allocation3] sm:$0xff] %v2450
          %2708 = vst [vmem:[#allocation3 + $0x8] sm:$0xff] %v2452
          %2709 = vst [vmem:[#allocation3 + $0x10] sm:$0xff] %v2523
          %2710 = vst [vmem:[#allocation3 + $0x18] sm:$0xff] %v2525
          %2711 = vst [vmem:[#allocation3 + $0x20] sm:$0xff] %v2596
          %2712 = vst [vmem:[#allocation3 + $0x28] sm:$0xff] %v2598
          %2713 = vst [vmem:[#allocation3 + $0x30] sm:$0xff] %v2669
          %2714 = vst [vmem:[#allocation3 + $0x38] sm:$0xff] %v2671
          %2715 = vst [vmem:[#allocation3 + $0x40] sm:$0xff] %v2454
          %2716 = vst [vmem:[#allocation3 + $0x48] sm:$0xff] %v2456
          %2717 = vst [vmem:[#allocation3 + $0x50] sm:$0xff] %v2527
          %2718 = vst [vmem:[#allocation3 + $0x58] sm:$0xff] %v2529
          %2719 = vst [vmem:[#allocation3 + $0x60] sm:$0xff] %v2600
          %2720 = vst [vmem:[#allocation3 + $0x68] sm:$0xff] %v2602
          %2721 = vst [vmem:[#allocation3 + $0x70] sm:$0xff] %v2673
          %2722 = vst [vmem:[#allocation3 + $0x78] sm:$0xff] %v2675
          %2723 = vst [vmem:[#allocation3 + $0x80] sm:$0xff] %v2460
          %2724 = vst [vmem:[#allocation3 + $0x88] sm:$0xff] %v2462
          %2725 = vst [vmem:[#allocation3 + $0x90] sm:$0xff] %v2533
          %2726 = vst [vmem:[#allocation3 + $0x98] sm:$0xff] %v2535
          %2727 = vst [vmem:[#allocation3 + $0xa0] sm:$0xff] %v2606
          %2728 = vst [vmem:[#allocation3 + $0xa8] sm:$0xff] %v2608
          %2729 = vst [vmem:[#allocation3 + $0xb0] sm:$0xff] %v2679
          %2730 = vst [vmem:[#allocation3 + $0xb8] sm:$0xff] %v2681
          %2731 = vst [vmem:[#allocation3 + $0xc0] sm:$0xff] %v2464
          %2732 = vst [vmem:[#allocation3 + $0xc8] sm:$0xff] %v2466
          %2733 = vst [vmem:[#allocation3 + $0xd0] sm:$0xff] %v2537
          %2734 = vst [vmem:[#allocation3 + $0xd8] sm:$0xff] %v2539
          %2735 = vst [vmem:[#allocation3 + $0xe0] sm:$0xff] %v2610
          %2736 = vst [vmem:[#allocation3 + $0xe8] sm:$0xff] %v2612
          %2737 = vst [vmem:[#allocation3 + $0xf0] sm:$0xff] %v2683
          %2738 = vst [vmem:[#allocation3 + $0xf8] sm:$0xff] %v2685
          %2739 = vst [vmem:[#allocation3 + $0x100] sm:$0xff] %v2470
          %2740 = vst [vmem:[#allocation3 + $0x108] sm:$0xff] %v2472
          %2741 = vst [vmem:[#allocation3 + $0x110] sm:$0xff] %v2543
          %2742 = vst [vmem:[#allocation3 + $0x118] sm:$0xff] %v2545
          %2743 = vst [vmem:[#allocation3 + $0x120] sm:$0xff] %v2616
          %2744 = vst [vmem:[#allocation3 + $0x128] sm:$0xff] %v2618
          %2745 = vst [vmem:[#allocation3 + $0x130] sm:$0xff] %v2689
          %2746 = vst [vmem:[#allocation3 + $0x138] sm:$0xff] %v2691
          %2747 = vst [vmem:[#allocation3 + $0x140] sm:$0xff] %v2474
          %2748 = vst [vmem:[#allocation3 + $0x148] sm:$0xff] %v2476
          %2749 = vst [vmem:[#allocation3 + $0x150] sm:$0xff] %v2547
          %2750 = vst [vmem:[#allocation3 + $0x158] sm:$0xff] %v2549
          %2751 = vst [vmem:[#allocation3 + $0x160] sm:$0xff] %v2620
          %2752 = vst [vmem:[#allocation3 + $0x168] sm:$0xff] %v2622
          %2753 = vst [vmem:[#allocation3 + $0x170] sm:$0xff] %v2693
          %2754 = vst [vmem:[#allocation3 + $0x178] sm:$0xff] %v2695
          %2755 = vst [vmem:[#allocation3 + $0x180] sm:$0xff] %v2480
          %2756 = vst [vmem:[#allocation3 + $0x188] sm:$0xff] %v2482
          %2757 = vst [vmem:[#allocation3 + $0x190] sm:$0xff] %v2553
          %2758 = vst [vmem:[#allocation3 + $0x198] sm:$0xff] %v2555
          %2759 = vst [vmem:[#allocation3 + $0x1a0] sm:$0xff] %v2626
          %2760 = vst [vmem:[#allocation3 + $0x1a8] sm:$0xff] %v2628
          %2761 = vst [vmem:[#allocation3 + $0x1b0] sm:$0xff] %v2699
          %2762 = vst [vmem:[#allocation3 + $0x1b8] sm:$0xff] %v2701
          %2763 = vst [vmem:[#allocation3 + $0x1c0] sm:$0xff] %v2484
          %2764 = vst [vmem:[#allocation3 + $0x1c8] sm:$0xff] %v2486
          %2765 = vst [vmem:[#allocation3 + $0x1d0] sm:$0xff] %v2557
          %2766 = vst [vmem:[#allocation3 + $0x1d8] sm:$0xff] %v2559
          %2767 = vst [vmem:[#allocation3 + $0x1e0] sm:$0xff] %v2630
          %2768 = vst [vmem:[#allocation3 + $0x1e8] sm:$0xff] %v2632
          %2769 = vst [vmem:[#allocation3 + $0x1f0] sm:$0xff] %v2703
          %2770 = vst [vmem:[#allocation3 + $0x1f8] sm:$0xff] %v2705
        $region72: #{lstm_model_forward.1} parent=43 // pred_fallthru
          _
        %2771 = vst [vmem:[#allocation4] sm:$0xff] 0
        %2772 = vst [vmem:[#allocation5] sm:$0xff] 0.0
        %2773 = vst [vmem:[#allocation5 + $0x8] sm:$0xff] 0.0
        %s2774 = smul.u32 0, 8
        %s2775 = smul.addr %s2774, 8
        %s2776 = scalar_lea.vmem [#allocation3], %s2775
        %v2777 = vld [vmem:[%s2776] sm:$0xff]
        %v2778 = vld [vmem:[%s2776 + $0x8] sm:$0xff]
        %v2779 = vld [vmem:[%s2776 + $0x10] sm:$0xff]
        %v2780 = vld [vmem:[%s2776 + $0x18] sm:$0xff]
        %v2781 = vld [vmem:[%s2776 + $0x20] sm:$0xff]
        %v2782 = vld [vmem:[%s2776 + $0x28] sm:$0xff]
        %v2783 = vld [vmem:[%s2776 + $0x30] sm:$0xff]
        %v2784 = vld [vmem:[%s2776 + $0x38] sm:$0xff]
        %v2785 = vld [vmem:[#allocation4] sm:$0xff]
        %v2787 = vunpack.c.l.b16 %v2785
        %v2788 = vunpack.c.h.b16 %v2785
        %v2789 = vpack.c.b16 %v2787, %v2787
        %v2790 = vpack.c.b16 %v2788, %v2788
        %v2921 = vunpack.c.l.b16 %v488
        %v2922 = vunpack.c.h.b16 %v488
        %v2923 = vunpack.c.l.b16 %v489
        %v2924 = vunpack.c.h.b16 %v489
        %v2925 = vunpack.c.l.b16 %v490
        %v2926 = vunpack.c.h.b16 %v490
        %v2927 = vunpack.c.l.b16 %v491
        %v2928 = vunpack.c.h.b16 %v491
        %v2929 = vunpack.c.l.b16 %v492
        %v2930 = vunpack.c.h.b16 %v492
        %v2931 = vunpack.c.l.b16 %v493
        %v2932 = vunpack.c.h.b16 %v493
        %v2933 = vunpack.c.l.b16 %v494
        %v2934 = vunpack.c.h.b16 %v494
        %v2935 = vunpack.c.l.b16 %v495
        %v2936 = vunpack.c.h.b16 %v495
        %v2937 = vunpack.c.l.b16 %v496
        %v2938 = vunpack.c.h.b16 %v496
        %v2939 = vunpack.c.l.b16 %v497
        %v2940 = vunpack.c.h.b16 %v497
        %v2941 = vunpack.c.l.b16 %v498
        %v2942 = vunpack.c.h.b16 %v498
        %v2943 = vunpack.c.l.b16 %v499
        %v2944 = vunpack.c.h.b16 %v499
        %v2945 = vunpack.c.l.b16 %v500
        %v2946 = vunpack.c.h.b16 %v500
        %v2947 = vunpack.c.l.b16 %v501
        %v2948 = vunpack.c.h.b16 %v501
        %v2949 = vunpack.c.l.b16 %v502
        %v2950 = vunpack.c.h.b16 %v502
        %v2951 = vunpack.c.l.b16 %v503
        %v2952 = vunpack.c.h.b16 %v503
        %v2953 = vunpack.c.l.b16 %v504
        %v2954 = vunpack.c.h.b16 %v504
        %v2955 = vunpack.c.l.b16 %v505
        %v2956 = vunpack.c.h.b16 %v505
        %v2957 = vunpack.c.l.b16 %v506
        %v2958 = vunpack.c.h.b16 %v506
        %v2959 = vunpack.c.l.b16 %v507
        %v2960 = vunpack.c.h.b16 %v507
        %v2961 = vunpack.c.l.b16 %v508
        %v2962 = vunpack.c.h.b16 %v508
        %v2963 = vunpack.c.l.b16 %v509
        %v2964 = vunpack.c.h.b16 %v509
        %v2965 = vunpack.c.l.b16 %v510
        %v2966 = vunpack.c.h.b16 %v510
        %v2967 = vunpack.c.l.b16 %v511
        %v2968 = vunpack.c.h.b16 %v511
        %v2969 = vunpack.c.l.b16 %v512
        %v2970 = vunpack.c.h.b16 %v512
        %v2971 = vunpack.c.l.b16 %v513
        %v2972 = vunpack.c.h.b16 %v513
        %v2973 = vunpack.c.l.b16 %v514
        %v2974 = vunpack.c.h.b16 %v514
        %v2975 = vunpack.c.l.b16 %v515
        %v2976 = vunpack.c.h.b16 %v515
        %v2977 = vunpack.c.l.b16 %v516
        %v2978 = vunpack.c.h.b16 %v516
        %v2979 = vunpack.c.l.b16 %v517
        %v2980 = vunpack.c.h.b16 %v517
        %v2981 = vunpack.c.l.b16 %v518
        %v2982 = vunpack.c.h.b16 %v518
        %v2983 = vunpack.c.l.b16 %v519
        %v2984 = vunpack.c.h.b16 %v519
        %v2985 = vunpack.c.l.b16 %v520
        %v2986 = vunpack.c.h.b16 %v520
        %v2987 = vunpack.c.l.b16 %v521
        %v2988 = vunpack.c.h.b16 %v521
        %v2989 = vunpack.c.l.b16 %v522
        %v2990 = vunpack.c.h.b16 %v522
        %v2991 = vunpack.c.l.b16 %v523
        %v2992 = vunpack.c.h.b16 %v523
        %v2993 = vunpack.c.l.b16 %v524
        %v2994 = vunpack.c.h.b16 %v524
        %v2995 = vunpack.c.l.b16 %v525
        %v2996 = vunpack.c.h.b16 %v525
        %v2997 = vunpack.c.l.b16 %v526
        %v2998 = vunpack.c.h.b16 %v526
        %v2999 = vunpack.c.l.b16 %v527
        %v3000 = vunpack.c.h.b16 %v527
        %v3001 = vunpack.c.l.b16 %v528
        %v3002 = vunpack.c.h.b16 %v528
        %v3003 = vunpack.c.l.b16 %v529
        %v3004 = vunpack.c.h.b16 %v529
        %v3005 = vunpack.c.l.b16 %v530
        %v3006 = vunpack.c.h.b16 %v530
        %v3007 = vunpack.c.l.b16 %v531
        %v3008 = vunpack.c.h.b16 %v531
        %v3009 = vunpack.c.l.b16 %v532
        %v3010 = vunpack.c.h.b16 %v532
        %v3011 = vunpack.c.l.b16 %v533
        %v3012 = vunpack.c.h.b16 %v533
        %v3013 = vunpack.c.l.b16 %v534
        %v3014 = vunpack.c.h.b16 %v534
        %v3015 = vunpack.c.l.b16 %v535
        %v3016 = vunpack.c.h.b16 %v535
        %v3017 = vunpack.c.l.b16 %v536
        %v3018 = vunpack.c.h.b16 %v536
        %v3019 = vunpack.c.l.b16 %v537
        %v3020 = vunpack.c.h.b16 %v537
        %v3021 = vunpack.c.l.b16 %v538
        %v3022 = vunpack.c.h.b16 %v538
        %v3023 = vunpack.c.l.b16 %v539
        %v3024 = vunpack.c.h.b16 %v539
        %v3025 = vunpack.c.l.b16 %v540
        %v3026 = vunpack.c.h.b16 %v540
        %v3027 = vunpack.c.l.b16 %v541
        %v3028 = vunpack.c.h.b16 %v541
        %v3029 = vunpack.c.l.b16 %v542
        %v3030 = vunpack.c.h.b16 %v542
        %v3031 = vunpack.c.l.b16 %v543
        %v3032 = vunpack.c.h.b16 %v543
        %v3033 = vunpack.c.l.b16 %v544
        %v3034 = vunpack.c.h.b16 %v544
        %v3035 = vunpack.c.l.b16 %v545
        %v3036 = vunpack.c.h.b16 %v545
        %v3037 = vunpack.c.l.b16 %v546
        %v3038 = vunpack.c.h.b16 %v546
        %v3039 = vunpack.c.l.b16 %v547
        %v3040 = vunpack.c.h.b16 %v547
        %v3041 = vunpack.c.l.b16 %v548
        %v3042 = vunpack.c.h.b16 %v548
        %v3043 = vunpack.c.l.b16 %v549
        %v3044 = vunpack.c.h.b16 %v549
        %v3045 = vunpack.c.l.b16 %v550
        %v3046 = vunpack.c.h.b16 %v550
        %v3047 = vunpack.c.l.b16 %v551
        %v3048 = vunpack.c.h.b16 %v551
        %v3049 = vunpack.c.l.b16 %v552
        %v3050 = vunpack.c.h.b16 %v552
        %v3051 = vunpack.c.l.b16 %v553
        %v3052 = vunpack.c.h.b16 %v553
        %v3053 = vunpack.c.l.b16 %v554
        %v3054 = vunpack.c.h.b16 %v554
        %v3055 = vunpack.c.l.b16 %v555
        %v3056 = vunpack.c.h.b16 %v555
        %v3057 = vunpack.c.l.b16 %v556
        %v3058 = vunpack.c.h.b16 %v556
        %v3059 = vunpack.c.l.b16 %v557
        %v3060 = vunpack.c.h.b16 %v557
        %v3061 = vunpack.c.l.b16 %v558
        %v3062 = vunpack.c.h.b16 %v558
        %v3063 = vunpack.c.l.b16 %v559
        %v3064 = vunpack.c.h.b16 %v559
        %v3065 = vunpack.c.l.b16 %v560
        %v3066 = vunpack.c.h.b16 %v560
        %v3067 = vunpack.c.l.b16 %v561
        %v3068 = vunpack.c.h.b16 %v561
        %v3069 = vunpack.c.l.b16 %v562
        %v3070 = vunpack.c.h.b16 %v562
        %v3071 = vunpack.c.l.b16 %v563
        %v3072 = vunpack.c.h.b16 %v563
        %v3073 = vunpack.c.l.b16 %v564
        %v3074 = vunpack.c.h.b16 %v564
        %v3075 = vunpack.c.l.b16 %v565
        %v3076 = vunpack.c.h.b16 %v565
        %v3077 = vunpack.c.l.b16 %v566
        %v3078 = vunpack.c.h.b16 %v566
        %v3079 = vunpack.c.l.b16 %v567
        %v3080 = vunpack.c.h.b16 %v567
        %v3081 = vunpack.c.l.b16 %v568
        %v3082 = vunpack.c.h.b16 %v568
        %v3083 = vunpack.c.l.b16 %v569
        %v3084 = vunpack.c.h.b16 %v569
        %v3085 = vunpack.c.l.b16 %v570
        %v3086 = vunpack.c.h.b16 %v570
        %v3087 = vunpack.c.l.b16 %v571
        %v3088 = vunpack.c.h.b16 %v571
        %v3089 = vunpack.c.l.b16 %v572
        %v3090 = vunpack.c.h.b16 %v572
        %v3091 = vunpack.c.l.b16 %v573
        %v3092 = vunpack.c.h.b16 %v573
        %v3093 = vunpack.c.l.b16 %v574
        %v3094 = vunpack.c.h.b16 %v574
        %v3095 = vunpack.c.l.b16 %v575
        %v3096 = vunpack.c.h.b16 %v575
        %v3097 = vunpack.c.l.b16 %v576
        %v3098 = vunpack.c.h.b16 %v576
        %v3099 = vunpack.c.l.b16 %v577
        %v3100 = vunpack.c.h.b16 %v577
        %v3101 = vunpack.c.l.b16 %v578
        %v3102 = vunpack.c.h.b16 %v578
        %v3103 = vunpack.c.l.b16 %v579
        %v3104 = vunpack.c.h.b16 %v579
        %v3105 = vunpack.c.l.b16 %v580
        %v3106 = vunpack.c.h.b16 %v580
        %v3107 = vunpack.c.l.b16 %v581
        %v3108 = vunpack.c.h.b16 %v581
        %v3109 = vunpack.c.l.b16 %v582
        %v3110 = vunpack.c.h.b16 %v582
        %v3111 = vunpack.c.l.b16 %v583
        %v3112 = vunpack.c.h.b16 %v583
        %v3113 = vunpack.c.l.b16 %v584
        %v3114 = vunpack.c.h.b16 %v584
        %v3115 = vunpack.c.l.b16 %v585
        %v3116 = vunpack.c.h.b16 %v585
        %v3117 = vunpack.c.l.b16 %v586
        %v3118 = vunpack.c.h.b16 %v586
        %v3119 = vunpack.c.l.b16 %v587
        %v3120 = vunpack.c.h.b16 %v587
        %v3121 = vunpack.c.l.b16 %v588
        %v3122 = vunpack.c.h.b16 %v588
        %v3123 = vunpack.c.l.b16 %v589
        %v3124 = vunpack.c.h.b16 %v589
        %v3125 = vunpack.c.l.b16 %v590
        %v3126 = vunpack.c.h.b16 %v590
        %v3127 = vunpack.c.l.b16 %v591
        %v3128 = vunpack.c.h.b16 %v591
        %v3129 = vunpack.c.l.b16 %v592
        %v3130 = vunpack.c.h.b16 %v592
        %v3131 = vunpack.c.l.b16 %v593
        %v3132 = vunpack.c.h.b16 %v593
        %v3133 = vunpack.c.l.b16 %v594
        %v3134 = vunpack.c.h.b16 %v594
        %v3135 = vunpack.c.l.b16 %v595
        %v3136 = vunpack.c.h.b16 %v595
        %v3137 = vunpack.c.l.b16 %v596
        %v3138 = vunpack.c.h.b16 %v596
        %v3139 = vunpack.c.l.b16 %v597
        %v3140 = vunpack.c.h.b16 %v597
        %v3141 = vunpack.c.l.b16 %v598
        %v3142 = vunpack.c.h.b16 %v598
        %v3143 = vunpack.c.l.b16 %v599
        %v3144 = vunpack.c.h.b16 %v599
        %v3145 = vunpack.c.l.b16 %v600
        %v3146 = vunpack.c.h.b16 %v600
        %v3147 = vunpack.c.l.b16 %v601
        %v3148 = vunpack.c.h.b16 %v601
        %v3149 = vunpack.c.l.b16 %v602
        %v3150 = vunpack.c.h.b16 %v602
        %v3151 = vunpack.c.l.b16 %v603
        %v3152 = vunpack.c.h.b16 %v603
        %v3153 = vunpack.c.l.b16 %v604
        %v3154 = vunpack.c.h.b16 %v604
        %v3155 = vunpack.c.l.b16 %v605
        %v3156 = vunpack.c.h.b16 %v605
        %v3157 = vunpack.c.l.b16 %v606
        %v3158 = vunpack.c.h.b16 %v606
        %v3159 = vunpack.c.l.b16 %v607
        %v3160 = vunpack.c.h.b16 %v607
        %v3161 = vunpack.c.l.b16 %v608
        %v3162 = vunpack.c.h.b16 %v608
        %v3163 = vunpack.c.l.b16 %v609
        %v3164 = vunpack.c.h.b16 %v609
        %v3165 = vunpack.c.l.b16 %v610
        %v3166 = vunpack.c.h.b16 %v610
        %v3167 = vunpack.c.l.b16 %v611
        %v3168 = vunpack.c.h.b16 %v611
        %v3169 = vunpack.c.l.b16 %v612
        %v3170 = vunpack.c.h.b16 %v612
        %v3171 = vunpack.c.l.b16 %v613
        %v3172 = vunpack.c.h.b16 %v613
        %v3173 = vunpack.c.l.b16 %v614
        %v3174 = vunpack.c.h.b16 %v614
        %v3175 = vunpack.c.l.b16 %v615
        %v3176 = vunpack.c.h.b16 %v615
        %v3177 = vpack.c.b16 %v2929, %v2921
        %v3178 = vpack.c.b16 %v2930, %v2922
        %v3179 = vpack.c.b16 %v2931, %v2923
        %v3180 = vpack.c.b16 %v2932, %v2924
        %v3181 = vpack.c.b16 %v2933, %v2925
        %v3182 = vpack.c.b16 %v2934, %v2926
        %v3183 = vpack.c.b16 %v2935, %v2927
        %v3184 = vpack.c.b16 %v2936, %v2928
        %v3185 = vpack.c.b16 %v2945, %v2937
        %v3186 = vpack.c.b16 %v2946, %v2938
        %v3187 = vpack.c.b16 %v2947, %v2939
        %v3188 = vpack.c.b16 %v2948, %v2940
        %v3189 = vpack.c.b16 %v2949, %v2941
        %v3190 = vpack.c.b16 %v2950, %v2942
        %v3191 = vpack.c.b16 %v2951, %v2943
        %v3192 = vpack.c.b16 %v2952, %v2944
        %v3193 = vpack.c.b16 %v2961, %v2953
        %v3194 = vpack.c.b16 %v2962, %v2954
        %v3195 = vpack.c.b16 %v2963, %v2955
        %v3196 = vpack.c.b16 %v2964, %v2956
        %v3197 = vpack.c.b16 %v2965, %v2957
        %v3198 = vpack.c.b16 %v2966, %v2958
        %v3199 = vpack.c.b16 %v2967, %v2959
        %v3200 = vpack.c.b16 %v2968, %v2960
        %v3201 = vpack.c.b16 %v2977, %v2969
        %v3202 = vpack.c.b16 %v2978, %v2970
        %v3203 = vpack.c.b16 %v2979, %v2971
        %v3204 = vpack.c.b16 %v2980, %v2972
        %v3205 = vpack.c.b16 %v2981, %v2973
        %v3206 = vpack.c.b16 %v2982, %v2974
        %v3207 = vpack.c.b16 %v2983, %v2975
        %v3208 = vpack.c.b16 %v2984, %v2976
        %v3209 = vpack.c.b16 %v2993, %v2985
        %v3210 = vpack.c.b16 %v2994, %v2986
        %v3211 = vpack.c.b16 %v2995, %v2987
        %v3212 = vpack.c.b16 %v2996, %v2988
        %v3213 = vpack.c.b16 %v2997, %v2989
        %v3214 = vpack.c.b16 %v2998, %v2990
        %v3215 = vpack.c.b16 %v2999, %v2991
        %v3216 = vpack.c.b16 %v3000, %v2992
        %v3217 = vpack.c.b16 %v3009, %v3001
        %v3218 = vpack.c.b16 %v3010, %v3002
        %v3219 = vpack.c.b16 %v3011, %v3003
        %v3220 = vpack.c.b16 %v3012, %v3004
        %v3221 = vpack.c.b16 %v3013, %v3005
        %v3222 = vpack.c.b16 %v3014, %v3006
        %v3223 = vpack.c.b16 %v3015, %v3007
        %v3224 = vpack.c.b16 %v3016, %v3008
        %v3225 = vpack.c.b16 %v3025, %v3017
        %v3226 = vpack.c.b16 %v3026, %v3018
        %v3227 = vpack.c.b16 %v3027, %v3019
        %v3228 = vpack.c.b16 %v3028, %v3020
        %v3229 = vpack.c.b16 %v3029, %v3021
        %v3230 = vpack.c.b16 %v3030, %v3022
        %v3231 = vpack.c.b16 %v3031, %v3023
        %v3232 = vpack.c.b16 %v3032, %v3024
        %v3233 = vpack.c.b16 %v3041, %v3033
        %v3234 = vpack.c.b16 %v3042, %v3034
        %v3235 = vpack.c.b16 %v3043, %v3035
        %v3236 = vpack.c.b16 %v3044, %v3036
        %v3237 = vpack.c.b16 %v3045, %v3037
        %v3238 = vpack.c.b16 %v3046, %v3038
        %v3239 = vpack.c.b16 %v3047, %v3039
        %v3240 = vpack.c.b16 %v3048, %v3040
        %v3241 = vpack.c.b16 %v3057, %v3049
        %v3242 = vpack.c.b16 %v3058, %v3050
        %v3243 = vpack.c.b16 %v3059, %v3051
        %v3244 = vpack.c.b16 %v3060, %v3052
        %v3245 = vpack.c.b16 %v3061, %v3053
        %v3246 = vpack.c.b16 %v3062, %v3054
        %v3247 = vpack.c.b16 %v3063, %v3055
        %v3248 = vpack.c.b16 %v3064, %v3056
        %v3249 = vpack.c.b16 %v3073, %v3065
        %v3250 = vpack.c.b16 %v3074, %v3066
        %v3251 = vpack.c.b16 %v3075, %v3067
        %v3252 = vpack.c.b16 %v3076, %v3068
        %v3253 = vpack.c.b16 %v3077, %v3069
        %v3254 = vpack.c.b16 %v3078, %v3070
        %v3255 = vpack.c.b16 %v3079, %v3071
        %v3256 = vpack.c.b16 %v3080, %v3072
        %v3257 = vpack.c.b16 %v3089, %v3081
        %v3258 = vpack.c.b16 %v3090, %v3082
        %v3259 = vpack.c.b16 %v3091, %v3083
        %v3260 = vpack.c.b16 %v3092, %v3084
        %v3261 = vpack.c.b16 %v3093, %v3085
        %v3262 = vpack.c.b16 %v3094, %v3086
        %v3263 = vpack.c.b16 %v3095, %v3087
        %v3264 = vpack.c.b16 %v3096, %v3088
        %v3265 = vpack.c.b16 %v3105, %v3097
        %v3266 = vpack.c.b16 %v3106, %v3098
        %v3267 = vpack.c.b16 %v3107, %v3099
        %v3268 = vpack.c.b16 %v3108, %v3100
        %v3269 = vpack.c.b16 %v3109, %v3101
        %v3270 = vpack.c.b16 %v3110, %v3102
        %v3271 = vpack.c.b16 %v3111, %v3103
        %v3272 = vpack.c.b16 %v3112, %v3104
        %v3273 = vpack.c.b16 %v3121, %v3113
        %v3274 = vpack.c.b16 %v3122, %v3114
        %v3275 = vpack.c.b16 %v3123, %v3115
        %v3276 = vpack.c.b16 %v3124, %v3116
        %v3277 = vpack.c.b16 %v3125, %v3117
        %v3278 = vpack.c.b16 %v3126, %v3118
        %v3279 = vpack.c.b16 %v3127, %v3119
        %v3280 = vpack.c.b16 %v3128, %v3120
        %v3281 = vpack.c.b16 %v3137, %v3129
        %v3282 = vpack.c.b16 %v3138, %v3130
        %v3283 = vpack.c.b16 %v3139, %v3131
        %v3284 = vpack.c.b16 %v3140, %v3132
        %v3285 = vpack.c.b16 %v3141, %v3133
        %v3286 = vpack.c.b16 %v3142, %v3134
        %v3287 = vpack.c.b16 %v3143, %v3135
        %v3288 = vpack.c.b16 %v3144, %v3136
        %v3289 = vpack.c.b16 %v3153, %v3145
        %v3290 = vpack.c.b16 %v3154, %v3146
        %v3291 = vpack.c.b16 %v3155, %v3147
        %v3292 = vpack.c.b16 %v3156, %v3148
        %v3293 = vpack.c.b16 %v3157, %v3149
        %v3294 = vpack.c.b16 %v3158, %v3150
        %v3295 = vpack.c.b16 %v3159, %v3151
        %v3296 = vpack.c.b16 %v3160, %v3152
        %v3297 = vpack.c.b16 %v3169, %v3161
        %v3298 = vpack.c.b16 %v3170, %v3162
        %v3299 = vpack.c.b16 %v3171, %v3163
        %v3300 = vpack.c.b16 %v3172, %v3164
        %v3301 = vpack.c.b16 %v3173, %v3165
        %v3302 = vpack.c.b16 %v3174, %v3166
        %v3303 = vpack.c.b16 %v3175, %v3167
        %v3304 = vpack.c.b16 %v3176, %v3168
        %3433 = vmatprep.subr.bf16.mxu0 %v3178
        %3434 = vmatpush1.bf16.msra.mxu0 %v3177
        %3435 = vmatprep.subr.bf16.mxu0 %v3186
        %3436 = vmatpush1.bf16.msra.mxu0 %v3185
        %3437 = vmatprep.subr.bf16.mxu0 %v3194
        %3438 = vmatpush1.bf16.msra.mxu0 %v3193
        %3439 = vmatprep.subr.bf16.mxu0 %v3202
        %3440 = vmatpush1.bf16.msra.mxu0 %v3201
        %3441 = vmatprep.subr.bf16.mxu0 %v3210
        %3442 = vmatpush1.bf16.msra.mxu0 %v3209
        %3443 = vmatprep.subr.bf16.mxu0 %v3218
        %3444 = vmatpush1.bf16.msra.mxu0 %v3217
        %3445 = vmatprep.subr.bf16.mxu0 %v3226
        %3446 = vmatpush1.bf16.msra.mxu0 %v3225
        %3447 = vmatprep.subr.bf16.mxu0 %v3234
        %3448 = vmatpush1.bf16.msra.mxu0 %v3233
        %3449 = vmatprep.subr.bf16.mxu0 %v3242
        %3450 = vmatpush1.bf16.msra.mxu0 %v3241
        %3451 = vmatprep.subr.bf16.mxu0 %v3250
        %3452 = vmatpush1.bf16.msra.mxu0 %v3249
        %3453 = vmatprep.subr.bf16.mxu0 %v3258
        %3454 = vmatpush1.bf16.msra.mxu0 %v3257
        %3455 = vmatprep.subr.bf16.mxu0 %v3266
        %3456 = vmatpush1.bf16.msra.mxu0 %v3265
        %3457 = vmatprep.subr.bf16.mxu0 %v3274
        %3458 = vmatpush1.bf16.msra.mxu0 %v3273
        %3459 = vmatprep.subr.bf16.mxu0 %v3282
        %3460 = vmatpush1.bf16.msra.mxu0 %v3281
        %3461 = vmatprep.subr.bf16.mxu0 %v3290
        %3462 = vmatpush1.bf16.msra.mxu0 %v3289
        %3463 = vmatprep.subr.bf16.mxu0 %v3298
        %3464 = vmatpush1.bf16.msra.mxu0 %v3297
        %3465 = vmatprep.mubr.bf16.mxu0 %v2790
        %3466 = vmatmul.mubr.bf16.gmra.mrb[0].mxu0 %v2789
        %v3467 = vpop.f32.mrb[0].mxu0
        %v3468 = vadd.f32 0.0, %v3467
        %v3469 = vpop.f32.mrb[0].mxu0
        %v3470 = vadd.f32 0.0, %v3469
        %v3471 = vpop.f32.mrb[0].mxu0
        %v3472 = vpop.f32.mrb[0].mxu0
        %3473 = vdwg.mxu0
        %3474 = vmatprep.subr.bf16.mxu0 %v3180
        %3475 = vmatpush1.bf16.msra.mxu0 %v3179
        %3476 = vmatprep.subr.bf16.mxu0 %v3188
        %3477 = vmatpush1.bf16.msra.mxu0 %v3187
        %3478 = vmatprep.subr.bf16.mxu0 %v3196
        %3479 = vmatpush1.bf16.msra.mxu0 %v3195
        %3480 = vmatprep.subr.bf16.mxu0 %v3204
        %3481 = vmatpush1.bf16.msra.mxu0 %v3203
        %3482 = vmatprep.subr.bf16.mxu0 %v3212
        %3483 = vmatpush1.bf16.msra.mxu0 %v3211
        %3484 = vmatprep.subr.bf16.mxu0 %v3220
        %3485 = vmatpush1.bf16.msra.mxu0 %v3219
        %3486 = vmatprep.subr.bf16.mxu0 %v3228
        %3487 = vmatpush1.bf16.msra.mxu0 %v3227
        %3488 = vmatprep.subr.bf16.mxu0 %v3236
        %3489 = vmatpush1.bf16.msra.mxu0 %v3235
        %3490 = vmatprep.subr.bf16.mxu0 %v3244
        %3491 = vmatpush1.bf16.msra.mxu0 %v3243
        %3492 = vmatprep.subr.bf16.mxu0 %v3252
        %3493 = vmatpush1.bf16.msra.mxu0 %v3251
        %3494 = vmatprep.subr.bf16.mxu0 %v3260
        %3495 = vmatpush1.bf16.msra.mxu0 %v3259
        %3496 = vmatprep.subr.bf16.mxu0 %v3268
        %3497 = vmatpush1.bf16.msra.mxu0 %v3267
        %3498 = vmatprep.subr.bf16.mxu0 %v3276
        %3499 = vmatpush1.bf16.msra.mxu0 %v3275
        %3500 = vmatprep.subr.bf16.mxu0 %v3284
        %3501 = vmatpush1.bf16.msra.mxu0 %v3283
        %3502 = vmatprep.subr.bf16.mxu0 %v3292
        %3503 = vmatpush1.bf16.msra.mxu0 %v3291
        %3504 = vmatprep.subr.bf16.mxu0 %v3300
        %3505 = vmatpush1.bf16.msra.mxu0 %v3299
        %3506 = vmatprep.mubr.bf16.mxu0 %v2790
        %3507 = vmatmul.mubr.bf16.gmra.mrb[0].mxu0 %v2789
        %v3508 = vpop.f32.mrb[0].mxu0
        %v3509 = vadd.f32 0.0, %v3508
        %v3510 = vpop.f32.mrb[0].mxu0
        %v3511 = vadd.f32 0.0, %v3510
        %v3512 = vpop.f32.mrb[0].mxu0
        %v3513 = vpop.f32.mrb[0].mxu0
        %3514 = vdwg.mxu0
        %3515 = vmatprep.subr.bf16.mxu0 %v3182
        %3516 = vmatpush1.bf16.msra.mxu0 %v3181
        %3517 = vmatprep.subr.bf16.mxu0 %v3190
        %3518 = vmatpush1.bf16.msra.mxu0 %v3189
        %3519 = vmatprep.subr.bf16.mxu0 %v3198
        %3520 = vmatpush1.bf16.msra.mxu0 %v3197
        %3521 = vmatprep.subr.bf16.mxu0 %v3206
        %3522 = vmatpush1.bf16.msra.mxu0 %v3205
        %3523 = vmatprep.subr.bf16.mxu0 %v3214
        %3524 = vmatpush1.bf16.msra.mxu0 %v3213
        %3525 = vmatprep.subr.bf16.mxu0 %v3222
        %3526 = vmatpush1.bf16.msra.mxu0 %v3221
        %3527 = vmatprep.subr.bf16.mxu0 %v3230
        %3528 = vmatpush1.bf16.msra.mxu0 %v3229
        %3529 = vmatprep.subr.bf16.mxu0 %v3238
        %3530 = vmatpush1.bf16.msra.mxu0 %v3237
        %3531 = vmatprep.subr.bf16.mxu0 %v3246
        %3532 = vmatpush1.bf16.msra.mxu0 %v3245
        %3533 = vmatprep.subr.bf16.mxu0 %v3254
        %3534 = vmatpush1.bf16.msra.mxu0 %v3253
        %3535 = vmatprep.subr.bf16.mxu0 %v3262
        %3536 = vmatpush1.bf16.msra.mxu0 %v3261
        %3537 = vmatprep.subr.bf16.mxu0 %v3270
        %3538 = vmatpush1.bf16.msra.mxu0 %v3269
        %3539 = vmatprep.subr.bf16.mxu0 %v3278
        %3540 = vmatpush1.bf16.msra.mxu0 %v3277
        %3541 = vmatprep.subr.bf16.mxu0 %v3286
        %3542 = vmatpush1.bf16.msra.mxu0 %v3285
        %3543 = vmatprep.subr.bf16.mxu0 %v3294
        %3544 = vmatpush1.bf16.msra.mxu0 %v3293
        %3545 = vmatprep.subr.bf16.mxu0 %v3302
        %3546 = vmatpush1.bf16.msra.mxu0 %v3301
        %3547 = vmatprep.mubr.bf16.mxu0 %v2790
        %3548 = vmatmul.mubr.bf16.gmra.mrb[0].mxu0 %v2789
        %v3549 = vpop.f32.mrb[0].mxu0
        %v3550 = vadd.f32 0.0, %v3549
        %v3551 = vpop.f32.mrb[0].mxu0
        %v3552 = vadd.f32 0.0, %v3551
        %v3553 = vpop.f32.mrb[0].mxu0
        %v3554 = vpop.f32.mrb[0].mxu0
        %3555 = vdwg.mxu0
        %3556 = vmatprep.subr.bf16.mxu0 %v3184
        %3557 = vmatpush1.bf16.msra.mxu0 %v3183
        %3558 = vmatprep.subr.bf16.mxu0 %v3192
        %3559 = vmatpush1.bf16.msra.mxu0 %v3191
        %3560 = vmatprep.subr.bf16.mxu0 %v3200
        %3561 = vmatpush1.bf16.msra.mxu0 %v3199
        %3562 = vmatprep.subr.bf16.mxu0 %v3208
        %3563 = vmatpush1.bf16.msra.mxu0 %v3207
        %3564 = vmatprep.subr.bf16.mxu0 %v3216
        %3565 = vmatpush1.bf16.msra.mxu0 %v3215
        %3566 = vmatprep.subr.bf16.mxu0 %v3224
        %3567 = vmatpush1.bf16.msra.mxu0 %v3223
        %3568 = vmatprep.subr.bf16.mxu0 %v3232
        %3569 = vmatpush1.bf16.msra.mxu0 %v3231
        %3570 = vmatprep.subr.bf16.mxu0 %v3240
        %3571 = vmatpush1.bf16.msra.mxu0 %v3239
        %3572 = vmatprep.subr.bf16.mxu0 %v3248
        %3573 = vmatpush1.bf16.msra.mxu0 %v3247
        %3574 = vmatprep.subr.bf16.mxu0 %v3256
        %3575 = vmatpush1.bf16.msra.mxu0 %v3255
        %3576 = vmatprep.subr.bf16.mxu0 %v3264
        %3577 = vmatpush1.bf16.msra.mxu0 %v3263
        %3578 = vmatprep.subr.bf16.mxu0 %v3272
        %3579 = vmatpush1.bf16.msra.mxu0 %v3271
        %3580 = vmatprep.subr.bf16.mxu0 %v3280
        %3581 = vmatpush1.bf16.msra.mxu0 %v3279
        %3582 = vmatprep.subr.bf16.mxu0 %v3288
        %3583 = vmatpush1.bf16.msra.mxu0 %v3287
        %3584 = vmatprep.subr.bf16.mxu0 %v3296
        %3585 = vmatpush1.bf16.msra.mxu0 %v3295
        %3586 = vmatprep.subr.bf16.mxu0 %v3304
        %3587 = vmatpush1.bf16.msra.mxu0 %v3303
        %3588 = vmatprep.mubr.bf16.mxu0 %v2790
        %3589 = vmatmul.mubr.bf16.gmra.mrb[0].mxu0 %v2789
        %v3590 = vpop.f32.mrb[0].mxu0
        %v3591 = vadd.f32 0.0, %v3590
        %v3592 = vpop.f32.mrb[0].mxu0
        %v3593 = vadd.f32 0.0, %v3592
        %v3594 = vpop.f32.mrb[0].mxu0
        %v3595 = vpop.f32.mrb[0].mxu0
        %3596 = vdwg.mxu0
        %v3597 = vadd.f32 %v2777, %v3468
        %v3598 = vadd.f32 %v2778, %v3470
        %v3599 = vadd.f32 %v2779, %v3509
        %v3600 = vadd.f32 %v2780, %v3511
        %v3601 = vadd.f32 %v2781, %v3550
        %v3602 = vadd.f32 %v2782, %v3552
        %v3603 = vadd.f32 %v2783, %v3591
        %v3604 = vadd.f32 %v2784, %v3593
        %v3605 = vxor.u32 %v3597, 2147483648
        %v3606 = vxor.u32 %v3598, 2147483648
        %v3607 = vmul.f32 %v3605, 1.442695
        %v3608 = vpow.pop %v3607
        %v3609 = vmul.f32 %v3606, 1.442695
        %v3610 = vpow.pop %v3609
        %v3611 = vadd.f32 %v3608, 1.0
        %v3612 = vadd.f32 %v3610, 1.0
        %v3613 = vrcp.pop %v3611
        %v3614 = vmul.f32 1.0, %v3613
        %v3615 = vrcp.pop %v3612
        %v3616 = vmul.f32 1.0, %v3615
        %v3617 = vxor.u32 %v3599, 2147483648
        %v3618 = vxor.u32 %v3600, 2147483648
        %v3619 = vmul.f32 %v3617, 1.442695
        %v3620 = vpow.pop %v3619
        %v3621 = vmul.f32 %v3618, 1.442695
        %v3622 = vpow.pop %v3621
        %v3623 = vadd.f32 %v3620, 1.0
        %v3624 = vadd.f32 %v3622, 1.0
        %v3625 = vrcp.pop %v3623
        %v3626 = vmul.f32 1.0, %v3625
        %v3627 = vrcp.pop %v3624
        %v3628 = vmul.f32 1.0, %v3627
        %v3629 = vtanh.pop %v3601
        %v3630 = vtanh.pop %v3602
        %v3631 = vxor.u32 %v3603, 2147483648
        %v3632 = vxor.u32 %v3604, 2147483648
        %v3633 = vmul.f32 %v3631, 1.442695
        %v3634 = vpow.pop %v3633
        %v3635 = vmul.f32 %v3632, 1.442695
        %v3636 = vpow.pop %v3635
        %v3637 = vadd.f32 %v3634, 1.0
        %v3638 = vadd.f32 %v3636, 1.0
        %v3639 = vrcp.pop %v3637
        %v3640 = vmul.f32 1.0, %v3639
        %v3641 = vrcp.pop %v3638
        %v3642 = vmul.f32 1.0, %v3641
        %v3643 = vld [vmem:[#allocation5] sm:$0xff]
        %v3644 = vld [vmem:[#allocation5 + $0x8] sm:$0xff]
        %v3645 = vmul.f32 %v3626, %v3643
        %v3646 = vmul.f32 %v3628, %v3644
        %v3647 = vmul.f32 %v3614, %v3629
        %v3648 = vmul.f32 %v3616, %v3630
        %v3649 = vadd.f32 %v3645, %v3647
        %v3650 = vadd.f32 %v3646, %v3648
        %v3651 = vtanh.pop %v3649
        %v3652 = vtanh.pop %v3650
        %v3653 = vmul.f32 %v3640, %v3651
        %v3654 = vmul.f32 %v3642, %v3652
        %3655 = vst [vmem:[#allocation5] sm:$0xff] %v3649
        %3656 = vst [vmem:[#allocation5 + $0x8] sm:$0xff] %v3650
        %v3657 = vpack.c.bf16 %v3653, %v3653
        %v3658 = vpack.c.bf16 %v3654, %v3654
        %v3661 = vunpack.c.l.b16 %v3657
        %v3662 = vunpack.c.l.b16 %v3658
        %v3663 = vpack.c.b16 %v3662, %v3661
        %3665 = vst [vmem:[#allocation4] sm:$0xff] %v3663
        %s3666 = smul.u32 0, 2
        %s3667 = smul.addr %s3666, 8
        %s3668 = scalar_lea.vmem [#allocation2], %s3667
        %3669 = vst [vmem:[%s3668] sm:$0xff] %v3653
        %3670 = vst [vmem:[%s3668 + $0x8] sm:$0xff] %v3654
        %s3671 = smul.u32 1, 8
        %s3672 = smul.addr %s3671, 8
        %s3673 = scalar_lea.vmem [#allocation3], %s3672
        %v3674 = vld [vmem:[%s3673] sm:$0xff]
        %v3675 = vld [vmem:[%s3673 + $0x8] sm:$0xff]
        %v3676 = vld [vmem:[%s3673 + $0x10] sm:$0xff]
        %v3677 = vld [vmem:[%s3673 + $0x18] sm:$0xff]
        %v3678 = vld [vmem:[%s3673 + $0x20] sm:$0xff]
        %v3679 = vld [vmem:[%s3673 + $0x28] sm:$0xff]
        %v3680 = vld [vmem:[%s3673 + $0x30] sm:$0xff]
        %v3681 = vld [vmem:[%s3673 + $0x38] sm:$0xff]
        %v3682 = vld [vmem:[#allocation4] sm:$0xff]
        %v3684 = vunpack.c.l.b16 %v3682
        %v3685 = vunpack.c.h.b16 %v3682
        %v3686 = vpack.c.b16 %v3684, %v3684
        %v3687 = vpack.c.b16 %v3685, %v3685
        %3690 = vmatprep.subr.bf16.mxu0 %v3178
        %3691 = vmatpush1.bf16.msra.mxu0 %v3177
        %3692 = vmatprep.subr.bf16.mxu0 %v3186
        %3693 = vmatpush1.bf16.msra.mxu0 %v3185
        %3694 = vmatprep.subr.bf16.mxu0 %v3194
        %3695 = vmatpush1.bf16.msra.mxu0 %v3193
        %3696 = vmatprep.subr.bf16.mxu0 %v3202
        %3697 = vmatpush1.bf16.msra.mxu0 %v3201
        %3698 = vmatprep.subr.bf16.mxu0 %v3210
        %3699 = vmatpush1.bf16.msra.mxu0 %v3209
        %3700 = vmatprep.subr.bf16.mxu0 %v3218
        %3701 = vmatpush1.bf16.msra.mxu0 %v3217
        %3702 = vmatprep.subr.bf16.mxu0 %v3226
        %3703 = vmatpush1.bf16.msra.mxu0 %v3225
        %3704 = vmatprep.subr.bf16.mxu0 %v3234
        %3705 = vmatpush1.bf16.msra.mxu0 %v3233
        %3706 = vmatprep.subr.bf16.mxu0 %v3242
        %3707 = vmatpush1.bf16.msra.mxu0 %v3241
        %3708 = vmatprep.subr.bf16.mxu0 %v3250
        %3709 = vmatpush1.bf16.msra.mxu0 %v3249
        %3710 = vmatprep.subr.bf16.mxu0 %v3258
        %3711 = vmatpush1.bf16.msra.mxu0 %v3257
        %3712 = vmatprep.subr.bf16.mxu0 %v3266
        %3713 = vmatpush1.bf16.msra.mxu0 %v3265
        %3714 = vmatprep.subr.bf16.mxu0 %v3274
        %3715 = vmatpush1.bf16.msra.mxu0 %v3273
        %3716 = vmatprep.subr.bf16.mxu0 %v3282
        %3717 = vmatpush1.bf16.msra.mxu0 %v3281
        %3718 = vmatprep.subr.bf16.mxu0 %v3290
        %3719 = vmatpush1.bf16.msra.mxu0 %v3289
        %3720 = vmatprep.subr.bf16.mxu0 %v3298
        %3721 = vmatpush1.bf16.msra.mxu0 %v3297
        %3722 = vmatprep.mubr.bf16.mxu0 %v3687
        %3723 = vmatmul.mubr.bf16.gmra.mrb[0].mxu0 %v3686
        %v3724 = vpop.f32.mrb[0].mxu0
        %v3725 = vadd.f32 0.0, %v3724
        %v3726 = vpop.f32.mrb[0].mxu0
        %v3727 = vadd.f32 0.0, %v3726
        %v3728 = vpop.f32.mrb[0].mxu0
        %v3729 = vpop.f32.mrb[0].mxu0
        %3730 = vdwg.mxu0
        %3731 = vmatprep.subr.bf16.mxu0 %v3180
        %3732 = vmatpush1.bf16.msra.mxu0 %v3179
        %3733 = vmatprep.subr.bf16.mxu0 %v3188
        %3734 = vmatpush1.bf16.msra.mxu0 %v3187
        %3735 = vmatprep.subr.bf16.mxu0 %v3196
        %3736 = vmatpush1.bf16.msra.mxu0 %v3195
        %3737 = vmatprep.subr.bf16.mxu0 %v3204
        %3738 = vmatpush1.bf16.msra.mxu0 %v3203
        %3739 = vmatprep.subr.bf16.mxu0 %v3212
        %3740 = vmatpush1.bf16.msra.mxu0 %v3211
        %3741 = vmatprep.subr.bf16.mxu0 %v3220
        %3742 = vmatpush1.bf16.msra.mxu0 %v3219
        %3743 = vmatprep.subr.bf16.mxu0 %v3228
        %3744 = vmatpush1.bf16.msra.mxu0 %v3227
        %3745 = vmatprep.subr.bf16.mxu0 %v3236
        %3746 = vmatpush1.bf16.msra.mxu0 %v3235
        %3747 = vmatprep.subr.bf16.mxu0 %v3244
        %3748 = vmatpush1.bf16.msra.mxu0 %v3243
        %3749 = vmatprep.subr.bf16.mxu0 %v3252
        %3750 = vmatpush1.bf16.msra.mxu0 %v3251
        %3751 = vmatprep.subr.bf16.mxu0 %v3260
        %3752 = vmatpush1.bf16.msra.mxu0 %v3259
        %3753 = vmatprep.subr.bf16.mxu0 %v3268
        %3754 = vmatpush1.bf16.msra.mxu0 %v3267
        %3755 = vmatprep.subr.bf16.mxu0 %v3276
        %3756 = vmatpush1.bf16.msra.mxu0 %v3275
        %3757 = vmatprep.subr.bf16.mxu0 %v3284
        %3758 = vmatpush1.bf16.msra.mxu0 %v3283
        %3759 = vmatprep.subr.bf16.mxu0 %v3292
        %3760 = vmatpush1.bf16.msra.mxu0 %v3291
        %3761 = vmatprep.subr.bf16.mxu0 %v3300
        %3762 = vmatpush1.bf16.msra.mxu0 %v3299
        %3763 = vmatprep.mubr.bf16.mxu0 %v3687
        %3764 = vmatmul.mubr.bf16.gmra.mrb[0].mxu0 %v3686
        %v3765 = vpop.f32.mrb[0].mxu0
        %v3766 = vadd.f32 0.0, %v3765
        %v3767 = vpop.f32.mrb[0].mxu0
        %v3768 = vadd.f32 0.0, %v3767
        %v3769 = vpop.f32.mrb[0].mxu0
        %v3770 = vpop.f32.mrb[0].mxu0
        %3771 = vdwg.mxu0
        %3772 = vmatprep.subr.bf16.mxu0 %v3182
        %3773 = vmatpush1.bf16.msra.mxu0 %v3181
        %3774 = vmatprep.subr.bf16.mxu0 %v3190
        %3775 = vmatpush1.bf16.msra.mxu0 %v3189
        %3776 = vmatprep.subr.bf16.mxu0 %v3198
        %3777 = vmatpush1.bf16.msra.mxu0 %v3197
        %3778 = vmatprep.subr.bf16.mxu0 %v3206
        %3779 = vmatpush1.bf16.msra.mxu0 %v3205
        %3780 = vmatprep.subr.bf16.mxu0 %v3214
        %3781 = vmatpush1.bf16.msra.mxu0 %v3213
        %3782 = vmatprep.subr.bf16.mxu0 %v3222
        %3783 = vmatpush1.bf16.msra.mxu0 %v3221
        %3784 = vmatprep.subr.bf16.mxu0 %v3230
        %3785 = vmatpush1.bf16.msra.mxu0 %v3229
        %3786 = vmatprep.subr.bf16.mxu0 %v3238
        %3787 = vmatpush1.bf16.msra.mxu0 %v3237
        %3788 = vmatprep.subr.bf16.mxu0 %v3246
        %3789 = vmatpush1.bf16.msra.mxu0 %v3245
        %3790 = vmatprep.subr.bf16.mxu0 %v3254
        %3791 = vmatpush1.bf16.msra.mxu0 %v3253
        %3792 = vmatprep.subr.bf16.mxu0 %v3262
        %3793 = vmatpush1.bf16.msra.mxu0 %v3261
        %3794 = vmatprep.subr.bf16.mxu0 %v3270
        %3795 = vmatpush1.bf16.msra.mxu0 %v3269
        %3796 = vmatprep.subr.bf16.mxu0 %v3278
        %3797 = vmatpush1.bf16.msra.mxu0 %v3277
        %3798 = vmatprep.subr.bf16.mxu0 %v3286
        %3799 = vmatpush1.bf16.msra.mxu0 %v3285
        %3800 = vmatprep.subr.bf16.mxu0 %v3294
        %3801 = vmatpush1.bf16.msra.mxu0 %v3293
        %3802 = vmatprep.subr.bf16.mxu0 %v3302
        %3803 = vmatpush1.bf16.msra.mxu0 %v3301
        %3804 = vmatprep.mubr.bf16.mxu0 %v3687
        %3805 = vmatmul.mubr.bf16.gmra.mrb[0].mxu0 %v3686
        %v3806 = vpop.f32.mrb[0].mxu0
        %v3807 = vadd.f32 0.0, %v3806
        %v3808 = vpop.f32.mrb[0].mxu0
        %v3809 = vadd.f32 0.0, %v3808
        %v3810 = vpop.f32.mrb[0].mxu0
        %v3811 = vpop.f32.mrb[0].mxu0
        %3812 = vdwg.mxu0
        %3813 = vmatprep.subr.bf16.mxu0 %v3184
        %3814 = vmatpush1.bf16.msra.mxu0 %v3183
        %3815 = vmatprep.subr.bf16.mxu0 %v3192
        %3816 = vmatpush1.bf16.msra.mxu0 %v3191
        %3817 = vmatprep.subr.bf16.mxu0 %v3200
        %3818 = vmatpush1.bf16.msra.mxu0 %v3199
        %3819 = vmatprep.subr.bf16.mxu0 %v3208
        %3820 = vmatpush1.bf16.msra.mxu0 %v3207
        %3821 = vmatprep.subr.bf16.mxu0 %v3216
        %3822 = vmatpush1.bf16.msra.mxu0 %v3215
        %3823 = vmatprep.subr.bf16.mxu0 %v3224
        %3824 = vmatpush1.bf16.msra.mxu0 %v3223
        %3825 = vmatprep.subr.bf16.mxu0 %v3232
        %3826 = vmatpush1.bf16.msra.mxu0 %v3231
        %3827 = vmatprep.subr.bf16.mxu0 %v3240
        %3828 = vmatpush1.bf16.msra.mxu0 %v3239
        %3829 = vmatprep.subr.bf16.mxu0 %v3248
        %3830 = vmatpush1.bf16.msra.mxu0 %v3247
        %3831 = vmatprep.subr.bf16.mxu0 %v3256
        %3832 = vmatpush1.bf16.msra.mxu0 %v3255
        %3833 = vmatprep.subr.bf16.mxu0 %v3264
        %3834 = vmatpush1.bf16.msra.mxu0 %v3263
        %3835 = vmatprep.subr.bf16.mxu0 %v3272
        %3836 = vmatpush1.bf16.msra.mxu0 %v3271
        %3837 = vmatprep.subr.bf16.mxu0 %v3280
        %3838 = vmatpush1.bf16.msra.mxu0 %v3279
        %3839 = vmatprep.subr.bf16.mxu0 %v3288
        %3840 = vmatpush1.bf16.msra.mxu0 %v3287
        %3841 = vmatprep.subr.bf16.mxu0 %v3296
        %3842 = vmatpush1.bf16.msra.mxu0 %v3295
        %3843 = vmatprep.subr.bf16.mxu0 %v3304
        %3844 = vmatpush1.bf16.msra.mxu0 %v3303
        %3845 = vmatprep.mubr.bf16.mxu0 %v3687
        %3846 = vmatmul.mubr.bf16.gmra.mrb[0].mxu0 %v3686
        %v3847 = vpop.f32.mrb[0].mxu0
        %v3848 = vadd.f32 0.0, %v3847
        %v3849 = vpop.f32.mrb[0].mxu0
        %v3850 = vadd.f32 0.0, %v3849
        %v3851 = vpop.f32.mrb[0].mxu0
        %v3852 = vpop.f32.mrb[0].mxu0
        %3853 = vdwg.mxu0
        %v3854 = vadd.f32 %v3674, %v3725
        %v3855 = vadd.f32 %v3675, %v3727
        %v3856 = vadd.f32 %v3676, %v3766
        %v3857 = vadd.f32 %v3677, %v3768
        %v3858 = vadd.f32 %v3678, %v3807
        %v3859 = vadd.f32 %v3679, %v3809
        %v3860 = vadd.f32 %v3680, %v3848
        %v3861 = vadd.f32 %v3681, %v3850
        %v3862 = vxor.u32 %v3854, 2147483648
        %v3863 = vxor.u32 %v3855, 2147483648
        %v3864 = vmul.f32 %v3862, 1.442695
        %v3865 = vpow.pop %v3864
        %v3866 = vmul.f32 %v3863, 1.442695
        %v3867 = vpow.pop %v3866
        %v3868 = vadd.f32 %v3865, 1.0
        %v3869 = vadd.f32 %v3867, 1.0
        %v3870 = vrcp.pop %v3868
        %v3871 = vmul.f32 1.0, %v3870
        %v3872 = vrcp.pop %v3869
        %v3873 = vmul.f32 1.0, %v3872
        %v3874 = vxor.u32 %v3856, 2147483648
        %v3875 = vxor.u32 %v3857, 2147483648
        %v3876 = vmul.f32 %v3874, 1.442695
        %v3877 = vpow.pop %v3876
        %v3878 = vmul.f32 %v3875, 1.442695
        %v3879 = vpow.pop %v3878
        %v3880 = vadd.f32 %v3877, 1.0
        %v3881 = vadd.f32 %v3879, 1.0
        %v3882 = vrcp.pop %v3880
        %v3883 = vmul.f32 1.0, %v3882
        %v3884 = vrcp.pop %v3881
        %v3885 = vmul.f32 1.0, %v3884
        %v3886 = vtanh.pop %v3858
        %v3887 = vtanh.pop %v3859
        %v3888 = vxor.u32 %v3860, 2147483648
        %v3889 = vxor.u32 %v3861, 2147483648
        %v3890 = vmul.f32 %v3888, 1.442695
        %v3891 = vpow.pop %v3890
        %v3892 = vmul.f32 %v3889, 1.442695
        %v3893 = vpow.pop %v3892
        %v3894 = vadd.f32 %v3891, 1.0
        %v3895 = vadd.f32 %v3893, 1.0
        %v3896 = vrcp.pop %v3894
        %v3897 = vmul.f32 1.0, %v3896
        %v3898 = vrcp.pop %v3895
        %v3899 = vmul.f32 1.0, %v3898
        %v3900 = vld [vmem:[#allocation5] sm:$0xff]
        %v3901 = vld [vmem:[#allocation5 + $0x8] sm:$0xff]
        %v3902 = vmul.f32 %v3883, %v3900
        %v3903 = vmul.f32 %v3885, %v3901
        %v3904 = vmul.f32 %v3871, %v3886
        %v3905 = vmul.f32 %v3873, %v3887
        %v3906 = vadd.f32 %v3902, %v3904
        %v3907 = vadd.f32 %v3903, %v3905
        %v3908 = vtanh.pop %v3906
        %v3909 = vtanh.pop %v3907
        %v3910 = vmul.f32 %v3897, %v3908
        %v3911 = vmul.f32 %v3899, %v3909
        %3912 = vst [vmem:[#allocation5] sm:$0xff] %v3906
        %3913 = vst [vmem:[#allocation5 + $0x8] sm:$0xff] %v3907
        %v3914 = vpack.c.bf16 %v3910, %v3910
        %v3915 = vpack.c.bf16 %v3911, %v3911
        %v3918 = vunpack.c.l.b16 %v3914
        %v3919 = vunpack.c.l.b16 %v3915
        %v3920 = vpack.c.b16 %v3919, %v3918
        %3922 = vst [vmem:[#allocation4] sm:$0xff] %v3920
        %s3923 = smul.u32 1, 2
        %s3924 = smul.addr %s3923, 8
        %s3925 = scalar_lea.vmem [#allocation2], %s3924
        %3926 = vst [vmem:[%s3925] sm:$0xff] %v3910
        %3927 = vst [vmem:[%s3925 + $0x8] sm:$0xff] %v3911
        %s3928 = smul.u32 2, 8
        %s3929 = smul.addr %s3928, 8
        %s3930 = scalar_lea.vmem [#allocation3], %s3929
        %v3931 = vld [vmem:[%s3930] sm:$0xff]
        %v3932 = vld [vmem:[%s3930 + $0x8] sm:$0xff]
        %v3933 = vld [vmem:[%s3930 + $0x10] sm:$0xff]
        %v3934 = vld [vmem:[%s3930 + $0x18] sm:$0xff]
        %v3935 = vld [vmem:[%s3930 + $0x20] sm:$0xff]
        %v3936 = vld [vmem:[%s3930 + $0x28] sm:$0xff]
        %v3937 = vld [vmem:[%s3930 + $0x30] sm:$0xff]
        %v3938 = vld [vmem:[%s3930 + $0x38] sm:$0xff]
        %v3939 = vld [vmem:[#allocation4] sm:$0xff]
        %v3941 = vunpack.c.l.b16 %v3939
        %v3942 = vunpack.c.h.b16 %v3939
        %v3943 = vpack.c.b16 %v3941, %v3941
        %v3944 = vpack.c.b16 %v3942, %v3942
        %3947 = vmatprep.subr.bf16.mxu0 %v3178
        %3948 = vmatpush1.bf16.msra.mxu0 %v3177
        %3949 = vmatprep.subr.bf16.mxu0 %v3186
        %3950 = vmatpush1.bf16.msra.mxu0 %v3185
        %3951 = vmatprep.subr.bf16.mxu0 %v3194
        %3952 = vmatpush1.bf16.msra.mxu0 %v3193
        %3953 = vmatprep.subr.bf16.mxu0 %v3202
        %3954 = vmatpush1.bf16.msra.mxu0 %v3201
        %3955 = vmatprep.subr.bf16.mxu0 %v3210
        %3956 = vmatpush1.bf16.msra.mxu0 %v3209
        %3957 = vmatprep.subr.bf16.mxu0 %v3218
        %3958 = vmatpush1.bf16.msra.mxu0 %v3217
        %3959 = vmatprep.subr.bf16.mxu0 %v3226
        %3960 = vmatpush1.bf16.msra.mxu0 %v3225
        %3961 = vmatprep.subr.bf16.mxu0 %v3234
        %3962 = vmatpush1.bf16.msra.mxu0 %v3233
        %3963 = vmatprep.subr.bf16.mxu0 %v3242
        %3964 = vmatpush1.bf16.msra.mxu0 %v3241
        %3965 = vmatprep.subr.bf16.mxu0 %v3250
        %3966 = vmatpush1.bf16.msra.mxu0 %v3249
        %3967 = vmatprep.subr.bf16.mxu0 %v3258
        %3968 = vmatpush1.bf16.msra.mxu0 %v3257
        %3969 = vmatprep.subr.bf16.mxu0 %v3266
        %3970 = vmatpush1.bf16.msra.mxu0 %v3265
        %3971 = vmatprep.subr.bf16.mxu0 %v3274
        %3972 = vmatpush1.bf16.msra.mxu0 %v3273
        %3973 = vmatprep.subr.bf16.mxu0 %v3282
        %3974 = vmatpush1.bf16.msra.mxu0 %v3281
        %3975 = vmatprep.subr.bf16.mxu0 %v3290
        %3976 = vmatpush1.bf16.msra.mxu0 %v3289
        %3977 = vmatprep.subr.bf16.mxu0 %v3298
        %3978 = vmatpush1.bf16.msra.mxu0 %v3297
        %3979 = vmatprep.mubr.bf16.mxu0 %v3944
        %3980 = vmatmul.mubr.bf16.gmra.mrb[0].mxu0 %v3943
        %v3981 = vpop.f32.mrb[0].mxu0
        %v3982 = vadd.f32 0.0, %v3981
        %v3983 = vpop.f32.mrb[0].mxu0
        %v3984 = vadd.f32 0.0, %v3983
        %v3985 = vpop.f32.mrb[0].mxu0
        %v3986 = vpop.f32.mrb[0].mxu0
        %3987 = vdwg.mxu0
        %3988 = vmatprep.subr.bf16.mxu0 %v3180
        %3989 = vmatpush1.bf16.msra.mxu0 %v3179
        %3990 = vmatprep.subr.bf16.mxu0 %v3188
        %3991 = vmatpush1.bf16.msra.mxu0 %v3187
        %3992 = vmatprep.subr.bf16.mxu0 %v3196
        %3993 = vmatpush1.bf16.msra.mxu0 %v3195
        %3994 = vmatprep.subr.bf16.mxu0 %v3204
        %3995 = vmatpush1.bf16.msra.mxu0 %v3203
        %3996 = vmatprep.subr.bf16.mxu0 %v3212
        %3997 = vmatpush1.bf16.msra.mxu0 %v3211
        %3998 = vmatprep.subr.bf16.mxu0 %v3220
        %3999 = vmatpush1.bf16.msra.mxu0 %v3219
        %4000 = vmatprep.subr.bf16.mxu0 %v3228
        %4001 = vmatpush1.bf16.msra.mxu0 %v3227
        %4002 = vmatprep.subr.bf16.mxu0 %v3236
        %4003 = vmatpush1.bf16.msra.mxu0 %v3235
        %4004 = vmatprep.subr.bf16.mxu0 %v3244
        %4005 = vmatpush1.bf16.msra.mxu0 %v3243
        %4006 = vmatprep.subr.bf16.mxu0 %v3252
        %4007 = vmatpush1.bf16.msra.mxu0 %v3251
        %4008 = vmatprep.subr.bf16.mxu0 %v3260
        %4009 = vmatpush1.bf16.msra.mxu0 %v3259
        %4010 = vmatprep.subr.bf16.mxu0 %v3268
        %4011 = vmatpush1.bf16.msra.mxu0 %v3267
        %4012 = vmatprep.subr.bf16.mxu0 %v3276
        %4013 = vmatpush1.bf16.msra.mxu0 %v3275
        %4014 = vmatprep.subr.bf16.mxu0 %v3284
        %4015 = vmatpush1.bf16.msra.mxu0 %v3283
        %4016 = vmatprep.subr.bf16.mxu0 %v3292
        %4017 = vmatpush1.bf16.msra.mxu0 %v3291
        %4018 = vmatprep.subr.bf16.mxu0 %v3300
        %4019 = vmatpush1.bf16.msra.mxu0 %v3299
        %4020 = vmatprep.mubr.bf16.mxu0 %v3944
        %4021 = vmatmul.mubr.bf16.gmra.mrb[0].mxu0 %v3943
        %v4022 = vpop.f32.mrb[0].mxu0
        %v4023 = vadd.f32 0.0, %v4022
        %v4024 = vpop.f32.mrb[0].mxu0
        %v4025 = vadd.f32 0.0, %v4024
        %v4026 = vpop.f32.mrb[0].mxu0
        %v4027 = vpop.f32.mrb[0].mxu0
        %4028 = vdwg.mxu0
        %4029 = vmatprep.subr.bf16.mxu0 %v3182
        %4030 = vmatpush1.bf16.msra.mxu0 %v3181
        %4031 = vmatprep.subr.bf16.mxu0 %v3190
        %4032 = vmatpush1.bf16.msra.mxu0 %v3189
        %4033 = vmatprep.subr.bf16.mxu0 %v3198
        %4034 = vmatpush1.bf16.msra.mxu0 %v3197
        %4035 = vmatprep.subr.bf16.mxu0 %v3206
        %4036 = vmatpush1.bf16.msra.mxu0 %v3205
        %4037 = vmatprep.subr.bf16.mxu0 %v3214
        %4038 = vmatpush1.bf16.msra.mxu0 %v3213
        %4039 = vmatprep.subr.bf16.mxu0 %v3222
        %4040 = vmatpush1.bf16.msra.mxu0 %v3221
        %4041 = vmatprep.subr.bf16.mxu0 %v3230
        %4042 = vmatpush1.bf16.msra.mxu0 %v3229
        %4043 = vmatprep.subr.bf16.mxu0 %v3238
        %4044 = vmatpush1.bf16.msra.mxu0 %v3237
        %4045 = vmatprep.subr.bf16.mxu0 %v3246
        %4046 = vmatpush1.bf16.msra.mxu0 %v3245
        %4047 = vmatprep.subr.bf16.mxu0 %v3254
        %4048 = vmatpush1.bf16.msra.mxu0 %v3253
        %4049 = vmatprep.subr.bf16.mxu0 %v3262
        %4050 = vmatpush1.bf16.msra.mxu0 %v3261
        %4051 = vmatprep.subr.bf16.mxu0 %v3270
        %4052 = vmatpush1.bf16.msra.mxu0 %v3269
        %4053 = vmatprep.subr.bf16.mxu0 %v3278
        %4054 = vmatpush1.bf16.msra.mxu0 %v3277
        %4055 = vmatprep.subr.bf16.mxu0 %v3286
        %4056 = vmatpush1.bf16.msra.mxu0 %v3285
        %4057 = vmatprep.subr.bf16.mxu0 %v3294
        %4058 = vmatpush1.bf16.msra.mxu0 %v3293
        %4059 = vmatprep.subr.bf16.mxu0 %v3302
        %4060 = vmatpush1.bf16.msra.mxu0 %v3301
        %4061 = vmatprep.mubr.bf16.mxu0 %v3944
        %4062 = vmatmul.mubr.bf16.gmra.mrb[0].mxu0 %v3943
        %v4063 = vpop.f32.mrb[0].mxu0
        %v4064 = vadd.f32 0.0, %v4063
        %v4065 = vpop.f32.mrb[0].mxu0
        %v4066 = vadd.f32 0.0, %v4065
        %v4067 = vpop.f32.mrb[0].mxu0
        %v4068 = vpop.f32.mrb[0].mxu0
        %4069 = vdwg.mxu0
        %4070 = vmatprep.subr.bf16.mxu0 %v3184
        %4071 = vmatpush1.bf16.msra.mxu0 %v3183
        %4072 = vmatprep.subr.bf16.mxu0 %v3192
        %4073 = vmatpush1.bf16.msra.mxu0 %v3191
        %4074 = vmatprep.subr.bf16.mxu0 %v3200
        %4075 = vmatpush1.bf16.msra.mxu0 %v3199
        %4076 = vmatprep.subr.bf16.mxu0 %v3208
        %4077 = vmatpush1.bf16.msra.mxu0 %v3207
        %4078 = vmatprep.subr.bf16.mxu0 %v3216
        %4079 = vmatpush1.bf16.msra.mxu0 %v3215
        %4080 = vmatprep.subr.bf16.mxu0 %v3224
        %4081 = vmatpush1.bf16.msra.mxu0 %v3223
        %4082 = vmatprep.subr.bf16.mxu0 %v3232
        %4083 = vmatpush1.bf16.msra.mxu0 %v3231
        %4084 = vmatprep.subr.bf16.mxu0 %v3240
        %4085 = vmatpush1.bf16.msra.mxu0 %v3239
        %4086 = vmatprep.subr.bf16.mxu0 %v3248
        %4087 = vmatpush1.bf16.msra.mxu0 %v3247
        %4088 = vmatprep.subr.bf16.mxu0 %v3256
        %4089 = vmatpush1.bf16.msra.mxu0 %v3255
        %4090 = vmatprep.subr.bf16.mxu0 %v3264
        %4091 = vmatpush1.bf16.msra.mxu0 %v3263
        %4092 = vmatprep.subr.bf16.mxu0 %v3272
        %4093 = vmatpush1.bf16.msra.mxu0 %v3271
        %4094 = vmatprep.subr.bf16.mxu0 %v3280
        %4095 = vmatpush1.bf16.msra.mxu0 %v3279
        %4096 = vmatprep.subr.bf16.mxu0 %v3288
        %4097 = vmatpush1.bf16.msra.mxu0 %v3287
        %4098 = vmatprep.subr.bf16.mxu0 %v3296
        %4099 = vmatpush1.bf16.msra.mxu0 %v3295
        %4100 = vmatprep.subr.bf16.mxu0 %v3304
        %4101 = vmatpush1.bf16.msra.mxu0 %v3303
        %4102 = vmatprep.mubr.bf16.mxu0 %v3944
        %4103 = vmatmul.mubr.bf16.gmra.mrb[0].mxu0 %v3943
        %v4104 = vpop.f32.mrb[0].mxu0
        %v4105 = vadd.f32 0.0, %v4104
        %v4106 = vpop.f32.mrb[0].mxu0
        %v4107 = vadd.f32 0.0, %v4106
        %v4108 = vpop.f32.mrb[0].mxu0
        %v4109 = vpop.f32.mrb[0].mxu0
        %4110 = vdwg.mxu0
        %v4111 = vadd.f32 %v3931, %v3982
        %v4112 = vadd.f32 %v3932, %v3984
        %v4113 = vadd.f32 %v3933, %v4023
        %v4114 = vadd.f32 %v3934, %v4025
        %v4115 = vadd.f32 %v3935, %v4064
        %v4116 = vadd.f32 %v3936, %v4066
        %v4117 = vadd.f32 %v3937, %v4105
        %v4118 = vadd.f32 %v3938, %v4107
        %v4119 = vxor.u32 %v4111, 2147483648
        %v4120 = vxor.u32 %v4112, 2147483648
        %v4121 = vmul.f32 %v4119, 1.442695
        %v4122 = vpow.pop %v4121
        %v4123 = vmul.f32 %v4120, 1.442695
        %v4124 = vpow.pop %v4123
        %v4125 = vadd.f32 %v4122, 1.0
        %v4126 = vadd.f32 %v4124, 1.0
        %v4127 = vrcp.pop %v4125
        %v4128 = vmul.f32 1.0, %v4127
        %v4129 = vrcp.pop %v4126
        %v4130 = vmul.f32 1.0, %v4129
        %v4131 = vxor.u32 %v4113, 2147483648
        %v4132 = vxor.u32 %v4114, 2147483648
        %v4133 = vmul.f32 %v4131, 1.442695
        %v4134 = vpow.pop %v4133
        %v4135 = vmul.f32 %v4132, 1.442695
        %v4136 = vpow.pop %v4135
        %v4137 = vadd.f32 %v4134, 1.0
        %v4138 = vadd.f32 %v4136, 1.0
        %v4139 = vrcp.pop %v4137
        %v4140 = vmul.f32 1.0, %v4139
        %v4141 = vrcp.pop %v4138
        %v4142 = vmul.f32 1.0, %v4141
        %v4143 = vtanh.pop %v4115
        %v4144 = vtanh.pop %v4116
        %v4145 = vxor.u32 %v4117, 2147483648
        %v4146 = vxor.u32 %v4118, 2147483648
        %v4147 = vmul.f32 %v4145, 1.442695
        %v4148 = vpow.pop %v4147
        %v4149 = vmul.f32 %v4146, 1.442695
        %v4150 = vpow.pop %v4149
        %v4151 = vadd.f32 %v4148, 1.0
        %v4152 = vadd.f32 %v4150, 1.0
        %v4153 = vrcp.pop %v4151
        %v4154 = vmul.f32 1.0, %v4153
        %v4155 = vrcp.pop %v4152
        %v4156 = vmul.f32 1.0, %v4155
        %v4157 = vld [vmem:[#allocation5] sm:$0xff]
        %v4158 = vld [vmem:[#allocation5 + $0x8] sm:$0xff]
        %v4159 = vmul.f32 %v4140, %v4157
        %v4160 = vmul.f32 %v4142, %v4158
        %v4161 = vmul.f32 %v4128, %v4143
        %v4162 = vmul.f32 %v4130, %v4144
        %v4163 = vadd.f32 %v4159, %v4161
        %v4164 = vadd.f32 %v4160, %v4162
        %v4165 = vtanh.pop %v4163
        %v4166 = vtanh.pop %v4164
        %v4167 = vmul.f32 %v4154, %v4165
        %v4168 = vmul.f32 %v4156, %v4166
        %4169 = vst [vmem:[#allocation5] sm:$0xff] %v4163
        %4170 = vst [vmem:[#allocation5 + $0x8] sm:$0xff] %v4164
        %v4171 = vpack.c.bf16 %v4167, %v4167
        %v4172 = vpack.c.bf16 %v4168, %v4168
        %v4175 = vunpack.c.l.b16 %v4171
        %v4176 = vunpack.c.l.b16 %v4172
        %v4177 = vpack.c.b16 %v4176, %v4175
        %4179 = vst [vmem:[#allocation4] sm:$0xff] %v4177
        %s4180 = smul.u32 2, 2
        %s4181 = smul.addr %s4180, 8
        %s4182 = scalar_lea.vmem [#allocation2], %s4181
        %4183 = vst [vmem:[%s4182] sm:$0xff] %v4167
        %4184 = vst [vmem:[%s4182 + $0x8] sm:$0xff] %v4168
        %s4185 = smul.u32 3, 8
        %s4186 = smul.addr %s4185, 8
        %s4187 = scalar_lea.vmem [#allocation3], %s4186
        %v4188 = vld [vmem:[%s4187] sm:$0xff]
        %v4189 = vld [vmem:[%s4187 + $0x8] sm:$0xff]
        %v4190 = vld [vmem:[%s4187 + $0x10] sm:$0xff]
        %v4191 = vld [vmem:[%s4187 + $0x18] sm:$0xff]
        %v4192 = vld [vmem:[%s4187 + $0x20] sm:$0xff]
        %v4193 = vld [vmem:[%s4187 + $0x28] sm:$0xff]
        %v4194 = vld [vmem:[%s4187 + $0x30] sm:$0xff]
        %v4195 = vld [vmem:[%s4187 + $0x38] sm:$0xff]
        %v4196 = vld [vmem:[#allocation4] sm:$0xff]
        %v4198 = vunpack.c.l.b16 %v4196
        %v4199 = vunpack.c.h.b16 %v4196
        %v4200 = vpack.c.b16 %v4198, %v4198
        %v4201 = vpack.c.b16 %v4199, %v4199
        %4204 = vmatprep.subr.bf16.mxu0 %v3178
        %4205 = vmatpush1.bf16.msra.mxu0 %v3177
        %4206 = vmatprep.subr.bf16.mxu0 %v3186
        %4207 = vmatpush1.bf16.msra.mxu0 %v3185
        %4208 = vmatprep.subr.bf16.mxu0 %v3194
        %4209 = vmatpush1.bf16.msra.mxu0 %v3193
        %4210 = vmatprep.subr.bf16.mxu0 %v3202
        %4211 = vmatpush1.bf16.msra.mxu0 %v3201
        %4212 = vmatprep.subr.bf16.mxu0 %v3210
        %4213 = vmatpush1.bf16.msra.mxu0 %v3209
        %4214 = vmatprep.subr.bf16.mxu0 %v3218
        %4215 = vmatpush1.bf16.msra.mxu0 %v3217
        %4216 = vmatprep.subr.bf16.mxu0 %v3226
        %4217 = vmatpush1.bf16.msra.mxu0 %v3225
        %4218 = vmatprep.subr.bf16.mxu0 %v3234
        %4219 = vmatpush1.bf16.msra.mxu0 %v3233
        %4220 = vmatprep.subr.bf16.mxu0 %v3242
        %4221 = vmatpush1.bf16.msra.mxu0 %v3241
        %4222 = vmatprep.subr.bf16.mxu0 %v3250
        %4223 = vmatpush1.bf16.msra.mxu0 %v3249
        %4224 = vmatprep.subr.bf16.mxu0 %v3258
        %4225 = vmatpush1.bf16.msra.mxu0 %v3257
        %4226 = vmatprep.subr.bf16.mxu0 %v3266
        %4227 = vmatpush1.bf16.msra.mxu0 %v3265
        %4228 = vmatprep.subr.bf16.mxu0 %v3274
        %4229 = vmatpush1.bf16.msra.mxu0 %v3273
        %4230 = vmatprep.subr.bf16.mxu0 %v3282
        %4231 = vmatpush1.bf16.msra.mxu0 %v3281
        %4232 = vmatprep.subr.bf16.mxu0 %v3290
        %4233 = vmatpush1.bf16.msra.mxu0 %v3289
        %4234 = vmatprep.subr.bf16.mxu0 %v3298
        %4235 = vmatpush1.bf16.msra.mxu0 %v3297
        %4236 = vmatprep.mubr.bf16.mxu0 %v4201
        %4237 = vmatmul.mubr.bf16.gmra.mrb[0].mxu0 %v4200
        %v4238 = vpop.f32.mrb[0].mxu0
        %v4239 = vadd.f32 0.0, %v4238
        %v4240 = vpop.f32.mrb[0].mxu0
        %v4241 = vadd.f32 0.0, %v4240
        %v4242 = vpop.f32.mrb[0].mxu0
        %v4243 = vpop.f32.mrb[0].mxu0
        %4244 = vdwg.mxu0
        %4245 = vmatprep.subr.bf16.mxu0 %v3180
        %4246 = vmatpush1.bf16.msra.mxu0 %v3179
        %4247 = vmatprep.subr.bf16.mxu0 %v3188
        %4248 = vmatpush1.bf16.msra.mxu0 %v3187
        %4249 = vmatprep.subr.bf16.mxu0 %v3196
        %4250 = vmatpush1.bf16.msra.mxu0 %v3195
        %4251 = vmatprep.subr.bf16.mxu0 %v3204
        %4252 = vmatpush1.bf16.msra.mxu0 %v3203
        %4253 = vmatprep.subr.bf16.mxu0 %v3212
        %4254 = vmatpush1.bf16.msra.mxu0 %v3211
        %4255 = vmatprep.subr.bf16.mxu0 %v3220
        %4256 = vmatpush1.bf16.msra.mxu0 %v3219
        %4257 = vmatprep.subr.bf16.mxu0 %v3228
        %4258 = vmatpush1.bf16.msra.mxu0 %v3227
        %4259 = vmatprep.subr.bf16.mxu0 %v3236
        %4260 = vmatpush1.bf16.msra.mxu0 %v3235
        %4261 = vmatprep.subr.bf16.mxu0 %v3244
        %4262 = vmatpush1.bf16.msra.mxu0 %v3243
        %4263 = vmatprep.subr.bf16.mxu0 %v3252
        %4264 = vmatpush1.bf16.msra.mxu0 %v3251
        %4265 = vmatprep.subr.bf16.mxu0 %v3260
        %4266 = vmatpush1.bf16.msra.mxu0 %v3259
        %4267 = vmatprep.subr.bf16.mxu0 %v3268
        %4268 = vmatpush1.bf16.msra.mxu0 %v3267
        %4269 = vmatprep.subr.bf16.mxu0 %v3276
        %4270 = vmatpush1.bf16.msra.mxu0 %v3275
        %4271 = vmatprep.subr.bf16.mxu0 %v3284
        %4272 = vmatpush1.bf16.msra.mxu0 %v3283
        %4273 = vmatprep.subr.bf16.mxu0 %v3292
        %4274 = vmatpush1.bf16.msra.mxu0 %v3291
        %4275 = vmatprep.subr.bf16.mxu0 %v3300
        %4276 = vmatpush1.bf16.msra.mxu0 %v3299
        %4277 = vmatprep.mubr.bf16.mxu0 %v4201
        %4278 = vmatmul.mubr.bf16.gmra.mrb[0].mxu0 %v4200
        %v4279 = vpop.f32.mrb[0].mxu0
        %v4280 = vadd.f32 0.0, %v4279
        %v4281 = vpop.f32.mrb[0].mxu0
        %v4282 = vadd.f32 0.0, %v4281
        %v4283 = vpop.f32.mrb[0].mxu0
        %v4284 = vpop.f32.mrb[0].mxu0
        %4285 = vdwg.mxu0
        %4286 = vmatprep.subr.bf16.mxu0 %v3182
        %4287 = vmatpush1.bf16.msra.mxu0 %v3181
        %4288 = vmatprep.subr.bf16.mxu0 %v3190
        %4289 = vmatpush1.bf16.msra.mxu0 %v3189
        %4290 = vmatprep.subr.bf16.mxu0 %v3198
        %4291 = vmatpush1.bf16.msra.mxu0 %v3197
        %4292 = vmatprep.subr.bf16.mxu0 %v3206
        %4293 = vmatpush1.bf16.msra.mxu0 %v3205
        %4294 = vmatprep.subr.bf16.mxu0 %v3214
        %4295 = vmatpush1.bf16.msra.mxu0 %v3213
        %4296 = vmatprep.subr.bf16.mxu0 %v3222
        %4297 = vmatpush1.bf16.msra.mxu0 %v3221
        %4298 = vmatprep.subr.bf16.mxu0 %v3230
        %4299 = vmatpush1.bf16.msra.mxu0 %v3229
        %4300 = vmatprep.subr.bf16.mxu0 %v3238
        %4301 = vmatpush1.bf16.msra.mxu0 %v3237
        %4302 = vmatprep.subr.bf16.mxu0 %v3246
        %4303 = vmatpush1.bf16.msra.mxu0 %v3245
        %4304 = vmatprep.subr.bf16.mxu0 %v3254
        %4305 = vmatpush1.bf16.msra.mxu0 %v3253
        %4306 = vmatprep.subr.bf16.mxu0 %v3262
        %4307 = vmatpush1.bf16.msra.mxu0 %v3261
        %4308 = vmatprep.subr.bf16.mxu0 %v3270
        %4309 = vmatpush1.bf16.msra.mxu0 %v3269
        %4310 = vmatprep.subr.bf16.mxu0 %v3278
        %4311 = vmatpush1.bf16.msra.mxu0 %v3277
        %4312 = vmatprep.subr.bf16.mxu0 %v3286
        %4313 = vmatpush1.bf16.msra.mxu0 %v3285
        %4314 = vmatprep.subr.bf16.mxu0 %v3294
        %4315 = vmatpush1.bf16.msra.mxu0 %v3293
        %4316 = vmatprep.subr.bf16.mxu0 %v3302
        %4317 = vmatpush1.bf16.msra.mxu0 %v3301
        %4318 = vmatprep.mubr.bf16.mxu0 %v4201
        %4319 = vmatmul.mubr.bf16.gmra.mrb[0].mxu0 %v4200
        %v4320 = vpop.f32.mrb[0].mxu0
        %v4321 = vadd.f32 0.0, %v4320
        %v4322 = vpop.f32.mrb[0].mxu0
        %v4323 = vadd.f32 0.0, %v4322
        %v4324 = vpop.f32.mrb[0].mxu0
        %v4325 = vpop.f32.mrb[0].mxu0
        %4326 = vdwg.mxu0
        %4327 = vmatprep.subr.bf16.mxu0 %v3184
        %4328 = vmatpush1.bf16.msra.mxu0 %v3183
        %4329 = vmatprep.subr.bf16.mxu0 %v3192
        %4330 = vmatpush1.bf16.msra.mxu0 %v3191
        %4331 = vmatprep.subr.bf16.mxu0 %v3200
        %4332 = vmatpush1.bf16.msra.mxu0 %v3199
        %4333 = vmatprep.subr.bf16.mxu0 %v3208
        %4334 = vmatpush1.bf16.msra.mxu0 %v3207
        %4335 = vmatprep.subr.bf16.mxu0 %v3216
        %4336 = vmatpush1.bf16.msra.mxu0 %v3215
        %4337 = vmatprep.subr.bf16.mxu0 %v3224
        %4338 = vmatpush1.bf16.msra.mxu0 %v3223
        %4339 = vmatprep.subr.bf16.mxu0 %v3232
        %4340 = vmatpush1.bf16.msra.mxu0 %v3231
        %4341 = vmatprep.subr.bf16.mxu0 %v3240
        %4342 = vmatpush1.bf16.msra.mxu0 %v3239
        %4343 = vmatprep.subr.bf16.mxu0 %v3248
        %4344 = vmatpush1.bf16.msra.mxu0 %v3247
        %4345 = vmatprep.subr.bf16.mxu0 %v3256
        %4346 = vmatpush1.bf16.msra.mxu0 %v3255
        %4347 = vmatprep.subr.bf16.mxu0 %v3264
        %4348 = vmatpush1.bf16.msra.mxu0 %v3263
        %4349 = vmatprep.subr.bf16.mxu0 %v3272
        %4350 = vmatpush1.bf16.msra.mxu0 %v3271
        %4351 = vmatprep.subr.bf16.mxu0 %v3280
        %4352 = vmatpush1.bf16.msra.mxu0 %v3279
        %4353 = vmatprep.subr.bf16.mxu0 %v3288
        %4354 = vmatpush1.bf16.msra.mxu0 %v3287
        %4355 = vmatprep.subr.bf16.mxu0 %v3296
        %4356 = vmatpush1.bf16.msra.mxu0 %v3295
        %4357 = vmatprep.subr.bf16.mxu0 %v3304
        %4358 = vmatpush1.bf16.msra.mxu0 %v3303
        %4359 = vmatprep.mubr.bf16.mxu0 %v4201
        %4360 = vmatmul.mubr.bf16.gmra.mrb[0].mxu0 %v4200
        %v4361 = vpop.f32.mrb[0].mxu0
        %v4362 = vadd.f32 0.0, %v4361
        %v4363 = vpop.f32.mrb[0].mxu0
        %v4364 = vadd.f32 0.0, %v4363
        %v4365 = vpop.f32.mrb[0].mxu0
        %v4366 = vpop.f32.mrb[0].mxu0
        %4367 = vdwg.mxu0
        %v4368 = vadd.f32 %v4188, %v4239
        %v4369 = vadd.f32 %v4189, %v4241
        %v4370 = vadd.f32 %v4190, %v4280
        %v4371 = vadd.f32 %v4191, %v4282
        %v4372 = vadd.f32 %v4192, %v4321
        %v4373 = vadd.f32 %v4193, %v4323
        %v4374 = vadd.f32 %v4194, %v4362
        %v4375 = vadd.f32 %v4195, %v4364
        %v4376 = vxor.u32 %v4368, 2147483648
        %v4377 = vxor.u32 %v4369, 2147483648
        %v4378 = vmul.f32 %v4376, 1.442695
        %v4379 = vpow.pop %v4378
        %v4380 = vmul.f32 %v4377, 1.442695
        %v4381 = vpow.pop %v4380
        %v4382 = vadd.f32 %v4379, 1.0
        %v4383 = vadd.f32 %v4381, 1.0
        %v4384 = vrcp.pop %v4382
        %v4385 = vmul.f32 1.0, %v4384
        %v4386 = vrcp.pop %v4383
        %v4387 = vmul.f32 1.0, %v4386
        %v4388 = vxor.u32 %v4370, 2147483648
        %v4389 = vxor.u32 %v4371, 2147483648
        %v4390 = vmul.f32 %v4388, 1.442695
        %v4391 = vpow.pop %v4390
        %v4392 = vmul.f32 %v4389, 1.442695
        %v4393 = vpow.pop %v4392
        %v4394 = vadd.f32 %v4391, 1.0
        %v4395 = vadd.f32 %v4393, 1.0
        %v4396 = vrcp.pop %v4394
        %v4397 = vmul.f32 1.0, %v4396
        %v4398 = vrcp.pop %v4395
        %v4399 = vmul.f32 1.0, %v4398
        %v4400 = vtanh.pop %v4372
        %v4401 = vtanh.pop %v4373
        %v4402 = vxor.u32 %v4374, 2147483648
        %v4403 = vxor.u32 %v4375, 2147483648
        %v4404 = vmul.f32 %v4402, 1.442695
        %v4405 = vpow.pop %v4404
        %v4406 = vmul.f32 %v4403, 1.442695
        %v4407 = vpow.pop %v4406
        %v4408 = vadd.f32 %v4405, 1.0
        %v4409 = vadd.f32 %v4407, 1.0
        %v4410 = vrcp.pop %v4408
        %v4411 = vmul.f32 1.0, %v4410
        %v4412 = vrcp.pop %v4409
        %v4413 = vmul.f32 1.0, %v4412
        %v4414 = vld [vmem:[#allocation5] sm:$0xff]
        %v4415 = vld [vmem:[#allocation5 + $0x8] sm:$0xff]
        %v4416 = vmul.f32 %v4397, %v4414
        %v4417 = vmul.f32 %v4399, %v4415
        %v4418 = vmul.f32 %v4385, %v4400
        %v4419 = vmul.f32 %v4387, %v4401
        %v4420 = vadd.f32 %v4416, %v4418
        %v4421 = vadd.f32 %v4417, %v4419
        %v4422 = vtanh.pop %v4420
        %v4423 = vtanh.pop %v4421
        %v4424 = vmul.f32 %v4411, %v4422
        %v4425 = vmul.f32 %v4413, %v4423
        %4426 = vst [vmem:[#allocation5] sm:$0xff] %v4420
        %4427 = vst [vmem:[#allocation5 + $0x8] sm:$0xff] %v4421
        %v4428 = vpack.c.bf16 %v4424, %v4424
        %v4429 = vpack.c.bf16 %v4425, %v4425
        %v4432 = vunpack.c.l.b16 %v4428
        %v4433 = vunpack.c.l.b16 %v4429
        %v4434 = vpack.c.b16 %v4433, %v4432
        %4436 = vst [vmem:[#allocation4] sm:$0xff] %v4434
        %s4437 = smul.u32 3, 2
        %s4438 = smul.addr %s4437, 8
        %s4439 = scalar_lea.vmem [#allocation2], %s4438
        %4440 = vst [vmem:[%s4439] sm:$0xff] %v4424
        %4441 = vst [vmem:[%s4439 + $0x8] sm:$0xff] %v4425
        %s4442 = smul.u32 4, 8
        %s4443 = smul.addr %s4442, 8
        %s4444 = scalar_lea.vmem [#allocation3], %s4443
        %v4445 = vld [vmem:[%s4444] sm:$0xff]
        %v4446 = vld [vmem:[%s4444 + $0x8] sm:$0xff]
        %v4447 = vld [vmem:[%s4444 + $0x10] sm:$0xff]
        %v4448 = vld [vmem:[%s4444 + $0x18] sm:$0xff]
        %v4449 = vld [vmem:[%s4444 + $0x20] sm:$0xff]
        %v4450 = vld [vmem:[%s4444 + $0x28] sm:$0xff]
        %v4451 = vld [vmem:[%s4444 + $0x30] sm:$0xff]
        %v4452 = vld [vmem:[%s4444 + $0x38] sm:$0xff]
        %v4453 = vld [vmem:[#allocation4] sm:$0xff]
        %v4455 = vunpack.c.l.b16 %v4453
        %v4456 = vunpack.c.h.b16 %v4453
        %v4457 = vpack.c.b16 %v4455, %v4455
        %v4458 = vpack.c.b16 %v4456, %v4456
        %4461 = vmatprep.subr.bf16.mxu0 %v3178
        %4462 = vmatpush1.bf16.msra.mxu0 %v3177
        %4463 = vmatprep.subr.bf16.mxu0 %v3186
        %4464 = vmatpush1.bf16.msra.mxu0 %v3185
        %4465 = vmatprep.subr.bf16.mxu0 %v3194
        %4466 = vmatpush1.bf16.msra.mxu0 %v3193
        %4467 = vmatprep.subr.bf16.mxu0 %v3202
        %4468 = vmatpush1.bf16.msra.mxu0 %v3201
        %4469 = vmatprep.subr.bf16.mxu0 %v3210
        %4470 = vmatpush1.bf16.msra.mxu0 %v3209
        %4471 = vmatprep.subr.bf16.mxu0 %v3218
        %4472 = vmatpush1.bf16.msra.mxu0 %v3217
        %4473 = vmatprep.subr.bf16.mxu0 %v3226
        %4474 = vmatpush1.bf16.msra.mxu0 %v3225
        %4475 = vmatprep.subr.bf16.mxu0 %v3234
        %4476 = vmatpush1.bf16.msra.mxu0 %v3233
        %4477 = vmatprep.subr.bf16.mxu0 %v3242
        %4478 = vmatpush1.bf16.msra.mxu0 %v3241
        %4479 = vmatprep.subr.bf16.mxu0 %v3250
        %4480 = vmatpush1.bf16.msra.mxu0 %v3249
        %4481 = vmatprep.subr.bf16.mxu0 %v3258
        %4482 = vmatpush1.bf16.msra.mxu0 %v3257
        %4483 = vmatprep.subr.bf16.mxu0 %v3266
        %4484 = vmatpush1.bf16.msra.mxu0 %v3265
        %4485 = vmatprep.subr.bf16.mxu0 %v3274
        %4486 = vmatpush1.bf16.msra.mxu0 %v3273
        %4487 = vmatprep.subr.bf16.mxu0 %v3282
        %4488 = vmatpush1.bf16.msra.mxu0 %v3281
        %4489 = vmatprep.subr.bf16.mxu0 %v3290
        %4490 = vmatpush1.bf16.msra.mxu0 %v3289
        %4491 = vmatprep.subr.bf16.mxu0 %v3298
        %4492 = vmatpush1.bf16.msra.mxu0 %v3297
        %4493 = vmatprep.mubr.bf16.mxu0 %v4458
        %4494 = vmatmul.mubr.bf16.gmra.mrb[0].mxu0 %v4457
        %v4495 = vpop.f32.mrb[0].mxu0
        %v4496 = vadd.f32 0.0, %v4495
        %v4497 = vpop.f32.mrb[0].mxu0
        %v4498 = vadd.f32 0.0, %v4497
        %v4499 = vpop.f32.mrb[0].mxu0
        %v4500 = vpop.f32.mrb[0].mxu0
        %4501 = vdwg.mxu0
        %4502 = vmatprep.subr.bf16.mxu0 %v3180
        %4503 = vmatpush1.bf16.msra.mxu0 %v3179
        %4504 = vmatprep.subr.bf16.mxu0 %v3188
        %4505 = vmatpush1.bf16.msra.mxu0 %v3187
        %4506 = vmatprep.subr.bf16.mxu0 %v3196
        %4507 = vmatpush1.bf16.msra.mxu0 %v3195
        %4508 = vmatprep.subr.bf16.mxu0 %v3204
        %4509 = vmatpush1.bf16.msra.mxu0 %v3203
        %4510 = vmatprep.subr.bf16.mxu0 %v3212
        %4511 = vmatpush1.bf16.msra.mxu0 %v3211
        %4512 = vmatprep.subr.bf16.mxu0 %v3220
        %4513 = vmatpush1.bf16.msra.mxu0 %v3219
        %4514 = vmatprep.subr.bf16.mxu0 %v3228
        %4515 = vmatpush1.bf16.msra.mxu0 %v3227
        %4516 = vmatprep.subr.bf16.mxu0 %v3236
        %4517 = vmatpush1.bf16.msra.mxu0 %v3235
        %4518 = vmatprep.subr.bf16.mxu0 %v3244
        %4519 = vmatpush1.bf16.msra.mxu0 %v3243
        %4520 = vmatprep.subr.bf16.mxu0 %v3252
        %4521 = vmatpush1.bf16.msra.mxu0 %v3251
        %4522 = vmatprep.subr.bf16.mxu0 %v3260
        %4523 = vmatpush1.bf16.msra.mxu0 %v3259
        %4524 = vmatprep.subr.bf16.mxu0 %v3268
        %4525 = vmatpush1.bf16.msra.mxu0 %v3267
        %4526 = vmatprep.subr.bf16.mxu0 %v3276
        %4527 = vmatpush1.bf16.msra.mxu0 %v3275
        %4528 = vmatprep.subr.bf16.mxu0 %v3284
        %4529 = vmatpush1.bf16.msra.mxu0 %v3283
        %4530 = vmatprep.subr.bf16.mxu0 %v3292
        %4531 = vmatpush1.bf16.msra.mxu0 %v3291
        %4532 = vmatprep.subr.bf16.mxu0 %v3300
        %4533 = vmatpush1.bf16.msra.mxu0 %v3299
        %4534 = vmatprep.mubr.bf16.mxu0 %v4458
        %4535 = vmatmul.mubr.bf16.gmra.mrb[0].mxu0 %v4457
        %v4536 = vpop.f32.mrb[0].mxu0
        %v4537 = vadd.f32 0.0, %v4536
        %v4538 = vpop.f32.mrb[0].mxu0
        %v4539 = vadd.f32 0.0, %v4538
        %v4540 = vpop.f32.mrb[0].mxu0
        %v4541 = vpop.f32.mrb[0].mxu0
        %4542 = vdwg.mxu0
        %4543 = vmatprep.subr.bf16.mxu0 %v3182
        %4544 = vmatpush1.bf16.msra.mxu0 %v3181
        %4545 = vmatprep.subr.bf16.mxu0 %v3190
        %4546 = vmatpush1.bf16.msra.mxu0 %v3189
        %4547 = vmatprep.subr.bf16.mxu0 %v3198
        %4548 = vmatpush1.bf16.msra.mxu0 %v3197
        %4549 = vmatprep.subr.bf16.mxu0 %v3206
        %4550 = vmatpush1.bf16.msra.mxu0 %v3205
        %4551 = vmatprep.subr.bf16.mxu0 %v3214
        %4552 = vmatpush1.bf16.msra.mxu0 %v3213
        %4553 = vmatprep.subr.bf16.mxu0 %v3222
        %4554 = vmatpush1.bf16.msra.mxu0 %v3221
        %4555 = vmatprep.subr.bf16.mxu0 %v3230
        %4556 = vmatpush1.bf16.msra.mxu0 %v3229
        %4557 = vmatprep.subr.bf16.mxu0 %v3238
        %4558 = vmatpush1.bf16.msra.mxu0 %v3237
        %4559 = vmatprep.subr.bf16.mxu0 %v3246
        %4560 = vmatpush1.bf16.msra.mxu0 %v3245
        %4561 = vmatprep.subr.bf16.mxu0 %v3254
        %4562 = vmatpush1.bf16.msra.mxu0 %v3253
        %4563 = vmatprep.subr.bf16.mxu0 %v3262
        %4564 = vmatpush1.bf16.msra.mxu0 %v3261
        %4565 = vmatprep.subr.bf16.mxu0 %v3270
        %4566 = vmatpush1.bf16.msra.mxu0 %v3269
        %4567 = vmatprep.subr.bf16.mxu0 %v3278
        %4568 = vmatpush1.bf16.msra.mxu0 %v3277
        %4569 = vmatprep.subr.bf16.mxu0 %v3286
        %4570 = vmatpush1.bf16.msra.mxu0 %v3285
        %4571 = vmatprep.subr.bf16.mxu0 %v3294
        %4572 = vmatpush1.bf16.msra.mxu0 %v3293
        %4573 = vmatprep.subr.bf16.mxu0 %v3302
        %4574 = vmatpush1.bf16.msra.mxu0 %v3301
        %4575 = vmatprep.mubr.bf16.mxu0 %v4458
        %4576 = vmatmul.mubr.bf16.gmra.mrb[0].mxu0 %v4457
        %v4577 = vpop.f32.mrb[0].mxu0
        %v4578 = vadd.f32 0.0, %v4577
        %v4579 = vpop.f32.mrb[0].mxu0
        %v4580 = vadd.f32 0.0, %v4579
        %v4581 = vpop.f32.mrb[0].mxu0
        %v4582 = vpop.f32.mrb[0].mxu0
        %4583 = vdwg.mxu0
        %4584 = vmatprep.subr.bf16.mxu0 %v3184
        %4585 = vmatpush1.bf16.msra.mxu0 %v3183
        %4586 = vmatprep.subr.bf16.mxu0 %v3192
        %4587 = vmatpush1.bf16.msra.mxu0 %v3191
        %4588 = vmatprep.subr.bf16.mxu0 %v3200
        %4589 = vmatpush1.bf16.msra.mxu0 %v3199
        %4590 = vmatprep.subr.bf16.mxu0 %v3208
        %4591 = vmatpush1.bf16.msra.mxu0 %v3207
        %4592 = vmatprep.subr.bf16.mxu0 %v3216
        %4593 = vmatpush1.bf16.msra.mxu0 %v3215
        %4594 = vmatprep.subr.bf16.mxu0 %v3224
        %4595 = vmatpush1.bf16.msra.mxu0 %v3223
        %4596 = vmatprep.subr.bf16.mxu0 %v3232
        %4597 = vmatpush1.bf16.msra.mxu0 %v3231
        %4598 = vmatprep.subr.bf16.mxu0 %v3240
        %4599 = vmatpush1.bf16.msra.mxu0 %v3239
        %4600 = vmatprep.subr.bf16.mxu0 %v3248
        %4601 = vmatpush1.bf16.msra.mxu0 %v3247
        %4602 = vmatprep.subr.bf16.mxu0 %v3256
        %4603 = vmatpush1.bf16.msra.mxu0 %v3255
        %4604 = vmatprep.subr.bf16.mxu0 %v3264
        %4605 = vmatpush1.bf16.msra.mxu0 %v3263
        %4606 = vmatprep.subr.bf16.mxu0 %v3272
        %4607 = vmatpush1.bf16.msra.mxu0 %v3271
        %4608 = vmatprep.subr.bf16.mxu0 %v3280
        %4609 = vmatpush1.bf16.msra.mxu0 %v3279
        %4610 = vmatprep.subr.bf16.mxu0 %v3288
        %4611 = vmatpush1.bf16.msra.mxu0 %v3287
        %4612 = vmatprep.subr.bf16.mxu0 %v3296
        %4613 = vmatpush1.bf16.msra.mxu0 %v3295
        %4614 = vmatprep.subr.bf16.mxu0 %v3304
        %4615 = vmatpush1.bf16.msra.mxu0 %v3303
        %4616 = vmatprep.mubr.bf16.mxu0 %v4458
        %4617 = vmatmul.mubr.bf16.gmra.mrb[0].mxu0 %v4457
        %v4618 = vpop.f32.mrb[0].mxu0
        %v4619 = vadd.f32 0.0, %v4618
        %v4620 = vpop.f32.mrb[0].mxu0
        %v4621 = vadd.f32 0.0, %v4620
        %v4622 = vpop.f32.mrb[0].mxu0
        %v4623 = vpop.f32.mrb[0].mxu0
        %4624 = vdwg.mxu0
        %v4625 = vadd.f32 %v4445, %v4496
        %v4626 = vadd.f32 %v4446, %v4498
        %v4627 = vadd.f32 %v4447, %v4537
        %v4628 = vadd.f32 %v4448, %v4539
        %v4629 = vadd.f32 %v4449, %v4578
        %v4630 = vadd.f32 %v4450, %v4580
        %v4631 = vadd.f32 %v4451, %v4619
        %v4632 = vadd.f32 %v4452, %v4621
        %v4633 = vxor.u32 %v4625, 2147483648
        %v4634 = vxor.u32 %v4626, 2147483648
        %v4635 = vmul.f32 %v4633, 1.442695
        %v4636 = vpow.pop %v4635
        %v4637 = vmul.f32 %v4634, 1.442695
        %v4638 = vpow.pop %v4637
        %v4639 = vadd.f32 %v4636, 1.0
        %v4640 = vadd.f32 %v4638, 1.0
        %v4641 = vrcp.pop %v4639
        %v4642 = vmul.f32 1.0, %v4641
        %v4643 = vrcp.pop %v4640
        %v4644 = vmul.f32 1.0, %v4643
        %v4645 = vxor.u32 %v4627, 2147483648
        %v4646 = vxor.u32 %v4628, 2147483648
        %v4647 = vmul.f32 %v4645, 1.442695
        %v4648 = vpow.pop %v4647
        %v4649 = vmul.f32 %v4646, 1.442695
        %v4650 = vpow.pop %v4649
        %v4651 = vadd.f32 %v4648, 1.0
        %v4652 = vadd.f32 %v4650, 1.0
        %v4653 = vrcp.pop %v4651
        %v4654 = vmul.f32 1.0, %v4653
        %v4655 = vrcp.pop %v4652
        %v4656 = vmul.f32 1.0, %v4655
        %v4657 = vtanh.pop %v4629
        %v4658 = vtanh.pop %v4630
        %v4659 = vxor.u32 %v4631, 2147483648
        %v4660 = vxor.u32 %v4632, 2147483648
        %v4661 = vmul.f32 %v4659, 1.442695
        %v4662 = vpow.pop %v4661
        %v4663 = vmul.f32 %v4660, 1.442695
        %v4664 = vpow.pop %v4663
        %v4665 = vadd.f32 %v4662, 1.0
        %v4666 = vadd.f32 %v4664, 1.0
        %v4667 = vrcp.pop %v4665
        %v4668 = vmul.f32 1.0, %v4667
        %v4669 = vrcp.pop %v4666
        %v4670 = vmul.f32 1.0, %v4669
        %v4671 = vld [vmem:[#allocation5] sm:$0xff]
        %v4672 = vld [vmem:[#allocation5 + $0x8] sm:$0xff]
        %v4673 = vmul.f32 %v4654, %v4671
        %v4674 = vmul.f32 %v4656, %v4672
        %v4675 = vmul.f32 %v4642, %v4657
        %v4676 = vmul.f32 %v4644, %v4658
        %v4677 = vadd.f32 %v4673, %v4675
        %v4678 = vadd.f32 %v4674, %v4676
        %v4679 = vtanh.pop %v4677
        %v4680 = vtanh.pop %v4678
        %v4681 = vmul.f32 %v4668, %v4679
        %v4682 = vmul.f32 %v4670, %v4680
        %4683 = vst [vmem:[#allocation5] sm:$0xff] %v4677
        %4684 = vst [vmem:[#allocation5 + $0x8] sm:$0xff] %v4678
        %v4685 = vpack.c.bf16 %v4681, %v4681
        %v4686 = vpack.c.bf16 %v4682, %v4682
        %v4689 = vunpack.c.l.b16 %v4685
        %v4690 = vunpack.c.l.b16 %v4686
        %v4691 = vpack.c.b16 %v4690, %v4689
        %4693 = vst [vmem:[#allocation4] sm:$0xff] %v4691
        %s4694 = smul.u32 4, 2
        %s4695 = smul.addr %s4694, 8
        %s4696 = scalar_lea.vmem [#allocation2], %s4695
        %4697 = vst [vmem:[%s4696] sm:$0xff] %v4681
        %4698 = vst [vmem:[%s4696 + $0x8] sm:$0xff] %v4682
        %s4699 = smul.u32 5, 8
        %s4700 = smul.addr %s4699, 8
        %s4701 = scalar_lea.vmem [#allocation3], %s4700
        %v4702 = vld [vmem:[%s4701] sm:$0xff]
        %v4703 = vld [vmem:[%s4701 + $0x8] sm:$0xff]
        %v4704 = vld [vmem:[%s4701 + $0x10] sm:$0xff]
        %v4705 = vld [vmem:[%s4701 + $0x18] sm:$0xff]
        %v4706 = vld [vmem:[%s4701 + $0x20] sm:$0xff]
        %v4707 = vld [vmem:[%s4701 + $0x28] sm:$0xff]
        %v4708 = vld [vmem:[%s4701 + $0x30] sm:$0xff]
        %v4709 = vld [vmem:[%s4701 + $0x38] sm:$0xff]
        %v4710 = vld [vmem:[#allocation4] sm:$0xff]
        %v4712 = vunpack.c.l.b16 %v4710
        %v4713 = vunpack.c.h.b16 %v4710
        %v4714 = vpack.c.b16 %v4712, %v4712
        %v4715 = vpack.c.b16 %v4713, %v4713
        %4718 = vmatprep.subr.bf16.mxu0 %v3178
        %4719 = vmatpush1.bf16.msra.mxu0 %v3177
        %4720 = vmatprep.subr.bf16.mxu0 %v3186
        %4721 = vmatpush1.bf16.msra.mxu0 %v3185
        %4722 = vmatprep.subr.bf16.mxu0 %v3194
        %4723 = vmatpush1.bf16.msra.mxu0 %v3193
        %4724 = vmatprep.subr.bf16.mxu0 %v3202
        %4725 = vmatpush1.bf16.msra.mxu0 %v3201
        %4726 = vmatprep.subr.bf16.mxu0 %v3210
        %4727 = vmatpush1.bf16.msra.mxu0 %v3209
        %4728 = vmatprep.subr.bf16.mxu0 %v3218
        %4729 = vmatpush1.bf16.msra.mxu0 %v3217
        %4730 = vmatprep.subr.bf16.mxu0 %v3226
        %4731 = vmatpush1.bf16.msra.mxu0 %v3225
        %4732 = vmatprep.subr.bf16.mxu0 %v3234
        %4733 = vmatpush1.bf16.msra.mxu0 %v3233
        %4734 = vmatprep.subr.bf16.mxu0 %v3242
        %4735 = vmatpush1.bf16.msra.mxu0 %v3241
        %4736 = vmatprep.subr.bf16.mxu0 %v3250
        %4737 = vmatpush1.bf16.msra.mxu0 %v3249
        %4738 = vmatprep.subr.bf16.mxu0 %v3258
        %4739 = vmatpush1.bf16.msra.mxu0 %v3257
        %4740 = vmatprep.subr.bf16.mxu0 %v3266
        %4741 = vmatpush1.bf16.msra.mxu0 %v3265
        %4742 = vmatprep.subr.bf16.mxu0 %v3274
        %4743 = vmatpush1.bf16.msra.mxu0 %v3273
        %4744 = vmatprep.subr.bf16.mxu0 %v3282
        %4745 = vmatpush1.bf16.msra.mxu0 %v3281
        %4746 = vmatprep.subr.bf16.mxu0 %v3290
        %4747 = vmatpush1.bf16.msra.mxu0 %v3289
        %4748 = vmatprep.subr.bf16.mxu0 %v3298
        %4749 = vmatpush1.bf16.msra.mxu0 %v3297
        %4750 = vmatprep.mubr.bf16.mxu0 %v4715
        %4751 = vmatmul.mubr.bf16.gmra.mrb[0].mxu0 %v4714
        %v4752 = vpop.f32.mrb[0].mxu0
        %v4753 = vadd.f32 0.0, %v4752
        %v4754 = vpop.f32.mrb[0].mxu0
        %v4755 = vadd.f32 0.0, %v4754
        %v4756 = vpop.f32.mrb[0].mxu0
        %v4757 = vpop.f32.mrb[0].mxu0
        %4758 = vdwg.mxu0
        %4759 = vmatprep.subr.bf16.mxu0 %v3180
        %4760 = vmatpush1.bf16.msra.mxu0 %v3179
        %4761 = vmatprep.subr.bf16.mxu0 %v3188
        %4762 = vmatpush1.bf16.msra.mxu0 %v3187
        %4763 = vmatprep.subr.bf16.mxu0 %v3196
        %4764 = vmatpush1.bf16.msra.mxu0 %v3195
        %4765 = vmatprep.subr.bf16.mxu0 %v3204
        %4766 = vmatpush1.bf16.msra.mxu0 %v3203
        %4767 = vmatprep.subr.bf16.mxu0 %v3212
        %4768 = vmatpush1.bf16.msra.mxu0 %v3211
        %4769 = vmatprep.subr.bf16.mxu0 %v3220
        %4770 = vmatpush1.bf16.msra.mxu0 %v3219
        %4771 = vmatprep.subr.bf16.mxu0 %v3228
        %4772 = vmatpush1.bf16.msra.mxu0 %v3227
        %4773 = vmatprep.subr.bf16.mxu0 %v3236
        %4774 = vmatpush1.bf16.msra.mxu0 %v3235
        %4775 = vmatprep.subr.bf16.mxu0 %v3244
        %4776 = vmatpush1.bf16.msra.mxu0 %v3243
        %4777 = vmatprep.subr.bf16.mxu0 %v3252
        %4778 = vmatpush1.bf16.msra.mxu0 %v3251
        %4779 = vmatprep.subr.bf16.mxu0 %v3260
        %4780 = vmatpush1.bf16.msra.mxu0 %v3259
        %4781 = vmatprep.subr.bf16.mxu0 %v3268
        %4782 = vmatpush1.bf16.msra.mxu0 %v3267
        %4783 = vmatprep.subr.bf16.mxu0 %v3276
        %4784 = vmatpush1.bf16.msra.mxu0 %v3275
        %4785 = vmatprep.subr.bf16.mxu0 %v3284
        %4786 = vmatpush1.bf16.msra.mxu0 %v3283
        %4787 = vmatprep.subr.bf16.mxu0 %v3292
        %4788 = vmatpush1.bf16.msra.mxu0 %v3291
        %4789 = vmatprep.subr.bf16.mxu0 %v3300
        %4790 = vmatpush1.bf16.msra.mxu0 %v3299
        %4791 = vmatprep.mubr.bf16.mxu0 %v4715
        %4792 = vmatmul.mubr.bf16.gmra.mrb[0].mxu0 %v4714
        %v4793 = vpop.f32.mrb[0].mxu0
        %v4794 = vadd.f32 0.0, %v4793
        %v4795 = vpop.f32.mrb[0].mxu0
        %v4796 = vadd.f32 0.0, %v4795
        %v4797 = vpop.f32.mrb[0].mxu0
        %v4798 = vpop.f32.mrb[0].mxu0
        %4799 = vdwg.mxu0
        %4800 = vmatprep.subr.bf16.mxu0 %v3182
        %4801 = vmatpush1.bf16.msra.mxu0 %v3181
        %4802 = vmatprep.subr.bf16.mxu0 %v3190
        %4803 = vmatpush1.bf16.msra.mxu0 %v3189
        %4804 = vmatprep.subr.bf16.mxu0 %v3198
        %4805 = vmatpush1.bf16.msra.mxu0 %v3197
        %4806 = vmatprep.subr.bf16.mxu0 %v3206
        %4807 = vmatpush1.bf16.msra.mxu0 %v3205
        %4808 = vmatprep.subr.bf16.mxu0 %v3214
        %4809 = vmatpush1.bf16.msra.mxu0 %v3213
        %4810 = vmatprep.subr.bf16.mxu0 %v3222
        %4811 = vmatpush1.bf16.msra.mxu0 %v3221
        %4812 = vmatprep.subr.bf16.mxu0 %v3230
        %4813 = vmatpush1.bf16.msra.mxu0 %v3229
        %4814 = vmatprep.subr.bf16.mxu0 %v3238
        %4815 = vmatpush1.bf16.msra.mxu0 %v3237
        %4816 = vmatprep.subr.bf16.mxu0 %v3246
        %4817 = vmatpush1.bf16.msra.mxu0 %v3245
        %4818 = vmatprep.subr.bf16.mxu0 %v3254
        %4819 = vmatpush1.bf16.msra.mxu0 %v3253
        %4820 = vmatprep.subr.bf16.mxu0 %v3262
        %4821 = vmatpush1.bf16.msra.mxu0 %v3261
        %4822 = vmatprep.subr.bf16.mxu0 %v3270
        %4823 = vmatpush1.bf16.msra.mxu0 %v3269
        %4824 = vmatprep.subr.bf16.mxu0 %v3278
        %4825 = vmatpush1.bf16.msra.mxu0 %v3277
        %4826 = vmatprep.subr.bf16.mxu0 %v3286
        %4827 = vmatpush1.bf16.msra.mxu0 %v3285
        %4828 = vmatprep.subr.bf16.mxu0 %v3294
        %4829 = vmatpush1.bf16.msra.mxu0 %v3293
        %4830 = vmatprep.subr.bf16.mxu0 %v3302
        %4831 = vmatpush1.bf16.msra.mxu0 %v3301
        %4832 = vmatprep.mubr.bf16.mxu0 %v4715
        %4833 = vmatmul.mubr.bf16.gmra.mrb[0].mxu0 %v4714
        %v4834 = vpop.f32.mrb[0].mxu0
        %v4835 = vadd.f32 0.0, %v4834
        %v4836 = vpop.f32.mrb[0].mxu0
        %v4837 = vadd.f32 0.0, %v4836
        %v4838 = vpop.f32.mrb[0].mxu0
        %v4839 = vpop.f32.mrb[0].mxu0
        %4840 = vdwg.mxu0
        %4841 = vmatprep.subr.bf16.mxu0 %v3184
        %4842 = vmatpush1.bf16.msra.mxu0 %v3183
        %4843 = vmatprep.subr.bf16.mxu0 %v3192
        %4844 = vmatpush1.bf16.msra.mxu0 %v3191
        %4845 = vmatprep.subr.bf16.mxu0 %v3200
        %4846 = vmatpush1.bf16.msra.mxu0 %v3199
        %4847 = vmatprep.subr.bf16.mxu0 %v3208
        %4848 = vmatpush1.bf16.msra.mxu0 %v3207
        %4849 = vmatprep.subr.bf16.mxu0 %v3216
        %4850 = vmatpush1.bf16.msra.mxu0 %v3215
        %4851 = vmatprep.subr.bf16.mxu0 %v3224
        %4852 = vmatpush1.bf16.msra.mxu0 %v3223
        %4853 = vmatprep.subr.bf16.mxu0 %v3232
        %4854 = vmatpush1.bf16.msra.mxu0 %v3231
        %4855 = vmatprep.subr.bf16.mxu0 %v3240
        %4856 = vmatpush1.bf16.msra.mxu0 %v3239
        %4857 = vmatprep.subr.bf16.mxu0 %v3248
        %4858 = vmatpush1.bf16.msra.mxu0 %v3247
        %4859 = vmatprep.subr.bf16.mxu0 %v3256
        %4860 = vmatpush1.bf16.msra.mxu0 %v3255
        %4861 = vmatprep.subr.bf16.mxu0 %v3264
        %4862 = vmatpush1.bf16.msra.mxu0 %v3263
        %4863 = vmatprep.subr.bf16.mxu0 %v3272
        %4864 = vmatpush1.bf16.msra.mxu0 %v3271
        %4865 = vmatprep.subr.bf16.mxu0 %v3280
        %4866 = vmatpush1.bf16.msra.mxu0 %v3279
        %4867 = vmatprep.subr.bf16.mxu0 %v3288
        %4868 = vmatpush1.bf16.msra.mxu0 %v3287
        %4869 = vmatprep.subr.bf16.mxu0 %v3296
        %4870 = vmatpush1.bf16.msra.mxu0 %v3295
        %4871 = vmatprep.subr.bf16.mxu0 %v3304
        %4872 = vmatpush1.bf16.msra.mxu0 %v3303
        %4873 = vmatprep.mubr.bf16.mxu0 %v4715
        %4874 = vmatmul.mubr.bf16.gmra.mrb[0].mxu0 %v4714
        %v4875 = vpop.f32.mrb[0].mxu0
        %v4876 = vadd.f32 0.0, %v4875
        %v4877 = vpop.f32.mrb[0].mxu0
        %v4878 = vadd.f32 0.0, %v4877
        %v4879 = vpop.f32.mrb[0].mxu0
        %v4880 = vpop.f32.mrb[0].mxu0
        %4881 = vdwg.mxu0
        %v4882 = vadd.f32 %v4702, %v4753
        %v4883 = vadd.f32 %v4703, %v4755
        %v4884 = vadd.f32 %v4704, %v4794
        %v4885 = vadd.f32 %v4705, %v4796
        %v4886 = vadd.f32 %v4706, %v4835
        %v4887 = vadd.f32 %v4707, %v4837
        %v4888 = vadd.f32 %v4708, %v4876
        %v4889 = vadd.f32 %v4709, %v4878
        %v4890 = vxor.u32 %v4882, 2147483648
        %v4891 = vxor.u32 %v4883, 2147483648
        %v4892 = vmul.f32 %v4890, 1.442695
        %v4893 = vpow.pop %v4892
        %v4894 = vmul.f32 %v4891, 1.442695
        %v4895 = vpow.pop %v4894
        %v4896 = vadd.f32 %v4893, 1.0
        %v4897 = vadd.f32 %v4895, 1.0
        %v4898 = vrcp.pop %v4896
        %v4899 = vmul.f32 1.0, %v4898
        %v4900 = vrcp.pop %v4897
        %v4901 = vmul.f32 1.0, %v4900
        %v4902 = vxor.u32 %v4884, 2147483648
        %v4903 = vxor.u32 %v4885, 2147483648
        %v4904 = vmul.f32 %v4902, 1.442695
        %v4905 = vpow.pop %v4904
        %v4906 = vmul.f32 %v4903, 1.442695
        %v4907 = vpow.pop %v4906
        %v4908 = vadd.f32 %v4905, 1.0
        %v4909 = vadd.f32 %v4907, 1.0
        %v4910 = vrcp.pop %v4908
        %v4911 = vmul.f32 1.0, %v4910
        %v4912 = vrcp.pop %v4909
        %v4913 = vmul.f32 1.0, %v4912
        %v4914 = vtanh.pop %v4886
        %v4915 = vtanh.pop %v4887
        %v4916 = vxor.u32 %v4888, 2147483648
        %v4917 = vxor.u32 %v4889, 2147483648
        %v4918 = vmul.f32 %v4916, 1.442695
        %v4919 = vpow.pop %v4918
        %v4920 = vmul.f32 %v4917, 1.442695
        %v4921 = vpow.pop %v4920
        %v4922 = vadd.f32 %v4919, 1.0
        %v4923 = vadd.f32 %v4921, 1.0
        %v4924 = vrcp.pop %v4922
        %v4925 = vmul.f32 1.0, %v4924
        %v4926 = vrcp.pop %v4923
        %v4927 = vmul.f32 1.0, %v4926
        %v4928 = vld [vmem:[#allocation5] sm:$0xff]
        %v4929 = vld [vmem:[#allocation5 + $0x8] sm:$0xff]
        %v4930 = vmul.f32 %v4911, %v4928
        %v4931 = vmul.f32 %v4913, %v4929
        %v4932 = vmul.f32 %v4899, %v4914
        %v4933 = vmul.f32 %v4901, %v4915
        %v4934 = vadd.f32 %v4930, %v4932
        %v4935 = vadd.f32 %v4931, %v4933
        %v4936 = vtanh.pop %v4934
        %v4937 = vtanh.pop %v4935
        %v4938 = vmul.f32 %v4925, %v4936
        %v4939 = vmul.f32 %v4927, %v4937
        %4940 = vst [vmem:[#allocation5] sm:$0xff] %v4934
        %4941 = vst [vmem:[#allocation5 + $0x8] sm:$0xff] %v4935
        %v4942 = vpack.c.bf16 %v4938, %v4938
        %v4943 = vpack.c.bf16 %v4939, %v4939
        %v4946 = vunpack.c.l.b16 %v4942
        %v4947 = vunpack.c.l.b16 %v4943
        %v4948 = vpack.c.b16 %v4947, %v4946
        %4950 = vst [vmem:[#allocation4] sm:$0xff] %v4948
        %s4951 = smul.u32 5, 2
        %s4952 = smul.addr %s4951, 8
        %s4953 = scalar_lea.vmem [#allocation2], %s4952
        %4954 = vst [vmem:[%s4953] sm:$0xff] %v4938
        %4955 = vst [vmem:[%s4953 + $0x8] sm:$0xff] %v4939
        %s4956 = smul.u32 6, 8
        %s4957 = smul.addr %s4956, 8
        %s4958 = scalar_lea.vmem [#allocation3], %s4957
        %v4959 = vld [vmem:[%s4958] sm:$0xff]
        %v4960 = vld [vmem:[%s4958 + $0x8] sm:$0xff]
        %v4961 = vld [vmem:[%s4958 + $0x10] sm:$0xff]
        %v4962 = vld [vmem:[%s4958 + $0x18] sm:$0xff]
        %v4963 = vld [vmem:[%s4958 + $0x20] sm:$0xff]
        %v4964 = vld [vmem:[%s4958 + $0x28] sm:$0xff]
        %v4965 = vld [vmem:[%s4958 + $0x30] sm:$0xff]
        %v4966 = vld [vmem:[%s4958 + $0x38] sm:$0xff]
        %v4967 = vld [vmem:[#allocation4] sm:$0xff]
        %v4969 = vunpack.c.l.b16 %v4967
        %v4970 = vunpack.c.h.b16 %v4967
        %v4971 = vpack.c.b16 %v4969, %v4969
        %v4972 = vpack.c.b16 %v4970, %v4970
        %4975 = vmatprep.subr.bf16.mxu0 %v3178
        %4976 = vmatpush1.bf16.msra.mxu0 %v3177
        %4977 = vmatprep.subr.bf16.mxu0 %v3186
        %4978 = vmatpush1.bf16.msra.mxu0 %v3185
        %4979 = vmatprep.subr.bf16.mxu0 %v3194
        %4980 = vmatpush1.bf16.msra.mxu0 %v3193
        %4981 = vmatprep.subr.bf16.mxu0 %v3202
        %4982 = vmatpush1.bf16.msra.mxu0 %v3201
        %4983 = vmatprep.subr.bf16.mxu0 %v3210
        %4984 = vmatpush1.bf16.msra.mxu0 %v3209
        %4985 = vmatprep.subr.bf16.mxu0 %v3218
        %4986 = vmatpush1.bf16.msra.mxu0 %v3217
        %4987 = vmatprep.subr.bf16.mxu0 %v3226
        %4988 = vmatpush1.bf16.msra.mxu0 %v3225
        %4989 = vmatprep.subr.bf16.mxu0 %v3234
        %4990 = vmatpush1.bf16.msra.mxu0 %v3233
        %4991 = vmatprep.subr.bf16.mxu0 %v3242
        %4992 = vmatpush1.bf16.msra.mxu0 %v3241
        %4993 = vmatprep.subr.bf16.mxu0 %v3250
        %4994 = vmatpush1.bf16.msra.mxu0 %v3249
        %4995 = vmatprep.subr.bf16.mxu0 %v3258
        %4996 = vmatpush1.bf16.msra.mxu0 %v3257
        %4997 = vmatprep.subr.bf16.mxu0 %v3266
        %4998 = vmatpush1.bf16.msra.mxu0 %v3265
        %4999 = vmatprep.subr.bf16.mxu0 %v3274
        %5000 = vmatpush1.bf16.msra.mxu0 %v3273
        %5001 = vmatprep.subr.bf16.mxu0 %v3282
        %5002 = vmatpush1.bf16.msra.mxu0 %v3281
        %5003 = vmatprep.subr.bf16.mxu0 %v3290
        %5004 = vmatpush1.bf16.msra.mxu0 %v3289
        %5005 = vmatprep.subr.bf16.mxu0 %v3298
        %5006 = vmatpush1.bf16.msra.mxu0 %v3297
        %5007 = vmatprep.mubr.bf16.mxu0 %v4972
        %5008 = vmatmul.mubr.bf16.gmra.mrb[0].mxu0 %v4971
        %v5009 = vpop.f32.mrb[0].mxu0
        %v5010 = vadd.f32 0.0, %v5009
        %v5011 = vpop.f32.mrb[0].mxu0
        %v5012 = vadd.f32 0.0, %v5011
        %v5013 = vpop.f32.mrb[0].mxu0
        %v5014 = vpop.f32.mrb[0].mxu0
        %5015 = vdwg.mxu0
        %5016 = vmatprep.subr.bf16.mxu0 %v3180
        %5017 = vmatpush1.bf16.msra.mxu0 %v3179
        %5018 = vmatprep.subr.bf16.mxu0 %v3188
        %5019 = vmatpush1.bf16.msra.mxu0 %v3187
        %5020 = vmatprep.subr.bf16.mxu0 %v3196
        %5021 = vmatpush1.bf16.msra.mxu0 %v3195
        %5022 = vmatprep.subr.bf16.mxu0 %v3204
        %5023 = vmatpush1.bf16.msra.mxu0 %v3203
        %5024 = vmatprep.subr.bf16.mxu0 %v3212
        %5025 = vmatpush1.bf16.msra.mxu0 %v3211
        %5026 = vmatprep.subr.bf16.mxu0 %v3220
        %5027 = vmatpush1.bf16.msra.mxu0 %v3219
        %5028 = vmatprep.subr.bf16.mxu0 %v3228
        %5029 = vmatpush1.bf16.msra.mxu0 %v3227
        %5030 = vmatprep.subr.bf16.mxu0 %v3236
        %5031 = vmatpush1.bf16.msra.mxu0 %v3235
        %5032 = vmatprep.subr.bf16.mxu0 %v3244
        %5033 = vmatpush1.bf16.msra.mxu0 %v3243
        %5034 = vmatprep.subr.bf16.mxu0 %v3252
        %5035 = vmatpush1.bf16.msra.mxu0 %v3251
        %5036 = vmatprep.subr.bf16.mxu0 %v3260
        %5037 = vmatpush1.bf16.msra.mxu0 %v3259
        %5038 = vmatprep.subr.bf16.mxu0 %v3268
        %5039 = vmatpush1.bf16.msra.mxu0 %v3267
        %5040 = vmatprep.subr.bf16.mxu0 %v3276
        %5041 = vmatpush1.bf16.msra.mxu0 %v3275
        %5042 = vmatprep.subr.bf16.mxu0 %v3284
        %5043 = vmatpush1.bf16.msra.mxu0 %v3283
        %5044 = vmatprep.subr.bf16.mxu0 %v3292
        %5045 = vmatpush1.bf16.msra.mxu0 %v3291
        %5046 = vmatprep.subr.bf16.mxu0 %v3300
        %5047 = vmatpush1.bf16.msra.mxu0 %v3299
        %5048 = vmatprep.mubr.bf16.mxu0 %v4972
        %5049 = vmatmul.mubr.bf16.gmra.mrb[0].mxu0 %v4971
        %v5050 = vpop.f32.mrb[0].mxu0
        %v5051 = vadd.f32 0.0, %v5050
        %v5052 = vpop.f32.mrb[0].mxu0
        %v5053 = vadd.f32 0.0, %v5052
        %v5054 = vpop.f32.mrb[0].mxu0
        %v5055 = vpop.f32.mrb[0].mxu0
        %5056 = vdwg.mxu0
        %5057 = vmatprep.subr.bf16.mxu0 %v3182
        %5058 = vmatpush1.bf16.msra.mxu0 %v3181
        %5059 = vmatprep.subr.bf16.mxu0 %v3190
        %5060 = vmatpush1.bf16.msra.mxu0 %v3189
        %5061 = vmatprep.subr.bf16.mxu0 %v3198
        %5062 = vmatpush1.bf16.msra.mxu0 %v3197
        %5063 = vmatprep.subr.bf16.mxu0 %v3206
        %5064 = vmatpush1.bf16.msra.mxu0 %v3205
        %5065 = vmatprep.subr.bf16.mxu0 %v3214
        %5066 = vmatpush1.bf16.msra.mxu0 %v3213
        %5067 = vmatprep.subr.bf16.mxu0 %v3222
        %5068 = vmatpush1.bf16.msra.mxu0 %v3221
        %5069 = vmatprep.subr.bf16.mxu0 %v3230
        %5070 = vmatpush1.bf16.msra.mxu0 %v3229
        %5071 = vmatprep.subr.bf16.mxu0 %v3238
        %5072 = vmatpush1.bf16.msra.mxu0 %v3237
        %5073 = vmatprep.subr.bf16.mxu0 %v3246
        %5074 = vmatpush1.bf16.msra.mxu0 %v3245
        %5075 = vmatprep.subr.bf16.mxu0 %v3254
        %5076 = vmatpush1.bf16.msra.mxu0 %v3253
        %5077 = vmatprep.subr.bf16.mxu0 %v3262
        %5078 = vmatpush1.bf16.msra.mxu0 %v3261
        %5079 = vmatprep.subr.bf16.mxu0 %v3270
        %5080 = vmatpush1.bf16.msra.mxu0 %v3269
        %5081 = vmatprep.subr.bf16.mxu0 %v3278
        %5082 = vmatpush1.bf16.msra.mxu0 %v3277
        %5083 = vmatprep.subr.bf16.mxu0 %v3286
        %5084 = vmatpush1.bf16.msra.mxu0 %v3285
        %5085 = vmatprep.subr.bf16.mxu0 %v3294
        %5086 = vmatpush1.bf16.msra.mxu0 %v3293
        %5087 = vmatprep.subr.bf16.mxu0 %v3302
        %5088 = vmatpush1.bf16.msra.mxu0 %v3301
        %5089 = vmatprep.mubr.bf16.mxu0 %v4972
        %5090 = vmatmul.mubr.bf16.gmra.mrb[0].mxu0 %v4971
        %v5091 = vpop.f32.mrb[0].mxu0
        %v5092 = vadd.f32 0.0, %v5091
        %v5093 = vpop.f32.mrb[0].mxu0
        %v5094 = vadd.f32 0.0, %v5093
        %v5095 = vpop.f32.mrb[0].mxu0
        %v5096 = vpop.f32.mrb[0].mxu0
        %5097 = vdwg.mxu0
        %5098 = vmatprep.subr.bf16.mxu0 %v3184
        %5099 = vmatpush1.bf16.msra.mxu0 %v3183
        %5100 = vmatprep.subr.bf16.mxu0 %v3192
        %5101 = vmatpush1.bf16.msra.mxu0 %v3191
        %5102 = vmatprep.subr.bf16.mxu0 %v3200
        %5103 = vmatpush1.bf16.msra.mxu0 %v3199
        %5104 = vmatprep.subr.bf16.mxu0 %v3208
        %5105 = vmatpush1.bf16.msra.mxu0 %v3207
        %5106 = vmatprep.subr.bf16.mxu0 %v3216
        %5107 = vmatpush1.bf16.msra.mxu0 %v3215
        %5108 = vmatprep.subr.bf16.mxu0 %v3224
        %5109 = vmatpush1.bf16.msra.mxu0 %v3223
        %5110 = vmatprep.subr.bf16.mxu0 %v3232
        %5111 = vmatpush1.bf16.msra.mxu0 %v3231
        %5112 = vmatprep.subr.bf16.mxu0 %v3240
        %5113 = vmatpush1.bf16.msra.mxu0 %v3239
        %5114 = vmatprep.subr.bf16.mxu0 %v3248
        %5115 = vmatpush1.bf16.msra.mxu0 %v3247
        %5116 = vmatprep.subr.bf16.mxu0 %v3256
        %5117 = vmatpush1.bf16.msra.mxu0 %v3255
        %5118 = vmatprep.subr.bf16.mxu0 %v3264
        %5119 = vmatpush1.bf16.msra.mxu0 %v3263
        %5120 = vmatprep.subr.bf16.mxu0 %v3272
        %5121 = vmatpush1.bf16.msra.mxu0 %v3271
        %5122 = vmatprep.subr.bf16.mxu0 %v3280
        %5123 = vmatpush1.bf16.msra.mxu0 %v3279
        %5124 = vmatprep.subr.bf16.mxu0 %v3288
        %5125 = vmatpush1.bf16.msra.mxu0 %v3287
        %5126 = vmatprep.subr.bf16.mxu0 %v3296
        %5127 = vmatpush1.bf16.msra.mxu0 %v3295
        %5128 = vmatprep.subr.bf16.mxu0 %v3304
        %5129 = vmatpush1.bf16.msra.mxu0 %v3303
        %5130 = vmatprep.mubr.bf16.mxu0 %v4972
        %5131 = vmatmul.mubr.bf16.gmra.mrb[0].mxu0 %v4971
        %v5132 = vpop.f32.mrb[0].mxu0
        %v5133 = vadd.f32 0.0, %v5132
        %v5134 = vpop.f32.mrb[0].mxu0
        %v5135 = vadd.f32 0.0, %v5134
        %v5136 = vpop.f32.mrb[0].mxu0
        %v5137 = vpop.f32.mrb[0].mxu0
        %5138 = vdwg.mxu0
        %v5139 = vadd.f32 %v4959, %v5010
        %v5140 = vadd.f32 %v4960, %v5012
        %v5141 = vadd.f32 %v4961, %v5051
        %v5142 = vadd.f32 %v4962, %v5053
        %v5143 = vadd.f32 %v4963, %v5092
        %v5144 = vadd.f32 %v4964, %v5094
        %v5145 = vadd.f32 %v4965, %v5133
        %v5146 = vadd.f32 %v4966, %v5135
        %v5147 = vxor.u32 %v5139, 2147483648
        %v5148 = vxor.u32 %v5140, 2147483648
        %v5149 = vmul.f32 %v5147, 1.442695
        %v5150 = vpow.pop %v5149
        %v5151 = vmul.f32 %v5148, 1.442695
        %v5152 = vpow.pop %v5151
        %v5153 = vadd.f32 %v5150, 1.0
        %v5154 = vadd.f32 %v5152, 1.0
        %v5155 = vrcp.pop %v5153
        %v5156 = vmul.f32 1.0, %v5155
        %v5157 = vrcp.pop %v5154
        %v5158 = vmul.f32 1.0, %v5157
        %v5159 = vxor.u32 %v5141, 2147483648
        %v5160 = vxor.u32 %v5142, 2147483648
        %v5161 = vmul.f32 %v5159, 1.442695
        %v5162 = vpow.pop %v5161
        %v5163 = vmul.f32 %v5160, 1.442695
        %v5164 = vpow.pop %v5163
        %v5165 = vadd.f32 %v5162, 1.0
        %v5166 = vadd.f32 %v5164, 1.0
        %v5167 = vrcp.pop %v5165
        %v5168 = vmul.f32 1.0, %v5167
        %v5169 = vrcp.pop %v5166
        %v5170 = vmul.f32 1.0, %v5169
        %v5171 = vtanh.pop %v5143
        %v5172 = vtanh.pop %v5144
        %v5173 = vxor.u32 %v5145, 2147483648
        %v5174 = vxor.u32 %v5146, 2147483648
        %v5175 = vmul.f32 %v5173, 1.442695
        %v5176 = vpow.pop %v5175
        %v5177 = vmul.f32 %v5174, 1.442695
        %v5178 = vpow.pop %v5177
        %v5179 = vadd.f32 %v5176, 1.0
        %v5180 = vadd.f32 %v5178, 1.0
        %v5181 = vrcp.pop %v5179
        %v5182 = vmul.f32 1.0, %v5181
        %v5183 = vrcp.pop %v5180
        %v5184 = vmul.f32 1.0, %v5183
        %v5185 = vld [vmem:[#allocation5] sm:$0xff]
        %v5186 = vld [vmem:[#allocation5 + $0x8] sm:$0xff]
        %v5187 = vmul.f32 %v5168, %v5185
        %v5188 = vmul.f32 %v5170, %v5186
        %v5189 = vmul.f32 %v5156, %v5171
        %v5190 = vmul.f32 %v5158, %v5172
        %v5191 = vadd.f32 %v5187, %v5189
        %v5192 = vadd.f32 %v5188, %v5190
        %v5193 = vtanh.pop %v5191
        %v5194 = vtanh.pop %v5192
        %v5195 = vmul.f32 %v5182, %v5193
        %v5196 = vmul.f32 %v5184, %v5194
        %5197 = vst [vmem:[#allocation5] sm:$0xff] %v5191
        %5198 = vst [vmem:[#allocation5 + $0x8] sm:$0xff] %v5192
        %v5199 = vpack.c.bf16 %v5195, %v5195
        %v5200 = vpack.c.bf16 %v5196, %v5196
        %v5203 = vunpack.c.l.b16 %v5199
        %v5204 = vunpack.c.l.b16 %v5200
        %v5205 = vpack.c.b16 %v5204, %v5203
        %5207 = vst [vmem:[#allocation4] sm:$0xff] %v5205
        %s5208 = smul.u32 6, 2
        %s5209 = smul.addr %s5208, 8
        %s5210 = scalar_lea.vmem [#allocation2], %s5209
        %5211 = vst [vmem:[%s5210] sm:$0xff] %v5195
        %5212 = vst [vmem:[%s5210 + $0x8] sm:$0xff] %v5196
        %s5213 = smul.u32 7, 8
        %s5214 = smul.addr %s5213, 8
        %s5215 = scalar_lea.vmem [#allocation3], %s5214
        %v5216 = vld [vmem:[%s5215] sm:$0xff]
        %v5217 = vld [vmem:[%s5215 + $0x8] sm:$0xff]
        %v5218 = vld [vmem:[%s5215 + $0x10] sm:$0xff]
        %v5219 = vld [vmem:[%s5215 + $0x18] sm:$0xff]
        %v5220 = vld [vmem:[%s5215 + $0x20] sm:$0xff]
        %v5221 = vld [vmem:[%s5215 + $0x28] sm:$0xff]
        %v5222 = vld [vmem:[%s5215 + $0x30] sm:$0xff]
        %v5223 = vld [vmem:[%s5215 + $0x38] sm:$0xff]
        %v5224 = vld [vmem:[#allocation4] sm:$0xff]
        %v5226 = vunpack.c.l.b16 %v5224
        %v5227 = vunpack.c.h.b16 %v5224
        %v5228 = vpack.c.b16 %v5226, %v5226
        %v5229 = vpack.c.b16 %v5227, %v5227
        %5232 = vmatprep.subr.bf16.mxu0 %v3178
        %5233 = vmatpush1.bf16.msra.mxu0 %v3177
        %5234 = vmatprep.subr.bf16.mxu0 %v3186
        %5235 = vmatpush1.bf16.msra.mxu0 %v3185
        %5236 = vmatprep.subr.bf16.mxu0 %v3194
        %5237 = vmatpush1.bf16.msra.mxu0 %v3193
        %5238 = vmatprep.subr.bf16.mxu0 %v3202
        %5239 = vmatpush1.bf16.msra.mxu0 %v3201
        %5240 = vmatprep.subr.bf16.mxu0 %v3210
        %5241 = vmatpush1.bf16.msra.mxu0 %v3209
        %5242 = vmatprep.subr.bf16.mxu0 %v3218
        %5243 = vmatpush1.bf16.msra.mxu0 %v3217
        %5244 = vmatprep.subr.bf16.mxu0 %v3226
        %5245 = vmatpush1.bf16.msra.mxu0 %v3225
        %5246 = vmatprep.subr.bf16.mxu0 %v3234
        %5247 = vmatpush1.bf16.msra.mxu0 %v3233
        %5248 = vmatprep.subr.bf16.mxu0 %v3242
        %5249 = vmatpush1.bf16.msra.mxu0 %v3241
        %5250 = vmatprep.subr.bf16.mxu0 %v3250
        %5251 = vmatpush1.bf16.msra.mxu0 %v3249
        %5252 = vmatprep.subr.bf16.mxu0 %v3258
        %5253 = vmatpush1.bf16.msra.mxu0 %v3257
        %5254 = vmatprep.subr.bf16.mxu0 %v3266
        %5255 = vmatpush1.bf16.msra.mxu0 %v3265
        %5256 = vmatprep.subr.bf16.mxu0 %v3274
        %5257 = vmatpush1.bf16.msra.mxu0 %v3273
        %5258 = vmatprep.subr.bf16.mxu0 %v3282
        %5259 = vmatpush1.bf16.msra.mxu0 %v3281
        %5260 = vmatprep.subr.bf16.mxu0 %v3290
        %5261 = vmatpush1.bf16.msra.mxu0 %v3289
        %5262 = vmatprep.subr.bf16.mxu0 %v3298
        %5263 = vmatpush1.bf16.msra.mxu0 %v3297
        %5264 = vmatprep.mubr.bf16.mxu0 %v5229
        %5265 = vmatmul.mubr.bf16.gmra.mrb[0].mxu0 %v5228
        %v5266 = vpop.f32.mrb[0].mxu0
        %v5267 = vadd.f32 0.0, %v5266
        %v5268 = vpop.f32.mrb[0].mxu0
        %v5269 = vadd.f32 0.0, %v5268
        %v5270 = vpop.f32.mrb[0].mxu0
        %v5271 = vpop.f32.mrb[0].mxu0
        %5272 = vdwg.mxu0
        %5273 = vmatprep.subr.bf16.mxu0 %v3180
        %5274 = vmatpush1.bf16.msra.mxu0 %v3179
        %5275 = vmatprep.subr.bf16.mxu0 %v3188
        %5276 = vmatpush1.bf16.msra.mxu0 %v3187
        %5277 = vmatprep.subr.bf16.mxu0 %v3196
        %5278 = vmatpush1.bf16.msra.mxu0 %v3195
        %5279 = vmatprep.subr.bf16.mxu0 %v3204
        %5280 = vmatpush1.bf16.msra.mxu0 %v3203
        %5281 = vmatprep.subr.bf16.mxu0 %v3212
        %5282 = vmatpush1.bf16.msra.mxu0 %v3211
        %5283 = vmatprep.subr.bf16.mxu0 %v3220
        %5284 = vmatpush1.bf16.msra.mxu0 %v3219
        %5285 = vmatprep.subr.bf16.mxu0 %v3228
        %5286 = vmatpush1.bf16.msra.mxu0 %v3227
        %5287 = vmatprep.subr.bf16.mxu0 %v3236
        %5288 = vmatpush1.bf16.msra.mxu0 %v3235
        %5289 = vmatprep.subr.bf16.mxu0 %v3244
        %5290 = vmatpush1.bf16.msra.mxu0 %v3243
        %5291 = vmatprep.subr.bf16.mxu0 %v3252
        %5292 = vmatpush1.bf16.msra.mxu0 %v3251
        %5293 = vmatprep.subr.bf16.mxu0 %v3260
        %5294 = vmatpush1.bf16.msra.mxu0 %v3259
        %5295 = vmatprep.subr.bf16.mxu0 %v3268
        %5296 = vmatpush1.bf16.msra.mxu0 %v3267
        %5297 = vmatprep.subr.bf16.mxu0 %v3276
        %5298 = vmatpush1.bf16.msra.mxu0 %v3275
        %5299 = vmatprep.subr.bf16.mxu0 %v3284
        %5300 = vmatpush1.bf16.msra.mxu0 %v3283
        %5301 = vmatprep.subr.bf16.mxu0 %v3292
        %5302 = vmatpush1.bf16.msra.mxu0 %v3291
        %5303 = vmatprep.subr.bf16.mxu0 %v3300
        %5304 = vmatpush1.bf16.msra.mxu0 %v3299
        %5305 = vmatprep.mubr.bf16.mxu0 %v5229
        %5306 = vmatmul.mubr.bf16.gmra.mrb[0].mxu0 %v5228
        %v5307 = vpop.f32.mrb[0].mxu0
        %v5308 = vadd.f32 0.0, %v5307
        %v5309 = vpop.f32.mrb[0].mxu0
        %v5310 = vadd.f32 0.0, %v5309
        %v5311 = vpop.f32.mrb[0].mxu0
        %v5312 = vpop.f32.mrb[0].mxu0
        %5313 = vdwg.mxu0
        %5314 = vmatprep.subr.bf16.mxu0 %v3182
        %5315 = vmatpush1.bf16.msra.mxu0 %v3181
        %5316 = vmatprep.subr.bf16.mxu0 %v3190
        %5317 = vmatpush1.bf16.msra.mxu0 %v3189
        %5318 = vmatprep.subr.bf16.mxu0 %v3198
        %5319 = vmatpush1.bf16.msra.mxu0 %v3197
        %5320 = vmatprep.subr.bf16.mxu0 %v3206
        %5321 = vmatpush1.bf16.msra.mxu0 %v3205
        %5322 = vmatprep.subr.bf16.mxu0 %v3214
        %5323 = vmatpush1.bf16.msra.mxu0 %v3213
        %5324 = vmatprep.subr.bf16.mxu0 %v3222
        %5325 = vmatpush1.bf16.msra.mxu0 %v3221
        %5326 = vmatprep.subr.bf16.mxu0 %v3230
        %5327 = vmatpush1.bf16.msra.mxu0 %v3229
        %5328 = vmatprep.subr.bf16.mxu0 %v3238
        %5329 = vmatpush1.bf16.msra.mxu0 %v3237
        %5330 = vmatprep.subr.bf16.mxu0 %v3246
        %5331 = vmatpush1.bf16.msra.mxu0 %v3245
        %5332 = vmatprep.subr.bf16.mxu0 %v3254
        %5333 = vmatpush1.bf16.msra.mxu0 %v3253
        %5334 = vmatprep.subr.bf16.mxu0 %v3262
        %5335 = vmatpush1.bf16.msra.mxu0 %v3261
        %5336 = vmatprep.subr.bf16.mxu0 %v3270
        %5337 = vmatpush1.bf16.msra.mxu0 %v3269
        %5338 = vmatprep.subr.bf16.mxu0 %v3278
        %5339 = vmatpush1.bf16.msra.mxu0 %v3277
        %5340 = vmatprep.subr.bf16.mxu0 %v3286
        %5341 = vmatpush1.bf16.msra.mxu0 %v3285
        %5342 = vmatprep.subr.bf16.mxu0 %v3294
        %5343 = vmatpush1.bf16.msra.mxu0 %v3293
        %5344 = vmatprep.subr.bf16.mxu0 %v3302
        %5345 = vmatpush1.bf16.msra.mxu0 %v3301
        %5346 = vmatprep.mubr.bf16.mxu0 %v5229
        %5347 = vmatmul.mubr.bf16.gmra.mrb[0].mxu0 %v5228
        %v5348 = vpop.f32.mrb[0].mxu0
        %v5349 = vadd.f32 0.0, %v5348
        %v5350 = vpop.f32.mrb[0].mxu0
        %v5351 = vadd.f32 0.0, %v5350
        %v5352 = vpop.f32.mrb[0].mxu0
        %v5353 = vpop.f32.mrb[0].mxu0
        %5354 = vdwg.mxu0
        %5355 = vmatprep.subr.bf16.mxu0 %v3184
        %5356 = vmatpush1.bf16.msra.mxu0 %v3183
        %5357 = vmatprep.subr.bf16.mxu0 %v3192
        %5358 = vmatpush1.bf16.msra.mxu0 %v3191
        %5359 = vmatprep.subr.bf16.mxu0 %v3200
        %5360 = vmatpush1.bf16.msra.mxu0 %v3199
        %5361 = vmatprep.subr.bf16.mxu0 %v3208
        %5362 = vmatpush1.bf16.msra.mxu0 %v3207
        %5363 = vmatprep.subr.bf16.mxu0 %v3216
        %5364 = vmatpush1.bf16.msra.mxu0 %v3215
        %5365 = vmatprep.subr.bf16.mxu0 %v3224
        %5366 = vmatpush1.bf16.msra.mxu0 %v3223
        %5367 = vmatprep.subr.bf16.mxu0 %v3232
        %5368 = vmatpush1.bf16.msra.mxu0 %v3231
        %5369 = vmatprep.subr.bf16.mxu0 %v3240
        %5370 = vmatpush1.bf16.msra.mxu0 %v3239
        %5371 = vmatprep.subr.bf16.mxu0 %v3248
        %5372 = vmatpush1.bf16.msra.mxu0 %v3247
        %5373 = vmatprep.subr.bf16.mxu0 %v3256
        %5374 = vmatpush1.bf16.msra.mxu0 %v3255
        %5375 = vmatprep.subr.bf16.mxu0 %v3264
        %5376 = vmatpush1.bf16.msra.mxu0 %v3263
        %5377 = vmatprep.subr.bf16.mxu0 %v3272
        %5378 = vmatpush1.bf16.msra.mxu0 %v3271
        %5379 = vmatprep.subr.bf16.mxu0 %v3280
        %5380 = vmatpush1.bf16.msra.mxu0 %v3279
        %5381 = vmatprep.subr.bf16.mxu0 %v3288
        %5382 = vmatpush1.bf16.msra.mxu0 %v3287
        %5383 = vmatprep.subr.bf16.mxu0 %v3296
        %5384 = vmatpush1.bf16.msra.mxu0 %v3295
        %5385 = vmatprep.subr.bf16.mxu0 %v3304
        %5386 = vmatpush1.bf16.msra.mxu0 %v3303
        %5387 = vmatprep.mubr.bf16.mxu0 %v5229
        %5388 = vmatmul.mubr.bf16.gmra.mrb[0].mxu0 %v5228
        %v5389 = vpop.f32.mrb[0].mxu0
        %v5390 = vadd.f32 0.0, %v5389
        %v5391 = vpop.f32.mrb[0].mxu0
        %v5392 = vadd.f32 0.0, %v5391
        %v5393 = vpop.f32.mrb[0].mxu0
        %v5394 = vpop.f32.mrb[0].mxu0
        %5395 = vdwg.mxu0
        %v5396 = vadd.f32 %v5216, %v5267
        %v5397 = vadd.f32 %v5217, %v5269
        %v5398 = vadd.f32 %v5218, %v5308
        %v5399 = vadd.f32 %v5219, %v5310
        %v5400 = vadd.f32 %v5220, %v5349
        %v5401 = vadd.f32 %v5221, %v5351
        %v5402 = vadd.f32 %v5222, %v5390
        %v5403 = vadd.f32 %v5223, %v5392
        %v5404 = vxor.u32 %v5396, 2147483648
        %v5405 = vxor.u32 %v5397, 2147483648
        %v5406 = vmul.f32 %v5404, 1.442695
        %v5407 = vpow.pop %v5406
        %v5408 = vmul.f32 %v5405, 1.442695
        %v5409 = vpow.pop %v5408
        %v5410 = vadd.f32 %v5407, 1.0
        %v5411 = vadd.f32 %v5409, 1.0
        %v5412 = vrcp.pop %v5410
        %v5413 = vmul.f32 1.0, %v5412
        %v5414 = vrcp.pop %v5411
        %v5415 = vmul.f32 1.0, %v5414
        %v5416 = vxor.u32 %v5398, 2147483648
        %v5417 = vxor.u32 %v5399, 2147483648
        %v5418 = vmul.f32 %v5416, 1.442695
        %v5419 = vpow.pop %v5418
        %v5420 = vmul.f32 %v5417, 1.442695
        %v5421 = vpow.pop %v5420
        %v5422 = vadd.f32 %v5419, 1.0
        %v5423 = vadd.f32 %v5421, 1.0
        %v5424 = vrcp.pop %v5422
        %v5425 = vmul.f32 1.0, %v5424
        %v5426 = vrcp.pop %v5423
        %v5427 = vmul.f32 1.0, %v5426
        %v5428 = vtanh.pop %v5400
        %v5429 = vtanh.pop %v5401
        %v5430 = vxor.u32 %v5402, 2147483648
        %v5431 = vxor.u32 %v5403, 2147483648
        %v5432 = vmul.f32 %v5430, 1.442695
        %v5433 = vpow.pop %v5432
        %v5434 = vmul.f32 %v5431, 1.442695
        %v5435 = vpow.pop %v5434
        %v5436 = vadd.f32 %v5433, 1.0
        %v5437 = vadd.f32 %v5435, 1.0
        %v5438 = vrcp.pop %v5436
        %v5439 = vmul.f32 1.0, %v5438
        %v5440 = vrcp.pop %v5437
        %v5441 = vmul.f32 1.0, %v5440
        %v5442 = vld [vmem:[#allocation5] sm:$0xff]
        %v5443 = vld [vmem:[#allocation5 + $0x8] sm:$0xff]
        %v5444 = vmul.f32 %v5425, %v5442
        %v5445 = vmul.f32 %v5427, %v5443
        %v5446 = vmul.f32 %v5413, %v5428
        %v5447 = vmul.f32 %v5415, %v5429
        %v5448 = vadd.f32 %v5444, %v5446
        %v5449 = vadd.f32 %v5445, %v5447
        %v5450 = vtanh.pop %v5448
        %v5451 = vtanh.pop %v5449
        %v5452 = vmul.f32 %v5439, %v5450
        %v5453 = vmul.f32 %v5441, %v5451
        %5454 = vst [vmem:[#allocation5] sm:$0xff] %v5448
        %5455 = vst [vmem:[#allocation5 + $0x8] sm:$0xff] %v5449
        %v5456 = vpack.c.bf16 %v5452, %v5452
        %v5457 = vpack.c.bf16 %v5453, %v5453
        %v5460 = vunpack.c.l.b16 %v5456
        %v5461 = vunpack.c.l.b16 %v5457
        %v5462 = vpack.c.b16 %v5461, %v5460
        %5464 = vst [vmem:[#allocation4] sm:$0xff] %v5462
        %s5465 = smul.u32 7, 2
        %s5466 = smul.addr %s5465, 8
        %s5467 = scalar_lea.vmem [#allocation2], %s5466
        %5468 = vst [vmem:[%s5467] sm:$0xff] %v5452
        %5469 = vst [vmem:[%s5467 + $0x8] sm:$0xff] %v5453
        %p5470 = scmp.eq.s32.totalorder %s24, 5
        // Predicated region
        $region73: #{lstm_model_forward.1} parent=43 // pred_check
          %p5471 = pneg %p5470
        $region74: #{lstm_model_forward.1} parent=43 // pred_check_branch
          %5473 = sbr.rel (%p5471) target = $region76
        $region75: #{lstm_model_forward.1} parent=43 // pred_region
          %v5474 = vld [vmem:[#allocation2] sm:$0xff]
          %v5475 = vld [vmem:[#allocation2 + $0x8] sm:$0xff]
          %v5476 = vld [vmem:[#allocation2 + $0x10] sm:$0xff]
          %v5477 = vld [vmem:[#allocation2 + $0x18] sm:$0xff]
          %v5478 = vld [vmem:[#allocation2 + $0x20] sm:$0xff]
          %v5479 = vld [vmem:[#allocation2 + $0x28] sm:$0xff]
          %v5480 = vld [vmem:[#allocation2 + $0x30] sm:$0xff]
          %v5481 = vld [vmem:[#allocation2 + $0x38] sm:$0xff]
          %v5482 = vld [vmem:[#allocation2 + $0x40] sm:$0xff]
          %v5483 = vld [vmem:[#allocation2 + $0x48] sm:$0xff]
          %v5484 = vld [vmem:[#allocation2 + $0x50] sm:$0xff]
          %v5485 = vld [vmem:[#allocation2 + $0x58] sm:$0xff]
          %v5486 = vld [vmem:[#allocation2 + $0x60] sm:$0xff]
          %v5487 = vld [vmem:[#allocation2 + $0x68] sm:$0xff]
          %v5488 = vld [vmem:[#allocation2 + $0x70] sm:$0xff]
          %v5489 = vld [vmem:[#allocation2 + $0x78] sm:$0xff]
          %v5490 = vpack.c.bf16 %v5476, %v5474
          %v5491 = vpack.c.bf16 %v5477, %v5475
          %v5492 = vpack.c.bf16 %v5480, %v5478
          %v5493 = vpack.c.bf16 %v5481, %v5479
          %v5494 = vpack.c.bf16 %v5484, %v5482
          %v5495 = vpack.c.bf16 %v5485, %v5483
          %v5496 = vpack.c.bf16 %v5488, %v5486
          %v5497 = vpack.c.bf16 %v5489, %v5487
          %v5498 = vld [vmem:[#allocation11] sm:$0xf]
          %v5499 = vld [vmem:[#allocation11 + $0x4] sm:$0xf]
          %v5500 = vld [vmem:[#allocation11 + $0x8] sm:$0xf]
          %v5501 = vld [vmem:[#allocation11 + $0xc] sm:$0xf]
          %v5502 = vld [vmem:[#allocation11 + $0x10] sm:$0xf]
          %v5503 = vld [vmem:[#allocation11 + $0x14] sm:$0xf]
          %v5504 = vld [vmem:[#allocation11 + $0x18] sm:$0xf]
          %v5505 = vld [vmem:[#allocation11 + $0x1c] sm:$0xf]
          %v5506 = vld [vmem:[#allocation11 + $0x20] sm:$0xf]
          %v5507 = vld [vmem:[#allocation11 + $0x24] sm:$0xf]
          %v5508 = vld [vmem:[#allocation11 + $0x28] sm:$0xf]
          %v5509 = vld [vmem:[#allocation11 + $0x2c] sm:$0xf]
          %v5510 = vld [vmem:[#allocation11 + $0x30] sm:$0xf]
          %v5511 = vld [vmem:[#allocation11 + $0x34] sm:$0xf]
          %v5512 = vld [vmem:[#allocation11 + $0x38] sm:$0xf]
          %v5513 = vld [vmem:[#allocation11 + $0x3c] sm:$0xf]
          %v5514 = vld [vmem:[#allocation11 + $0x40] sm:$0xf]
          %v5515 = vld [vmem:[#allocation11 + $0x44] sm:$0xf]
          %v5516 = vld [vmem:[#allocation11 + $0x48] sm:$0xf]
          %v5517 = vld [vmem:[#allocation11 + $0x4c] sm:$0xf]
          %v5518 = vld [vmem:[#allocation11 + $0x50] sm:$0xf]
          %v5519 = vld [vmem:[#allocation11 + $0x54] sm:$0xf]
          %v5520 = vld [vmem:[#allocation11 + $0x58] sm:$0xf]
          %v5521 = vld [vmem:[#allocation11 + $0x5c] sm:$0xf]
          %v5522 = vld [vmem:[#allocation11 + $0x60] sm:$0xf]
          %v5523 = vld [vmem:[#allocation11 + $0x64] sm:$0xf]
          %v5524 = vld [vmem:[#allocation11 + $0x68] sm:$0xf]
          %v5525 = vld [vmem:[#allocation11 + $0x6c] sm:$0xf]
          %v5526 = vld [vmem:[#allocation11 + $0x70] sm:$0xf]
          %v5527 = vld [vmem:[#allocation11 + $0x74] sm:$0xf]
          %v5528 = vld [vmem:[#allocation11 + $0x78] sm:$0xf]
          %v5529 = vld [vmem:[#allocation11 + $0x7c] sm:$0xf]
          %v5530 = vld [vmem:[#allocation13] sm:$0x1]
          %v5532 = vlaneseq
          %v5533 = vshrl.u32 %v5532, 7
          %v5534 = vsub.s32 0, %v5533
          %v5535 = vrot.slane %v5530, %v5534
          %v5569 = vunpack.c.l.b16 %v5498
          %v5570 = vunpack.c.l.b16 %v5499
          %v5571 = vunpack.c.l.b16 %v5500
          %v5572 = vunpack.c.l.b16 %v5501
          %v5573 = vunpack.c.l.b16 %v5502
          %v5574 = vunpack.c.l.b16 %v5503
          %v5575 = vunpack.c.l.b16 %v5504
          %v5576 = vunpack.c.l.b16 %v5505
          %v5577 = vunpack.c.l.b16 %v5506
          %v5578 = vunpack.c.l.b16 %v5507
          %v5579 = vunpack.c.l.b16 %v5508
          %v5580 = vunpack.c.l.b16 %v5509
          %v5581 = vunpack.c.l.b16 %v5510
          %v5582 = vunpack.c.l.b16 %v5511
          %v5583 = vunpack.c.l.b16 %v5512
          %v5584 = vunpack.c.l.b16 %v5513
          %v5585 = vunpack.c.l.b16 %v5514
          %v5586 = vunpack.c.l.b16 %v5515
          %v5587 = vunpack.c.l.b16 %v5516
          %v5588 = vunpack.c.l.b16 %v5517
          %v5589 = vunpack.c.l.b16 %v5518
          %v5590 = vunpack.c.l.b16 %v5519
          %v5591 = vunpack.c.l.b16 %v5520
          %v5592 = vunpack.c.l.b16 %v5521
          %v5593 = vunpack.c.l.b16 %v5522
          %v5594 = vunpack.c.l.b16 %v5523
          %v5595 = vunpack.c.l.b16 %v5524
          %v5596 = vunpack.c.l.b16 %v5525
          %v5597 = vunpack.c.l.b16 %v5526
          %v5598 = vunpack.c.l.b16 %v5527
          %v5599 = vunpack.c.l.b16 %v5528
          %v5600 = vunpack.c.l.b16 %v5529
          %v5601 = vpack.c.b16 %v5570, %v5569
          %v5602 = vpack.c.b16 %v5572, %v5571
          %v5603 = vpack.c.b16 %v5574, %v5573
          %v5604 = vpack.c.b16 %v5576, %v5575
          %v5605 = vpack.c.b16 %v5578, %v5577
          %v5606 = vpack.c.b16 %v5580, %v5579
          %v5607 = vpack.c.b16 %v5582, %v5581
          %v5608 = vpack.c.b16 %v5584, %v5583
          %v5609 = vpack.c.b16 %v5586, %v5585
          %v5610 = vpack.c.b16 %v5588, %v5587
          %v5611 = vpack.c.b16 %v5590, %v5589
          %v5612 = vpack.c.b16 %v5592, %v5591
          %v5613 = vpack.c.b16 %v5594, %v5593
          %v5614 = vpack.c.b16 %v5596, %v5595
          %v5615 = vpack.c.b16 %v5598, %v5597
          %v5616 = vpack.c.b16 %v5600, %v5599
          %5633 = vmatprep.subr.bf16.mxu0 0
          %5634 = vmatpush1.bf16.msra.mxu0 %v5601
          %5635 = vmatprep.subr.bf16.mxu0 0
          %5636 = vmatpush1.bf16.msra.mxu0 %v5602
          %5637 = vmatprep.subr.bf16.mxu0 0
          %5638 = vmatpush1.bf16.msra.mxu0 %v5603
          %5639 = vmatprep.subr.bf16.mxu0 0
          %5640 = vmatpush1.bf16.msra.mxu0 %v5604
          %5641 = vmatprep.subr.bf16.mxu0 0
          %5642 = vmatpush1.bf16.msra.mxu0 %v5605
          %5643 = vmatprep.subr.bf16.mxu0 0
          %5644 = vmatpush1.bf16.msra.mxu0 %v5606
          %5645 = vmatprep.subr.bf16.mxu0 0
          %5646 = vmatpush1.bf16.msra.mxu0 %v5607
          %5647 = vmatprep.subr.bf16.mxu0 0
          %5648 = vmatpush1.bf16.msra.mxu0 %v5608
          %5649 = vmatprep.subr.bf16.mxu0 0
          %5650 = vmatpush1.bf16.msra.mxu0 %v5609
          %5651 = vmatprep.subr.bf16.mxu0 0
          %5652 = vmatpush1.bf16.msra.mxu0 %v5610
          %5653 = vmatprep.subr.bf16.mxu0 0
          %5654 = vmatpush1.bf16.msra.mxu0 %v5611
          %5655 = vmatprep.subr.bf16.mxu0 0
          %5656 = vmatpush1.bf16.msra.mxu0 %v5612
          %5657 = vmatprep.subr.bf16.mxu0 0
          %5658 = vmatpush1.bf16.msra.mxu0 %v5613
          %5659 = vmatprep.subr.bf16.mxu0 0
          %5660 = vmatpush1.bf16.msra.mxu0 %v5614
          %5661 = vmatprep.subr.bf16.mxu0 0
          %5662 = vmatpush1.bf16.msra.mxu0 %v5615
          %5663 = vmatprep.subr.bf16.mxu0 0
          %5664 = vmatpush1.bf16.msra.mxu0 %v5616
          %5665 = vmatprep.mubr.bf16.mxu0 %v5491
          %5666 = vmatmul.mubr.bf16.gmra.mrb[0].mxu0 %v5490
          %v5667 = vpop.f32.mrb[0].mxu0
          %v5668 = vadd.f32 %v5535, %v5667
          %v5669 = vpop.f32.mrb[0].mxu0
          %v5670 = vpop.f32.mrb[0].mxu0
          %v5671 = vadd.f32 %v5535, %v5670
          %v5672 = vpop.f32.mrb[0].mxu0
          %5673 = vmatprep.mubr.bf16.mxu0 %v5493
          %5674 = vmatmul.mubr.bf16.gmra.mrb[0].mxu0 %v5492
          %v5675 = vpop.f32.mrb[0].mxu0
          %v5676 = vadd.f32 %v5535, %v5675
          %v5677 = vpop.f32.mrb[0].mxu0
          %v5678 = vpop.f32.mrb[0].mxu0
          %v5679 = vadd.f32 %v5535, %v5678
          %v5680 = vpop.f32.mrb[0].mxu0
          %5681 = vmatprep.mubr.bf16.mxu0 %v5495
          %5682 = vmatmul.mubr.bf16.gmra.mrb[0].mxu0 %v5494
          %v5683 = vpop.f32.mrb[0].mxu0
          %v5684 = vadd.f32 %v5535, %v5683
          %v5685 = vpop.f32.mrb[0].mxu0
          %v5686 = vpop.f32.mrb[0].mxu0
          %v5687 = vadd.f32 %v5535, %v5686
          %v5688 = vpop.f32.mrb[0].mxu0
          %5689 = vmatprep.mubr.bf16.mxu0 %v5497
          %5690 = vmatmul.mubr.bf16.gmra.mrb[0].mxu0 %v5496
          %v5691 = vpop.f32.mrb[0].mxu0
          %v5692 = vadd.f32 %v5535, %v5691
          %v5693 = vpop.f32.mrb[0].mxu0
          %v5694 = vpop.f32.mrb[0].mxu0
          %v5695 = vadd.f32 %v5535, %v5694
          %v5696 = vpop.f32.mrb[0].mxu0
          %5697 = vdwg.mxu0
          %5698 = vst [vmem:[%s6] sm:$0xff] %v5668
          %5699 = vst [vmem:[%s6 + $0x8] sm:$0xff] %v5671
          %5700 = vst [vmem:[%s6 + $0x10] sm:$0xff] %v5676
          %5701 = vst [vmem:[%s6 + $0x18] sm:$0xff] %v5679
          %5702 = vst [vmem:[%s6 + $0x20] sm:$0xff] %v5684
          %5703 = vst [vmem:[%s6 + $0x28] sm:$0xff] %v5687
          %5704 = vst [vmem:[%s6 + $0x30] sm:$0xff] %v5692
          %5705 = vst [vmem:[%s6 + $0x38] sm:$0xff] %v5695
        $region76: #{lstm_model_forward.1} parent=43 // pred_fallthru
          _
        // Predicated region
        $region77: #{lstm_model_forward.1} parent=43 // pred_check
          %p5706 = pneg %p178
        $region78: #{lstm_model_forward.1} parent=43 // pred_check_branch
          %5708 = sbr.rel (%p5706) target = $region80
        $region79: #{lstm_model_forward.1} parent=43 // pred_region
          _
        $region80: #{lstm_model_forward.1} parent=43 // pred_fallthru
          _
        // Predicated region
        $region81: #{lstm_model_forward.1} parent=43 // pred_check
          %p5709 = pneg %p178
        $region82: #{lstm_model_forward.1} parent=43 // pred_check_branch
          %5711 = sbr.rel (%p5709) target = $region84
        $region83: #{lstm_model_forward.1} parent=43 // pred_region
          _
        $region84: #{lstm_model_forward.1} parent=43 // pred_fallthru
          _
      $region44: #{lstm_model_forward.1} parent=5 // pred_fallthru
        _
      %p5712 = scmp.le.s32.totalorder 2, %s19
      // Predicated region
      $region85: #{lstm_model_forward.1} parent=5 // pred_check
        %p5713 = pneg %p5712
      $region86: #{lstm_model_forward.1} parent=5 // pred_check_branch
        %5715 = sbr.rel (%p5713) target = $region88
      $region87: #{lstm_model_forward.1} parent=5 // pred_region
        %s5716 = ssub.s32 %s19, 2
      $region88: #{lstm_model_forward.1} parent=5 // pred_fallthru
        _
    $region6: #{lstm_model_forward.1} parent=1 // loop_footer
      %s23 = sadd.s32 1, %s19
    $region7: #{lstm_model_forward.1} parent=1 // loop_footer_branch
      %18 = sbr.rel target = $region3
    $region8: #{lstm_model_forward.1} parent=1 // loop_exit
      _
    %5717 = vsyncpa [#allocation7], 1
    %s5718 = scalar_lea.sflag [#allocation7], 1
    %5719 = vsyncpa %s5718, 1
    %5720 = vsyncpa [#allocation9], 1
    %s5721 = scalar_lea.sflag [#allocation9], 1
    %5722 = vsyncpa %s5721, 1
    %5723 = vsyncpa [#allocation12], 1

</llo_original>
